<compile_context>
chip_gen: v5e
topology: v5e:2x2
jax: 0.10.0
libtpu: 0.0.40
codegen_flags: <defaults>
</compile_context>

<pallas_src>
import numpy as np

import jax
import jax.numpy as jnp
from jax.experimental import pallas as pl


# ----------------------------------------------------------------------------
# Parameter construction (deterministic, PyTorch-style uniform fan-in init)
# ----------------------------------------------------------------------------
def _init(key, shape, fan_in):
    bound = 1.0 / np.sqrt(float(fan_in))
    return jax.random.uniform(key, shape, jnp.float32, -bound, bound)


def make_params(key, latent_dims):
    ks = jax.random.split(key, 32)
    i = iter(range(32))
    p = {}
    # Encoder
    p["e_conv1_w"] = _init(ks[next(i)], (8, 1, 3, 3), 1 * 9)
    p["e_conv1_b"] = _init(ks[next(i)], (8,), 1 * 9)
    p["e_conv2_w"] = _init(ks[next(i)], (16, 8, 3, 3), 8 * 9)
    p["e_conv2_b"] = _init(ks[next(i)], (16,), 8 * 9)
    p["e_bn_g"] = jnp.ones((16,), jnp.float32)
    p["e_bn_b"] = jnp.zeros((16,), jnp.float32)
    p["e_conv3_w"] = _init(ks[next(i)], (32, 16, 3, 3), 16 * 9)
    p["e_conv3_b"] = _init(ks[next(i)], (32,), 16 * 9)
    p["e_lin1_w"] = _init(ks[next(i)], (128, 288), 288)
    p["e_lin1_b"] = _init(ks[next(i)], (128,), 288)
    p["e_lin2_w"] = _init(ks[next(i)], (latent_dims, 128), 128)
    p["e_lin2_b"] = _init(ks[next(i)], (latent_dims,), 128)
    p["e_lin3_w"] = _init(ks[next(i)], (latent_dims, 128), 128)
    p["e_lin3_b"] = _init(ks[next(i)], (latent_dims,), 128)
    # Decoder
    p["d_lin1_w"] = _init(ks[next(i)], (128, latent_dims), latent_dims)
    p["d_lin1_b"] = _init(ks[next(i)], (128,), latent_dims)
    p["d_lin2_w"] = _init(ks[next(i)], (288, 128), 128)
    p["d_lin2_b"] = _init(ks[next(i)], (288,), 128)
    p["d_convT1_w"] = _init(ks[next(i)], (32, 16, 3, 3), 32 * 9)  # (Cin, Cout, KH, KW)
    p["d_convT1_b"] = _init(ks[next(i)], (16,), 32 * 9)
    p["d_bn1_g"] = jnp.ones((16,), jnp.float32)
    p["d_bn1_b"] = jnp.zeros((16,), jnp.float32)
    p["d_convT2_w"] = _init(ks[next(i)], (16, 8, 3, 3), 16 * 9)
    p["d_convT2_b"] = _init(ks[next(i)], (8,), 16 * 9)
    p["d_bn2_g"] = jnp.ones((8,), jnp.float32)
    p["d_bn2_b"] = jnp.zeros((8,), jnp.float32)
    p["d_convT3_w"] = _init(ks[next(i)], (8, 1, 3, 3), 8 * 9)
    p["d_convT3_b"] = _init(ks[next(i)], (1,), 8 * 9)
    return p


# ----------------------------------------------------------------------------
# One-time host-side weight lowering.
#
# Feature maps are laid out as x2d[(b*H + h), (w*C + c)].  Each conv /
# conv-transpose / flatten-linear layer becomes
#       y2d = sum_di  S[di] @ x2d @ R[di]  (+ bias)
# with constant selector matrices S and weight-derived matrices R, all built
# once here in numpy (cheap, outside the hot path).
# ----------------------------------------------------------------------------
def pack_inputs(params, B):
    p = {k: np.asarray(v, np.float32) for k, v in params.items()}

    def conv_S(H_out, H_in, s, pad):
        S = np.zeros((3, B * H_out, B * H_in), np.float32)
        for di in range(3):
            for b in range(B):
                for oh in range(H_out):
                    ih = s * oh + di - pad
                    if 0 <= ih < H_in:
                        S[di, b * H_out + oh, b * H_in + ih] = 1.0
        return S

    def conv_R(w, W_out, W_in, s, pad):          # w: (Cout, Cin, 3, 3)
        Cout, Cin, _, KW = w.shape
        R = np.zeros((3, W_in * Cin, W_out * Cout), np.float32)
        for di in range(3):
            for ow in range(W_out):
                for dj in range(KW):
                    iw = s * ow + dj - pad
                    if 0 <= iw < W_in:
                        R[di, iw * Cin:(iw + 1) * Cin,
                          ow * Cout:(ow + 1) * Cout] += w[:, :, di, dj].T
        return R

    def convT_S(H_out, H_in, s, pad):
        S = np.zeros((3, B * H_out, B * H_in), np.float32)
        for di in range(3):
            for b in range(B):
                for ih in range(H_in):
                    oy = s * ih + di - pad
                    if 0 <= oy < H_out:
                        S[di, b * H_out + oy, b * H_in + ih] = 1.0
        return S

    def convT_R(w, W_out, W_in, s, pad):         # w: (Cin, Cout, 3, 3)
        Cin, Cout, _, KW = w.shape
        R = np.zeros((3, W_in * Cin, W_out * Cout), np.float32)
        for di in range(3):
            for iw in range(W_in):
                for dj in range(KW):
                    ox = s * iw + dj - pad
                    if 0 <= ox < W_out:
                        R[di, iw * Cin:(iw + 1) * Cin,
                          ox * Cout:(ox + 1) * Cout] += w[:, :, di, dj]
        return R

    def bias_row(b_vec, W_out):                  # broadcast bias over (w, c) columns
        return np.tile(b_vec.astype(np.float32), W_out)[None, :]

    def bn_mats(C, W_out):                       # channel reduce / broadcast matrices
        g = np.tile(np.eye(C, dtype=np.float32), (W_out, 1))   # (W_out*C, C)
        return g, np.ascontiguousarray(g.T)

    def flat_S(H):                               # torch flatten (C,H,W) order
        S = np.zeros((H, B, B * H), np.float32)
        for ih in range(H):
            for b in range(B):
                S[ih, b, b * H + ih] = 1.0
        return S

    def flat_R(w1, H, W, C):                     # w1: (N, C*H*W)
        N = w1.shape[0]
        R = np.zeros((H, W * C, N), np.float32)
        for ih in range(H):
            for iw in range(W):
                for ci in range(C):
                    R[ih, iw * C + ci, :] = w1[:, ci * H * W + ih * W + iw]
        return R

    def unflat_P(H):                             # torch unflatten to (C,H,W)
        P = np.zeros((H, B * H, B), np.float32)
        for ih in range(H):
            for b in range(B):
                P[ih, b * H + ih, b] = 1.0
        return P

    def unflat_Q(w2, H, W, C):                   # w2: (C*H*W, K)
        K = w2.shape[1]
        Q = np.zeros((H, K, W * C), np.float32)
        for ih in range(H):
            for iw in range(W):
                for ci in range(C):
                    Q[ih, :, iw * C + ci] = w2[ci * H * W + ih * W + iw, :]
        return Q

    def unflat_bias(b2, H, W, C):
        Bm = np.zeros((B * H, W * C), np.float32)
        for b in range(B):
            for ih in range(H):
                for iw in range(W):
                    for ci in range(C):
                        Bm[b * H + ih, iw * C + ci] = b2[ci * H * W + ih * W + iw]
        return Bm

    args = []
    # ---- Encoder ----
    args += [conv_S(14, 28, 2, 1), conv_R(p["e_conv1_w"], 14, 28, 2, 1),
             bias_row(p["e_conv1_b"], 14)]
    args += [conv_S(7, 14, 2, 1), conv_R(p["e_conv2_w"], 7, 14, 2, 1),
             bias_row(p["e_conv2_b"], 7)]
    g, gt = bn_mats(16, 7)
    args += [p["e_bn_g"].reshape(1, -1), p["e_bn_b"].reshape(1, -1), g, gt]
    args += [conv_S(3, 7, 2, 0), conv_R(p["e_conv3_w"], 3, 7, 2, 0),
             bias_row(p["e_conv3_b"], 3)]
    args += [flat_S(3), flat_R(p["e_lin1_w"], 3, 3, 32), p["e_lin1_b"][None, :]]
    args += [np.ascontiguousarray(p["e_lin2_w"].T), p["e_lin2_b"][None, :],
             np.ascontiguousarray(p["e_lin3_w"].T), p["e_lin3_b"][None, :]]
    # ---- Decoder ----
    args += [np.ascontiguousarray(p["d_lin1_w"].T), p["d_lin1_b"][None, :]]
    args += [unflat_P(3), unflat_Q(p["d_lin2_w"], 3, 3, 32),
             unflat_bias(p["d_lin2_b"], 3, 3, 32)]
    args += [convT_S(7, 3, 2, 0), convT_R(p["d_convT1_w"], 7, 3, 2, 0),
             bias_row(p["d_convT1_b"], 7)]
    g, gt = bn_mats(16, 7)
    args += [p["d_bn1_g"].reshape(1, -1), p["d_bn1_b"].reshape(1, -1), g, gt]
    args += [convT_S(14, 7, 2, 1), convT_R(p["d_convT2_w"], 14, 7, 2, 1),
             bias_row(p["d_convT2_b"], 14)]
    g, gt = bn_mats(8, 14)
    args += [p["d_bn2_g"].reshape(1, -1), p["d_bn2_b"].reshape(1, -1), g, gt]
    args += [convT_S(28, 14, 2, 1), convT_R(p["d_convT3_w"], 28, 14, 2, 1),
             bias_row(p["d_convT3_b"], 28)]

    return [jnp.asarray(a, jnp.float32) for a in args]


# ----------------------------------------------------------------------------
# Fused VAE forward: one pallas_call, everything VMEM-resident.
# ----------------------------------------------------------------------------
def vae_forward(packed, x_nchw, noise):
    B, _, H, W = x_nchw.shape
    x2d = x_nchw.reshape(B * H, W)            # rows=(b,h), cols=(w)  (Cin=1)

    cnt_e = float(B * 7 * 7)                  # BN reduction counts (train-mode stats)
    cnt_d1 = float(B * 7 * 7)
    cnt_d2 = float(B * 14 * 14)

    def kernel(*refs):
        out_ref = refs[-1]
        it = iter(refs[:-1])
        nx = lambda: next(it)

        x = nx()[...]                         # (B*28, 28)
        eps = nx()[...]                       # (B, L)

        def sxr(v, s_ref, r_ref):             # sum_di  S[di] @ v @ R[di]
            acc = None
            for i in range(3):
                t = jnp.dot(s_ref[i], v, preferred_element_type=jnp.float32)
                t = jnp.dot(t, r_ref[i], preferred_element_type=jnp.float32)
                acc = t if acc is None else acc + t
            return acc

        def bn_relu(v, gam, bet, g_red, g_bc, count):
            # single-pass batch stats over rows and the interleaved (w, c) columns
            s1 = jnp.dot(jnp.sum(v, axis=0, keepdims=True), g_red,
                         preferred_element_type=jnp.float32)
            s2 = jnp.dot(jnp.sum(v * v, axis=0, keepdims=True), g_red,
                         preferred_element_type=jnp.float32)
            mean = s1 * (1.0 / count)
            var = s2 * (1.0 / count) - mean * mean        # biased, torch train mode
            scale = gam * jax.lax.rsqrt(var + 1e-5)       # (1, C)
            shift = bet - mean * scale                    # (1, C)
            scale_c = jnp.dot(scale, g_bc, preferred_element_type=jnp.float32)
            shift_c = jnp.dot(shift, g_bc, preferred_element_type=jnp.float32)
            return jnp.maximum(v * scale_c + shift_c, 0.0)

        # ---------------- Encoder ----------------
        s, r, b = nx(), nx(), nx()
        h = jnp.maximum(sxr(x, s, r) + b[...], 0.0)             # conv1+relu   (B*14,112)
        s, r, b = nx(), nx(), nx()
        h = sxr(h, s, r) + b[...]                               # conv2        (B*7,112)
        gam, bet, gr, gb = nx()[...], nx()[...], nx()[...], nx()[...]
        h = bn_relu(h, gam, bet, gr, gb, cnt_e)                 # BN+relu epilogue
        s, r, b = nx(), nx(), nx()
        h = jnp.maximum(sxr(h, s, r) + b[...], 0.0)             # conv3+relu   (B*3,96)
        s, r, b = nx(), nx(), nx()
        h = jnp.maximum(sxr(h, s, r) + b[...], 0.0)             # flatten+lin1 (B,128)

        wm, bm, ws, bs = nx()[...], nx()[...], nx()[...], nx()[...]
        mu = jnp.dot(h, wm, preferred_element_type=jnp.float32) + bm
        sg = jnp.exp(jnp.dot(h, ws, preferred_element_type=jnp.float32) + bs)
        z = mu + sg * eps                                       # reparameterization
        # TODO(synk): the reference Encoder also stores self.kl as a stateful side
        # attribute; it is not part of the returned forward value, so not computed.

        # ---------------- Decoder ----------------
        w, b = nx()[...], nx()[...]
        y = jnp.maximum(jnp.dot(z, w, preferred_element_type=jnp.float32) + b, 0.0)
        s, r, b = nx(), nx(), nx()
        y = jnp.maximum(sxr(y, s, r) + b[...], 0.0)             # lin2+relu+unflatten (B*3,96)
        s, r, b = nx(), nx(), nx()
        y = sxr(y, s, r) + b[...]                               # convT1       (B*7,112)
        gam, bet, gr, gb = nx()[...], nx()[...], nx()[...], nx()[...]
        y = bn_relu(y, gam, bet, gr, gb, cnt_d1)
        s, r, b = nx(), nx(), nx()
        y = sxr(y, s, r) + b[...]                               # convT2       (B*14,112)
        gam, bet, gr, gb = nx()[...], nx()[...], nx()[...], nx()[...]
        y = bn_relu(y, gam, bet, gr, gb, cnt_d2)
        s, r, b = nx(), nx(), nx()
        y = jax.nn.sigmoid(sxr(y, s, r) + b[...])               # convT3+sigmoid (B*28,28)

        out_ref[...] = y

    out2d = pl.pallas_call(
        kernel,
        out_shape=jax.ShapeDtypeStruct((B * 28, 28), jnp.float32),
    )(x2d, noise, *packed)
    return out2d.reshape(B, 28, 28)[:, None, :, :]              # -> NCHW (B,1,28,28)


# ----------------------------------------------------------------------------
# Pure-JAX reference (im2col conv + dilation-based conv-transpose) — used only
# as an in-script numerical self-check of the fused kernel.
# ----------------------------------------------------------------------------
def _ref_im2col(x, kh, kw, stride):
    B, H, W, C = x.shape
    oh = (H - kh) // stride + 1
    ow = (W - kw) // stride + 1
    cols = []
    for di in range(kh):
        for dj in range(kw):
            cols.append(x[:, di::stride, dj::stride, :][:, :oh, :ow, :])
    return jnp.concatenate(cols, axis=-1), oh, ow


def _ref_conv2d(x, w_oihw, b, stride, pad):
    Cout, Cin, kh, kw = w_oihw.shape
    B = x.shape[0]
    xp = jnp.pad(x, ((0, 0), (pad, pad), (pad, pad), (0, 0)))
    patches, oh, ow = _ref_im2col(xp, kh, kw, stride)
    A = patches.reshape(B * oh * ow, kh * kw * Cin)
    Wm = jnp.transpose(w_oihw, (2, 3, 1, 0)).reshape(kh * kw * Cin, Cout)
    out = jnp.dot(A, Wm, precision=jax.lax.Precision.HIGHEST) + b
    return out.reshape(B, oh, ow, Cout)


def _ref_convT2d(x, w_iohw, b, stride, pad, opad):
    Cin, Cout, kh, kw = w_iohw.shape
    B, H, W, _ = x.shape
    Hd, Wd = (H - 1) * stride + 1, (W - 1) * stride + 1
    xd = jnp.zeros((B, Hd, Wd, Cin), x.dtype).at[:, ::stride, ::stride, :].set(x)
    lo, hi = kh - 1 - pad, kh - 1 - pad + opad
    xp = jnp.pad(xd, ((0, 0), (lo, hi), (lo, hi), (0, 0)))
    w_conv = jnp.transpose(w_iohw[:, :, ::-1, ::-1], (1, 0, 2, 3))
    return _ref_conv2d(xp, w_conv, b, 1, 0)


def _ref_bn_relu(x, g, bvec):
    m = jnp.mean(x, axis=(0, 1, 2), keepdims=True)
    v = jnp.mean((x - m) ** 2, axis=(0, 1, 2), keepdims=True)
    return jnp.maximum((x - m) * jax.lax.rsqrt(v + 1e-5) * g + bvec, 0.0)


def reference_forward(params, x_nchw, noise):
    p = params
    B = x_nchw.shape[0]
    x = jnp.transpose(x_nchw, (0, 2, 3, 1))
    x = jnp.maximum(_ref_conv2d(x, p["e_conv1_w"], p["e_conv1_b"], 2, 1), 0.0)
    x = _ref_bn_relu(_ref_conv2d(x, p["e_conv2_w"], p["e_conv2_b"], 2, 1),
                     p["e_bn_g"], p["e_bn_b"])
    x = jnp.maximum(_ref_conv2d(x, p["e_conv3_w"], p["e_conv3_b"], 2, 0), 0.0)
    h = jnp.transpose(x, (0, 3, 1, 2)).reshape(B, 288)
    h = jnp.maximum(h @ p["e_lin1_w"].T + p["e_lin1_b"], 0.0)
    mu = h @ p["e_lin2_w"].T + p["e_lin2_b"]
    sg = jnp.exp(h @ p["e_lin3_w"].T + p["e_lin3_b"])
    z = mu + sg * noise
    y = jnp.maximum(z @ p["d_lin1_w"].T + p["d_lin1_b"], 0.0)
    y = jnp.maximum(y @ p["d_lin2_w"].T + p["d_lin2_b"], 0.0)
    y = jnp.transpose(y.reshape(B, 32, 3, 3), (0, 2, 3, 1))
    y = _ref_bn_relu(_ref_convT2d(y, p["d_convT1_w"], p["d_convT1_b"], 2, 0, 0),
                     p["d_bn1_g"], p["d_bn1_b"])
    y = _ref_bn_relu(_ref_convT2d(y, p["d_convT2_w"], p["d_convT2_b"], 2, 1, 1),
                     p["d_bn2_g"], p["d_bn2_b"])
    y = jax.nn.sigmoid(_ref_convT2d(y, p["d_convT3_w"], p["d_convT3_b"], 2, 1, 1))
    return jnp.transpose(y, (0, 3, 1, 2))


if __name__ == "__main__":
    latent_dims = 8
    B = 2
    key = jax.random.PRNGKey(0)
    k_params, k_x, k_noise = jax.random.split(key, 3)

    params = make_params(k_params, latent_dims)
    x = jax.random.uniform(k_x, (B, 1, 28, 28), jnp.float32)   # MNIST-like NCHW input
    noise = jax.random.normal(k_noise, (B, latent_dims), jnp.float32)

    packed = pack_inputs(params, B)            # one-time host-side weight lowering

    out = jax.jit(vae_forward)(packed, x, noise)
    out = jax.block_until_ready(out)

    assert out.shape == (B, 1, 28, 28), out.shape
    assert bool(jnp.all(jnp.isfinite(out)))
    assert bool(jnp.all((out >= 0.0) & (out <= 1.0)))          # sigmoid output range

    ref = jax.block_until_ready(reference_forward(params, x, noise))
    assert float(jnp.max(jnp.abs(out - ref))) < 3e-2, "mismatch vs pure-JAX reference"

    print("KERNEL_OK")
</pallas_src>

<mosaic_0001>
module attributes {stable_mosaic.version = 11 : i64} {
  func.func @kernel(%arg0: memref<56x28xf32, #tpu.memory_space<vmem>>, %arg1: memref<2x8xf32, #tpu.memory_space<vmem>>, %arg2: memref<3x28x56xf32, #tpu.memory_space<vmem>>, %arg3: memref<3x28x112xf32, #tpu.memory_space<vmem>>, %arg4: memref<1x112xf32, #tpu.memory_space<vmem>>, %arg5: memref<3x14x28xf32, #tpu.memory_space<vmem>>, %arg6: memref<3x112x112xf32, #tpu.memory_space<vmem>>, %arg7: memref<1x112xf32, #tpu.memory_space<vmem>>, %arg8: memref<1x16xf32, #tpu.memory_space<vmem>>, %arg9: memref<1x16xf32, #tpu.memory_space<vmem>>, %arg10: memref<112x16xf32, #tpu.memory_space<vmem>>, %arg11: memref<16x112xf32, #tpu.memory_space<vmem>>, %arg12: memref<3x6x14xf32, #tpu.memory_space<vmem>>, %arg13: memref<3x112x96xf32, #tpu.memory_space<vmem>>, %arg14: memref<1x96xf32, #tpu.memory_space<vmem>>, %arg15: memref<3x2x6xf32, #tpu.memory_space<vmem>>, %arg16: memref<3x96x128xf32, #tpu.memory_space<vmem>>, %arg17: memref<1x128xf32, #tpu.memory_space<vmem>>, %arg18: memref<128x8xf32, #tpu.memory_space<vmem>>, %arg19: memref<1x8xf32, #tpu.memory_space<vmem>>, %arg20: memref<128x8xf32, #tpu.memory_space<vmem>>, %arg21: memref<1x8xf32, #tpu.memory_space<vmem>>, %arg22: memref<8x128xf32, #tpu.memory_space<vmem>>, %arg23: memref<1x128xf32, #tpu.memory_space<vmem>>, %arg24: memref<3x6x2xf32, #tpu.memory_space<vmem>>, %arg25: memref<3x128x96xf32, #tpu.memory_space<vmem>>, %arg26: memref<6x96xf32, #tpu.memory_space<vmem>>, %arg27: memref<3x14x6xf32, #tpu.memory_space<vmem>>, %arg28: memref<3x96x112xf32, #tpu.memory_space<vmem>>, %arg29: memref<1x112xf32, #tpu.memory_space<vmem>>, %arg30: memref<1x16xf32, #tpu.memory_space<vmem>>, %arg31: memref<1x16xf32, #tpu.memory_space<vmem>>, %arg32: memref<112x16xf32, #tpu.memory_space<vmem>>, %arg33: memref<16x112xf32, #tpu.memory_space<vmem>>, %arg34: memref<3x28x14xf32, #tpu.memory_space<vmem>>, %arg35: memref<3x112x112xf32, #tpu.memory_space<vmem>>, %arg36: memref<1x112xf32, #tpu.memory_space<vmem>>, %arg37: memref<1x8xf32, #tpu.memory_space<vmem>>, %arg38: memref<1x8xf32, #tpu.memory_space<vmem>>, %arg39: memref<112x8xf32, #tpu.memory_space<vmem>>, %arg40: memref<8x112xf32, #tpu.memory_space<vmem>>, %arg41: memref<3x56x28xf32, #tpu.memory_space<vmem>>, %arg42: memref<3x112x28xf32, #tpu.memory_space<vmem>>, %arg43: memref<1x28xf32, #tpu.memory_space<vmem>>, %arg44: memref<56x28xf32, #tpu.memory_space<vmem>>) attributes {dimension_semantics = [], scalar_prefetch = 0 : i64, scratch_operands = 0 : i64, tpu.core_type = #tpu.core_type<tc>} {
    %c0 = arith.constant 0 : index
    %c0_0 = arith.constant 0 : index
    %0 = vector.load %arg0[%c0, %c0_0] : memref<56x28xf32, #tpu.memory_space<vmem>>, vector<56x28xf32>
    %c0_1 = arith.constant 0 : index
    %c0_2 = arith.constant 0 : index
    %1 = vector.load %arg1[%c0_1, %c0_2] : memref<2x8xf32, #tpu.memory_space<vmem>>, vector<2x8xf32>
    %c0_3 = arith.constant 0 : index
    %c0_4 = arith.constant 0 : index
    %c0_5 = arith.constant 0 : index
    %2 = vector.load %arg2[%c0_3, %c0_4, %c0_5] : memref<3x28x56xf32, #tpu.memory_space<vmem>>, vector<1x28x56xf32>
    %3 = vector.shape_cast %2 : vector<1x28x56xf32> to vector<28x56xf32>
    %cst = arith.constant dense<0.000000e+00> : vector<28x28xf32>
    %4 = tpu.matmul %3, %0, %cst {dimension_numbers = #tpu.dot_dimension_numbers<[1], [0], [0], [1], [0, 0, 1, 1], [], []>} : vector<28x56xf32>, vector<56x28xf32>, vector<28x28xf32> -> vector<28x28xf32>
    %c0_6 = arith.constant 0 : index
    %c0_7 = arith.constant 0 : index
    %c0_8 = arith.constant 0 : index
    %5 = vector.load %arg3[%c0_6, %c0_7, %c0_8] : memref<3x28x112xf32, #tpu.memory_space<vmem>>, vector<1x28x112xf32>
    %6 = vector.shape_cast %5 : vector<1x28x112xf32> to vector<28x112xf32>
    %cst_9 = arith.constant dense<0.000000e+00> : vector<28x112xf32>
    %7 = tpu.matmul %4, %6, %cst_9 {dimension_numbers = #tpu.dot_dimension_numbers<[1], [0], [0], [1], [0, 0, 1, 1], [], []>} : vector<28x28xf32>, vector<28x112xf32>, vector<28x112xf32> -> vector<28x112xf32>
    %c1 = arith.constant 1 : index
    %c0_10 = arith.constant 0 : index
    %c0_11 = arith.constant 0 : index
    %8 = vector.load %arg2[%c1, %c0_10, %c0_11] : memref<3x28x56xf32, #tpu.memory_space<vmem>>, vector<1x28x56xf32>
    %9 = vector.shape_cast %8 : vector<1x28x56xf32> to vector<28x56xf32>
    %cst_12 = arith.constant dense<0.000000e+00> : vector<28x28xf32>
    %10 = tpu.matmul %9, %0, %cst_12 {dimension_numbers = #tpu.dot_dimension_numbers<[1], [0], [0], [1], [0, 0, 1, 1], [], []>} : vector<28x56xf32>, vector<56x28xf32>, vector<28x28xf32> -> vector<28x28xf32>
    %c1_13 = arith.constant 1 : index
    %c0_14 = arith.constant 0 : index
    %c0_15 = arith.constant 0 : index
    %11 = vector.load %arg3[%c1_13, %c0_14, %c0_15] : memref<3x28x112xf32, #tpu.memory_space<vmem>>, vector<1x28x112xf32>
    %12 = vector.shape_cast %11 : vector<1x28x112xf32> to vector<28x112xf32>
    %cst_16 = arith.constant dense<0.000000e+00> : vector<28x112xf32>
    %13 = tpu.matmul %10, %12, %cst_16 {dimension_numbers = #tpu.dot_dimension_numbers<[1], [0], [0], [1], [0, 0, 1, 1], [], []>} : vector<28x28xf32>, vector<28x112xf32>, vector<28x112xf32> -> vector<28x112xf32>
    %14 = arith.addf %7, %13 : vector<28x112xf32>
    %c2 = arith.constant 2 : index
    %c0_17 = arith.constant 0 : index
    %c0_18 = arith.constant 0 : index
    %15 = vector.load %arg2[%c2, %c0_17, %c0_18] : memref<3x28x56xf32, #tpu.memory_space<vmem>>, vector<1x28x56xf32>
    %16 = vector.shape_cast %15 : vector<1x28x56xf32> to vector<28x56xf32>
    %cst_19 = arith.constant dense<0.000000e+00> : vector<28x28xf32>
    %17 = tpu.matmul %16, %0, %cst_19 {dimension_numbers = #tpu.dot_dimension_numbers<[1], [0], [0], [1], [0, 0, 1, 1], [], []>} : vector<28x56xf32>, vector<56x28xf32>, vector<28x28xf32> -> vector<28x28xf32>
    %c2_20 = arith.constant 2 : index
    %c0_21 = arith.constant 0 : index
    %c0_22 = arith.constant 0 : index
    %18 = vector.load %arg3[%c2_20, %c0_21, %c0_22] : memref<3x28x112xf32, #tpu.memory_space<vmem>>, vector<1x28x112xf32>
    %19 = vector.shape_cast %18 : vector<1x28x112xf32> to vector<28x112xf32>
    %cst_23 = arith.constant dense<0.000000e+00> : vector<28x112xf32>
    %20 = tpu.matmul %17, %19, %cst_23 {dimension_numbers = #tpu.dot_dimension_numbers<[1], [0], [0], [1], [0, 0, 1, 1], [], []>} : vector<28x28xf32>, vector<28x112xf32>, vector<28x112xf32> -> vector<28x112xf32>
    %21 = arith.addf %14, %20 : vector<28x112xf32>
    %c0_24 = arith.constant 0 : index
    %c0_25 = arith.constant 0 : index
    %22 = vector.load %arg4[%c0_24, %c0_25] : memref<1x112xf32, #tpu.memory_space<vmem>>, vector<1x112xf32>
    %23 = vector.broadcast %22 : vector<1x112xf32> to vector<28x112xf32>
    %24 = arith.addf %21, %23 : vector<28x112xf32>
    %cst_26 = arith.constant 0.000000e+00 : f32
    %25 = vector.broadcast %cst_26 : f32 to vector<28x112xf32>
    %26 = arith.maximumf %24, %25 : vector<28x112xf32>
    %c0_27 = arith.constant 0 : index
    %c0_28 = arith.constant 0 : index
    %c0_29 = arith.constant 0 : index
    %27 = vector.load %arg5[%c0_27, %c0_28, %c0_29] : memref<3x14x28xf32, #tpu.memory_space<vmem>>, vector<1x14x28xf32>
    %28 = vector.shape_cast %27 : vector<1x14x28xf32> to vector<14x28xf32>
    %cst_30 = arith.constant dense<0.000000e+00> : vector<14x112xf32>
    %29 = tpu.matmul %28, %26, %cst_30 {dimension_numbers = #tpu.dot_dimension_numbers<[1], [0], [0], [1], [0, 0, 1, 1], [], []>} : vector<14x28xf32>, vector<28x112xf32>, vector<14x112xf32> -> vector<14x112xf32>
    %c0_31 = arith.constant 0 : index
    %c0_32 = arith.constant 0 : index
    %c0_33 = arith.constant 0 : index
    %30 = vector.load %arg6[%c0_31, %c0_32, %c0_33] : memref<3x112x112xf32, #tpu.memory_space<vmem>>, vector<1x112x112xf32>
    %31 = vector.shape_cast %30 : vector<1x112x112xf32> to vector<112x112xf32>
    %cst_34 = arith.constant dense<0.000000e+00> : vector<14x112xf32>
    %32 = tpu.matmul %29, %31, %cst_34 {dimension_numbers = #tpu.dot_dimension_numbers<[1], [0], [0], [1], [0, 0, 1, 1], [], []>} : vector<14x112xf32>, vector<112x112xf32>, vector<14x112xf32> -> vector<14x112xf32>
    %c1_35 = arith.constant 1 : index
    %c0_36 = arith.constant 0 : index
    %c0_37 = arith.constant 0 : index
    %33 = vector.load %arg5[%c1_35, %c0_36, %c0_37] : memref<3x14x28xf32, #tpu.memory_space<vmem>>, vector<1x14x28xf32>
    %34 = vector.shape_cast %33 : vector<1x14x28xf32> to vector<14x28xf32>
    %cst_38 = arith.constant dense<0.000000e+00> : vector<14x112xf32>
    %35 = tpu.matmul %34, %26, %cst_38 {dimension_numbers = #tpu.dot_dimension_numbers<[1], [0], [0], [1], [0, 0, 1, 1], [], []>} : vector<14x28xf32>, vector<28x112xf32>, vector<14x112xf32> -> vector<14x112xf32>
    %c1_39 = arith.constant 1 : index
    %c0_40 = arith.constant 0 : index
    %c0_41 = arith.constant 0 : index
    %36 = vector.load %arg6[%c1_39, %c0_40, %c0_41] : memref<3x112x112xf32, #tpu.memory_space<vmem>>, vector<1x112x112xf32>
    %37 = vector.shape_cast %36 : vector<1x112x112xf32> to vector<112x112xf32>
    %cst_42 = arith.constant dense<0.000000e+00> : vector<14x112xf32>
    %38 = tpu.matmul %35, %37, %cst_42 {dimension_numbers = #tpu.dot_dimension_numbers<[1], [0], [0], [1], [0, 0, 1, 1], [], []>} : vector<14x112xf32>, vector<112x112xf32>, vector<14x112xf32> -> vector<14x112xf32>
    %39 = arith.addf %32, %38 : vector<14x112xf32>
    %c2_43 = arith.constant 2 : index
    %c0_44 = arith.constant 0 : index
    %c0_45 = arith.constant 0 : index
    %40 = vector.load %arg5[%c2_43, %c0_44, %c0_45] : memref<3x14x28xf32, #tpu.memory_space<vmem>>, vector<1x14x28xf32>
    %41 = vector.shape_cast %40 : vector<1x14x28xf32> to vector<14x28xf32>
    %cst_46 = arith.constant dense<0.000000e+00> : vector<14x112xf32>
    %42 = tpu.matmul %41, %26, %cst_46 {dimension_numbers = #tpu.dot_dimension_numbers<[1], [0], [0], [1], [0, 0, 1, 1], [], []>} : vector<14x28xf32>, vector<28x112xf32>, vector<14x112xf32> -> vector<14x112xf32>
    %c2_47 = arith.constant 2 : index
    %c0_48 = arith.constant 0 : index
    %c0_49 = arith.constant 0 : index
    %43 = vector.load %arg6[%c2_47, %c0_48, %c0_49] : memref<3x112x112xf32, #tpu.memory_space<vmem>>, vector<1x112x112xf32>
    %44 = vector.shape_cast %43 : vector<1x112x112xf32> to vector<112x112xf32>
    %cst_50 = arith.constant dense<0.000000e+00> : vector<14x112xf32>
    %45 = tpu.matmul %42, %44, %cst_50 {dimension_numbers = #tpu.dot_dimension_numbers<[1], [0], [0], [1], [0, 0, 1, 1], [], []>} : vector<14x112xf32>, vector<112x112xf32>, vector<14x112xf32> -> vector<14x112xf32>
    %46 = arith.addf %39, %45 : vector<14x112xf32>
    %c0_51 = arith.constant 0 : index
    %c0_52 = arith.constant 0 : index
    %47 = vector.load %arg7[%c0_51, %c0_52] : memref<1x112xf32, #tpu.memory_space<vmem>>, vector<1x112xf32>
    %48 = vector.broadcast %47 : vector<1x112xf32> to vector<14x112xf32>
    %49 = arith.addf %46, %48 : vector<14x112xf32>
    %c0_53 = arith.constant 0 : index
    %c0_54 = arith.constant 0 : index
    %50 = vector.load %arg8[%c0_53, %c0_54] : memref<1x16xf32, #tpu.memory_space<vmem>>, vector<1x16xf32>
    %c0_55 = arith.constant 0 : index
    %c0_56 = arith.constant 0 : index
    %51 = vector.load %arg9[%c0_55, %c0_56] : memref<1x16xf32, #tpu.memory_space<vmem>>, vector<1x16xf32>
    %c0_57 = arith.constant 0 : index
    %c0_58 = arith.constant 0 : index
    %52 = vector.load %arg10[%c0_57, %c0_58] : memref<112x16xf32, #tpu.memory_space<vmem>>, vector<112x16xf32>
    %c0_59 = arith.constant 0 : index
    %c0_60 = arith.constant 0 : index
    %53 = vector.load %arg11[%c0_59, %c0_60] : memref<16x112xf32, #tpu.memory_space<vmem>>, vector<16x112xf32>
    %cst_61 = arith.constant dense<0.000000e+00> : vector<112xf32>
    %54 = vector.multi_reduction <add>, %49, %cst_61 [0] : vector<14x112xf32> to vector<112xf32>
    %55 = vector.shape_cast %54 : vector<112xf32> to vector<1x112xf32>
    %cst_62 = arith.constant dense<0.000000e+00> : vector<1x16xf32>
    %56 = tpu.matmul %55, %52, %cst_62 {dimension_numbers = #tpu.dot_dimension_numbers<[1], [0], [0], [1], [0, 0, 1, 1], [], []>} : vector<1x112xf32>, vector<112x16xf32>, vector<1x16xf32> -> vector<1x16xf32>
    %57 = arith.mulf %49, %49 : vector<14x112xf32>
    %cst_63 = arith.constant dense<0.000000e+00> : vector<112xf32>
    %58 = vector.multi_reduction <add>, %57, %cst_63 [0] : vector<14x112xf32> to vector<112xf32>
    %59 = vector.shape_cast %58 : vector<112xf32> to vector<1x112xf32>
    %cst_64 = arith.constant dense<0.000000e+00> : vector<1x16xf32>
    %60 = tpu.matmul %59, %52, %cst_64 {dimension_numbers = #tpu.dot_dimension_numbers<[1], [0], [0], [1], [0, 0, 1, 1], [], []>} : vector<1x112xf32>, vector<112x16xf32>, vector<1x16xf32> -> vector<1x16xf32>
    %cst_65 = arith.constant 0.0102040814 : f32
    %61 = vector.broadcast %cst_65 : f32 to vector<1x16xf32>
    %62 = arith.mulf %56, %61 : vector<1x16xf32>
    %cst_66 = arith.constant 0.0102040814 : f32
    %63 = vector.broadcast %cst_66 : f32 to vector<1x16xf32>
    %64 = arith.mulf %60, %63 : vector<1x16xf32>
    %65 = arith.mulf %62, %62 : vector<1x16xf32>
    %66 = arith.subf %64, %65 : vector<1x16xf32>
    %cst_67 = arith.constant 9.99999974E-6 : f32
    %67 = vector.broadcast %cst_67 : f32 to vector<1x16xf32>
    %68 = arith.addf %66, %67 : vector<1x16xf32>
    %69 = math.rsqrt %68 : vector<1x16xf32>
    %70 = arith.mulf %50, %69 : vector<1x16xf32>
    %71 = arith.mulf %62, %70 : vector<1x16xf32>
    %72 = arith.subf %51, %71 : vector<1x16xf32>
    %cst_68 = arith.constant dense<0.000000e+00> : vector<1x112xf32>
    %73 = tpu.matmul %70, %53, %cst_68 {dimension_numbers = #tpu.dot_dimension_numbers<[1], [0], [0], [1], [0, 0, 1, 1], [], []>} : vector<1x16xf32>, vector<16x112xf32>, vector<1x112xf32> -> vector<1x112xf32>
    %cst_69 = arith.constant dense<0.000000e+00> : vector<1x112xf32>
    %74 = tpu.matmul %72, %53, %cst_69 {dimension_numbers = #tpu.dot_dimension_numbers<[1], [0], [0], [1], [0, 0, 1, 1], [], []>} : vector<1x16xf32>, vector<16x112xf32>, vector<1x112xf32> -> vector<1x112xf32>
    %75 = vector.broadcast %73 : vector<1x112xf32> to vector<14x112xf32>
    %76 = arith.mulf %49, %75 : vector<14x112xf32>
    %77 = vector.broadcast %74 : vector<1x112xf32> to vector<14x112xf32>
    %78 = arith.addf %76, %77 : vector<14x112xf32>
    %cst_70 = arith.constant 0.000000e+00 : f32
    %79 = vector.broadcast %cst_70 : f32 to vector<14x112xf32>
    %80 = arith.maximumf %78, %79 : vector<14x112xf32>
    %c0_71 = arith.constant 0 : index
    %c0_72 = arith.constant 0 : index
    %c0_73 = arith.constant 0 : index
    %81 = vector.load %arg12[%c0_71, %c0_72, %c0_73] : memref<3x6x14xf32, #tpu.memory_space<vmem>>, vector<1x6x14xf32>
    %82 = vector.shape_cast %81 : vector<1x6x14xf32> to vector<6x14xf32>
    %cst_74 = arith.constant dense<0.000000e+00> : vector<6x112xf32>
    %83 = tpu.matmul %82, %80, %cst_74 {dimension_numbers = #tpu.dot_dimension_numbers<[1], [0], [0], [1], [0, 0, 1, 1], [], []>} : vector<6x14xf32>, vector<14x112xf32>, vector<6x112xf32> -> vector<6x112xf32>
    %c0_75 = arith.constant 0 : index
    %c0_76 = arith.constant 0 : index
    %c0_77 = arith.constant 0 : index
    %84 = vector.load %arg13[%c0_75, %c0_76, %c0_77] : memref<3x112x96xf32, #tpu.memory_space<vmem>>, vector<1x112x96xf32>
    %85 = vector.shape_cast %84 : vector<1x112x96xf32> to vector<112x96xf32>
    %cst_78 = arith.constant dense<0.000000e+00> : vector<6x96xf32>
    %86 = tpu.matmul %83, %85, %cst_78 {dimension_numbers = #tpu.dot_dimension_numbers<[1], [0], [0], [1], [0, 0, 1, 1], [], []>} : vector<6x112xf32>, vector<112x96xf32>, vector<6x96xf32> -> vector<6x96xf32>
    %c1_79 = arith.constant 1 : index
    %c0_80 = arith.constant 0 : index
    %c0_81 = arith.constant 0 : index
    %87 = vector.load %arg12[%c1_79, %c0_80, %c0_81] : memref<3x6x14xf32, #tpu.memory_space<vmem>>, vector<1x6x14xf32>
    %88 = vector.shape_cast %87 : vector<1x6x14xf32> to vector<6x14xf32>
    %cst_82 = arith.constant dense<0.000000e+00> : vector<6x112xf32>
    %89 = tpu.matmul %88, %80, %cst_82 {dimension_numbers = #tpu.dot_dimension_numbers<[1], [0], [0], [1], [0, 0, 1, 1], [], []>} : vector<6x14xf32>, vector<14x112xf32>, vector<6x112xf32> -> vector<6x112xf32>
    %c1_83 = arith.constant 1 : index
    %c0_84 = arith.constant 0 : index
    %c0_85 = arith.constant 0 : index
    %90 = vector.load %arg13[%c1_83, %c0_84, %c0_85] : memref<3x112x96xf32, #tpu.memory_space<vmem>>, vector<1x112x96xf32>
    %91 = vector.shape_cast %90 : vector<1x112x96xf32> to vector<112x96xf32>
    %cst_86 = arith.constant dense<0.000000e+00> : vector<6x96xf32>
    %92 = tpu.matmul %89, %91, %cst_86 {dimension_numbers = #tpu.dot_dimension_numbers<[1], [0], [0], [1], [0, 0, 1, 1], [], []>} : vector<6x112xf32>, vector<112x96xf32>, vector<6x96xf32> -> vector<6x96xf32>
    %93 = arith.addf %86, %92 : vector<6x96xf32>
    %c2_87 = arith.constant 2 : index
    %c0_88 = arith.constant 0 : index
    %c0_89 = arith.constant 0 : index
    %94 = vector.load %arg12[%c2_87, %c0_88, %c0_89] : memref<3x6x14xf32, #tpu.memory_space<vmem>>, vector<1x6x14xf32>
    %95 = vector.shape_cast %94 : vector<1x6x14xf32> to vector<6x14xf32>
    %cst_90 = arith.constant dense<0.000000e+00> : vector<6x112xf32>
    %96 = tpu.matmul %95, %80, %cst_90 {dimension_numbers = #tpu.dot_dimension_numbers<[1], [0], [0], [1], [0, 0, 1, 1], [], []>} : vector<6x14xf32>, vector<14x112xf32>, vector<6x112xf32> -> vector<6x112xf32>
    %c2_91 = arith.constant 2 : index
    %c0_92 = arith.constant 0 : index
    %c0_93 = arith.constant 0 : index
    %97 = vector.load %arg13[%c2_91, %c0_92, %c0_93] : memref<3x112x96xf32, #tpu.memory_space<vmem>>, vector<1x112x96xf32>
    %98 = vector.shape_cast %97 : vector<1x112x96xf32> to vector<112x96xf32>
    %cst_94 = arith.constant dense<0.000000e+00> : vector<6x96xf32>
    %99 = tpu.matmul %96, %98, %cst_94 {dimension_numbers = #tpu.dot_dimension_numbers<[1], [0], [0], [1], [0, 0, 1, 1], [], []>} : vector<6x112xf32>, vector<112x96xf32>, vector<6x96xf32> -> vector<6x96xf32>
    %100 = arith.addf %93, %99 : vector<6x96xf32>
    %c0_95 = arith.constant 0 : index
    %c0_96 = arith.constant 0 : index
    %101 = vector.load %arg14[%c0_95, %c0_96] : memref<1x96xf32, #tpu.memory_space<vmem>>, vector<1x96xf32>
    %102 = vector.broadcast %101 : vector<1x96xf32> to vector<6x96xf32>
    %103 = arith.addf %100, %102 : vector<6x96xf32>
    %cst_97 = arith.constant 0.000000e+00 : f32
    %104 = vector.broadcast %cst_97 : f32 to vector<6x96xf32>
    %105 = arith.maximumf %103, %104 : vector<6x96xf32>
    %c0_98 = arith.constant 0 : index
    %c0_99 = arith.constant 0 : index
    %c0_100 = arith.constant 0 : index
    %106 = vector.load %arg15[%c0_98, %c0_99, %c0_100] : memref<3x2x6xf32, #tpu.memory_space<vmem>>, vector<1x2x6xf32>
    %107 = vector.shape_cast %106 : vector<1x2x6xf32> to vector<2x6xf32>
    %cst_101 = arith.constant dense<0.000000e+00> : vector<2x96xf32>
    %108 = tpu.matmul %107, %105, %cst_101 {dimension_numbers = #tpu.dot_dimension_numbers<[1], [0], [0], [1], [0, 0, 1, 1], [], []>} : vector<2x6xf32>, vector<6x96xf32>, vector<2x96xf32> -> vector<2x96xf32>
    %c0_102 = arith.constant 0 : index
    %c0_103 = arith.constant 0 : index
    %c0_104 = arith.constant 0 : index
    %109 = vector.load %arg16[%c0_102, %c0_103, %c0_104] : memref<3x96x128xf32, #tpu.memory_space<vmem>>, vector<1x96x128xf32>
    %110 = vector.shape_cast %109 : vector<1x96x128xf32> to vector<96x128xf32>
    %cst_105 = arith.constant dense<0.000000e+00> : vector<2x128xf32>
    %111 = tpu.matmul %108, %110, %cst_105 {dimension_numbers = #tpu.dot_dimension_numbers<[1], [0], [0], [1], [0, 0, 1, 1], [], []>} : vector<2x96xf32>, vector<96x128xf32>, vector<2x128xf32> -> vector<2x128xf32>
    %c1_106 = arith.constant 1 : index
    %c0_107 = arith.constant 0 : index
    %c0_108 = arith.constant 0 : index
    %112 = vector.load %arg15[%c1_106, %c0_107, %c0_108] : memref<3x2x6xf32, #tpu.memory_space<vmem>>, vector<1x2x6xf32>
    %113 = vector.shape_cast %112 : vector<1x2x6xf32> to vector<2x6xf32>
    %cst_109 = arith.constant dense<0.000000e+00> : vector<2x96xf32>
    %114 = tpu.matmul %113, %105, %cst_109 {dimension_numbers = #tpu.dot_dimension_numbers<[1], [0], [0], [1], [0, 0, 1, 1], [], []>} : vector<2x6xf32>, vector<6x96xf32>, vector<2x96xf32> -> vector<2x96xf32>
    %c1_110 = arith.constant 1 : index
    %c0_111 = arith.constant 0 : index
    %c0_112 = arith.constant 0 : index
    %115 = vector.load %arg16[%c1_110, %c0_111, %c0_112] : memref<3x96x128xf32, #tpu.memory_space<vmem>>, vector<1x96x128xf32>
    %116 = vector.shape_cast %115 : vector<1x96x128xf32> to vector<96x128xf32>
    %cst_113 = arith.constant dense<0.000000e+00> : vector<2x128xf32>
    %117 = tpu.matmul %114, %116, %cst_113 {dimension_numbers = #tpu.dot_dimension_numbers<[1], [0], [0], [1], [0, 0, 1, 1], [], []>} : vector<2x96xf32>, vector<96x128xf32>, vector<2x128xf32> -> vector<2x128xf32>
    %118 = arith.addf %111, %117 : vector<2x128xf32>
    %c2_114 = arith.constant 2 : index
    %c0_115 = arith.constant 0 : index
    %c0_116 = arith.constant 0 : index
    %119 = vector.load %arg15[%c2_114, %c0_115, %c0_116] : memref<3x2x6xf32, #tpu.memory_space<vmem>>, vector<1x2x6xf32>
    %120 = vector.shape_cast %119 : vector<1x2x6xf32> to vector<2x6xf32>
    %cst_117 = arith.constant dense<0.000000e+00> : vector<2x96xf32>
    %121 = tpu.matmul %120, %105, %cst_117 {dimension_numbers = #tpu.dot_dimension_numbers<[1], [0], [0], [1], [0, 0, 1, 1], [], []>} : vector<2x6xf32>, vector<6x96xf32>, vector<2x96xf32> -> vector<2x96xf32>
    %c2_118 = arith.constant 2 : index
    %c0_119 = arith.constant 0 : index
    %c0_120 = arith.constant 0 : index
    %122 = vector.load %arg16[%c2_118, %c0_119, %c0_120] : memref<3x96x128xf32, #tpu.memory_space<vmem>>, vector<1x96x128xf32>
    %123 = vector.shape_cast %122 : vector<1x96x128xf32> to vector<96x128xf32>
    %cst_121 = arith.constant dense<0.000000e+00> : vector<2x128xf32>
    %124 = tpu.matmul %121, %123, %cst_121 {dimension_numbers = #tpu.dot_dimension_numbers<[1], [0], [0], [1], [0, 0, 1, 1], [], []>} : vector<2x96xf32>, vector<96x128xf32>, vector<2x128xf32> -> vector<2x128xf32>
    %125 = arith.addf %118, %124 : vector<2x128xf32>
    %c0_122 = arith.constant 0 : index
    %c0_123 = arith.constant 0 : index
    %126 = vector.load %arg17[%c0_122, %c0_123] : memref<1x128xf32, #tpu.memory_space<vmem>>, vector<1x128xf32>
    %127 = vector.broadcast %126 : vector<1x128xf32> to vector<2x128xf32>
    %128 = arith.addf %125, %127 : vector<2x128xf32>
    %cst_124 = arith.constant 0.000000e+00 : f32
    %129 = vector.broadcast %cst_124 : f32 to vector<2x128xf32>
    %130 = arith.maximumf %128, %129 : vector<2x128xf32>
    %c0_125 = arith.constant 0 : index
    %c0_126 = arith.constant 0 : index
    %131 = vector.load %arg18[%c0_125, %c0_126] : memref<128x8xf32, #tpu.memory_space<vmem>>, vector<128x8xf32>
    %c0_127 = arith.constant 0 : index
    %c0_128 = arith.constant 0 : index
    %132 = vector.load %arg19[%c0_127, %c0_128] : memref<1x8xf32, #tpu.memory_space<vmem>>, vector<1x8xf32>
    %c0_129 = arith.constant 0 : index
    %c0_130 = arith.constant 0 : index
    %133 = vector.load %arg20[%c0_129, %c0_130] : memref<128x8xf32, #tpu.memory_space<vmem>>, vector<128x8xf32>
    %c0_131 = arith.constant 0 : index
    %c0_132 = arith.constant 0 : index
    %134 = vector.load %arg21[%c0_131, %c0_132] : memref<1x8xf32, #tpu.memory_space<vmem>>, vector<1x8xf32>
    %cst_133 = arith.constant dense<0.000000e+00> : vector<2x8xf32>
    %135 = tpu.matmul %130, %131, %cst_133 {dimension_numbers = #tpu.dot_dimension_numbers<[1], [0], [0], [1], [0, 0, 1, 1], [], []>} : vector<2x128xf32>, vector<128x8xf32>, vector<2x8xf32> -> vector<2x8xf32>
    %136 = vector.broadcast %132 : vector<1x8xf32> to vector<2x8xf32>
    %137 = arith.addf %135, %136 : vector<2x8xf32>
    %cst_134 = arith.constant dense<0.000000e+00> : vector<2x8xf32>
    %138 = tpu.matmul %130, %133, %cst_134 {dimension_numbers = #tpu.dot_dimension_numbers<[1], [0], [0], [1], [0, 0, 1, 1], [], []>} : vector<2x128xf32>, vector<128x8xf32>, vector<2x8xf32> -> vector<2x8xf32>
    %139 = vector.broadcast %134 : vector<1x8xf32> to vector<2x8xf32>
    %140 = arith.addf %138, %139 : vector<2x8xf32>
    %141 = math.exp %140 : vector<2x8xf32>
    %142 = arith.mulf %141, %1 : vector<2x8xf32>
    %143 = arith.addf %137, %142 : vector<2x8xf32>
    %c0_135 = arith.constant 0 : index
    %c0_136 = arith.constant 0 : index
    %144 = vector.load %arg22[%c0_135, %c0_136] : memref<8x128xf32, #tpu.memory_space<vmem>>, vector<8x128xf32>
    %c0_137 = arith.constant 0 : index
    %c0_138 = arith.constant 0 : index
    %145 = vector.load %arg23[%c0_137, %c0_138] : memref<1x128xf32, #tpu.memory_space<vmem>>, vector<1x128xf32>
    %cst_139 = arith.constant dense<0.000000e+00> : vector<2x128xf32>
    %146 = tpu.matmul %143, %144, %cst_139 {dimension_numbers = #tpu.dot_dimension_numbers<[1], [0], [0], [1], [0, 0, 1, 1], [], []>} : vector<2x8xf32>, vector<8x128xf32>, vector<2x128xf32> -> vector<2x128xf32>
    %147 = vector.broadcast %145 : vector<1x128xf32> to vector<2x128xf32>
    %148 = arith.addf %146, %147 : vector<2x128xf32>
    %cst_140 = arith.constant 0.000000e+00 : f32
    %149 = vector.broadcast %cst_140 : f32 to vector<2x128xf32>
    %150 = arith.maximumf %148, %149 : vector<2x128xf32>
    %c0_141 = arith.constant 0 : index
    %c0_142 = arith.constant 0 : index
    %c0_143 = arith.constant 0 : index
    %151 = vector.load %arg24[%c0_141, %c0_142, %c0_143] : memref<3x6x2xf32, #tpu.memory_space<vmem>>, vector<1x6x2xf32>
    %152 = vector.shape_cast %151 : vector<1x6x2xf32> to vector<6x2xf32>
    %cst_144 = arith.constant dense<0.000000e+00> : vector<6x128xf32>
    %153 = tpu.matmul %152, %150, %cst_144 {dimension_numbers = #tpu.dot_dimension_numbers<[1], [0], [0], [1], [0, 0, 1, 1], [], []>} : vector<6x2xf32>, vector<2x128xf32>, vector<6x128xf32> -> vector<6x128xf32>
    %c0_145 = arith.constant 0 : index
    %c0_146 = arith.constant 0 : index
    %c0_147 = arith.constant 0 : index
    %154 = vector.load %arg25[%c0_145, %c0_146, %c0_147] : memref<3x128x96xf32, #tpu.memory_space<vmem>>, vector<1x128x96xf32>
    %155 = vector.shape_cast %154 : vector<1x128x96xf32> to vector<128x96xf32>
    %cst_148 = arith.constant dense<0.000000e+00> : vector<6x96xf32>
    %156 = tpu.matmul %153, %155, %cst_148 {dimension_numbers = #tpu.dot_dimension_numbers<[1], [0], [0], [1], [0, 0, 1, 1], [], []>} : vector<6x128xf32>, vector<128x96xf32>, vector<6x96xf32> -> vector<6x96xf32>
    %c1_149 = arith.constant 1 : index
    %c0_150 = arith.constant 0 : index
    %c0_151 = arith.constant 0 : index
    %157 = vector.load %arg24[%c1_149, %c0_150, %c0_151] : memref<3x6x2xf32, #tpu.memory_space<vmem>>, vector<1x6x2xf32>
    %158 = vector.shape_cast %157 : vector<1x6x2xf32> to vector<6x2xf32>
    %cst_152 = arith.constant dense<0.000000e+00> : vector<6x128xf32>
    %159 = tpu.matmul %158, %150, %cst_152 {dimension_numbers = #tpu.dot_dimension_numbers<[1], [0], [0], [1], [0, 0, 1, 1], [], []>} : vector<6x2xf32>, vector<2x128xf32>, vector<6x128xf32> -> vector<6x128xf32>
    %c1_153 = arith.constant 1 : index
    %c0_154 = arith.constant 0 : index
    %c0_155 = arith.constant 0 : index
    %160 = vector.load %arg25[%c1_153, %c0_154, %c0_155] : memref<3x128x96xf32, #tpu.memory_space<vmem>>, vector<1x128x96xf32>
    %161 = vector.shape_cast %160 : vector<1x128x96xf32> to vector<128x96xf32>
    %cst_156 = arith.constant dense<0.000000e+00> : vector<6x96xf32>
    %162 = tpu.matmul %159, %161, %cst_156 {dimension_numbers = #tpu.dot_dimension_numbers<[1], [0], [0], [1], [0, 0, 1, 1], [], []>} : vector<6x128xf32>, vector<128x96xf32>, vector<6x96xf32> -> vector<6x96xf32>
    %163 = arith.addf %156, %162 : vector<6x96xf32>
    %c2_157 = arith.constant 2 : index
    %c0_158 = arith.constant 0 : index
    %c0_159 = arith.constant 0 : index
    %164 = vector.load %arg24[%c2_157, %c0_158, %c0_159] : memref<3x6x2xf32, #tpu.memory_space<vmem>>, vector<1x6x2xf32>
    %165 = vector.shape_cast %164 : vector<1x6x2xf32> to vector<6x2xf32>
    %cst_160 = arith.constant dense<0.000000e+00> : vector<6x128xf32>
    %166 = tpu.matmul %165, %150, %cst_160 {dimension_numbers = #tpu.dot_dimension_numbers<[1], [0], [0], [1], [0, 0, 1, 1], [], []>} : vector<6x2xf32>, vector<2x128xf32>, vector<6x128xf32> -> vector<6x128xf32>
    %c2_161 = arith.constant 2 : index
    %c0_162 = arith.constant 0 : index
    %c0_163 = arith.constant 0 : index
    %167 = vector.load %arg25[%c2_161, %c0_162, %c0_163] : memref<3x128x96xf32, #tpu.memory_space<vmem>>, vector<1x128x96xf32>
    %168 = vector.shape_cast %167 : vector<1x128x96xf32> to vector<128x96xf32>
    %cst_164 = arith.constant dense<0.000000e+00> : vector<6x96xf32>
    %169 = tpu.matmul %166, %168, %cst_164 {dimension_numbers = #tpu.dot_dimension_numbers<[1], [0], [0], [1], [0, 0, 1, 1], [], []>} : vector<6x128xf32>, vector<128x96xf32>, vector<6x96xf32> -> vector<6x96xf32>
    %170 = arith.addf %163, %169 : vector<6x96xf32>
    %c0_165 = arith.constant 0 : index
    %c0_166 = arith.constant 0 : index
    %171 = vector.load %arg26[%c0_165, %c0_166] : memref<6x96xf32, #tpu.memory_space<vmem>>, vector<6x96xf32>
    %172 = arith.addf %170, %171 : vector<6x96xf32>
    %cst_167 = arith.constant 0.000000e+00 : f32
    %173 = vector.broadcast %cst_167 : f32 to vector<6x96xf32>
    %174 = arith.maximumf %172, %173 : vector<6x96xf32>
    %c0_168 = arith.constant 0 : index
    %c0_169 = arith.constant 0 : index
    %c0_170 = arith.constant 0 : index
    %175 = vector.load %arg27[%c0_168, %c0_169, %c0_170] : memref<3x14x6xf32, #tpu.memory_space<vmem>>, vector<1x14x6xf32>
    %176 = vector.shape_cast %175 : vector<1x14x6xf32> to vector<14x6xf32>
    %cst_171 = arith.constant dense<0.000000e+00> : vector<14x96xf32>
    %177 = tpu.matmul %176, %174, %cst_171 {dimension_numbers = #tpu.dot_dimension_numbers<[1], [0], [0], [1], [0, 0, 1, 1], [], []>} : vector<14x6xf32>, vector<6x96xf32>, vector<14x96xf32> -> vector<14x96xf32>
    %c0_172 = arith.constant 0 : index
    %c0_173 = arith.constant 0 : index
    %c0_174 = arith.constant 0 : index
    %178 = vector.load %arg28[%c0_172, %c0_173, %c0_174] : memref<3x96x112xf32, #tpu.memory_space<vmem>>, vector<1x96x112xf32>
    %179 = vector.shape_cast %178 : vector<1x96x112xf32> to vector<96x112xf32>
    %cst_175 = arith.constant dense<0.000000e+00> : vector<14x112xf32>
    %180 = tpu.matmul %177, %179, %cst_175 {dimension_numbers = #tpu.dot_dimension_numbers<[1], [0], [0], [1], [0, 0, 1, 1], [], []>} : vector<14x96xf32>, vector<96x112xf32>, vector<14x112xf32> -> vector<14x112xf32>
    %c1_176 = arith.constant 1 : index
    %c0_177 = arith.constant 0 : index
    %c0_178 = arith.constant 0 : index
    %181 = vector.load %arg27[%c1_176, %c0_177, %c0_178] : memref<3x14x6xf32, #tpu.memory_space<vmem>>, vector<1x14x6xf32>
    %182 = vector.shape_cast %181 : vector<1x14x6xf32> to vector<14x6xf32>
    %cst_179 = arith.constant dense<0.000000e+00> : vector<14x96xf32>
    %183 = tpu.matmul %182, %174, %cst_179 {dimension_numbers = #tpu.dot_dimension_numbers<[1], [0], [0], [1], [0, 0, 1, 1], [], []>} : vector<14x6xf32>, vector<6x96xf32>, vector<14x96xf32> -> vector<14x96xf32>
    %c1_180 = arith.constant 1 : index
    %c0_181 = arith.constant 0 : index
    %c0_182 = arith.constant 0 : index
    %184 = vector.load %arg28[%c1_180, %c0_181, %c0_182] : memref<3x96x112xf32, #tpu.memory_space<vmem>>, vector<1x96x112xf32>
    %185 = vector.shape_cast %184 : vector<1x96x112xf32> to vector<96x112xf32>
    %cst_183 = arith.constant dense<0.000000e+00> : vector<14x112xf32>
    %186 = tpu.matmul %183, %185, %cst_183 {dimension_numbers = #tpu.dot_dimension_numbers<[1], [0], [0], [1], [0, 0, 1, 1], [], []>} : vector<14x96xf32>, vector<96x112xf32>, vector<14x112xf32> -> vector<14x112xf32>
    %187 = arith.addf %180, %186 : vector<14x112xf32>
    %c2_184 = arith.constant 2 : index
    %c0_185 = arith.constant 0 : index
    %c0_186 = arith.constant 0 : index
    %188 = vector.load %arg27[%c2_184, %c0_185, %c0_186] : memref<3x14x6xf32, #tpu.memory_space<vmem>>, vector<1x14x6xf32>
    %189 = vector.shape_cast %188 : vector<1x14x6xf32> to vector<14x6xf32>
    %cst_187 = arith.constant dense<0.000000e+00> : vector<14x96xf32>
    %190 = tpu.matmul %189, %174, %cst_187 {dimension_numbers = #tpu.dot_dimension_numbers<[1], [0], [0], [1], [0, 0, 1, 1], [], []>} : vector<14x6xf32>, vector<6x96xf32>, vector<14x96xf32> -> vector<14x96xf32>
    %c2_188 = arith.constant 2 : index
    %c0_189 = arith.constant 0 : index
    %c0_190 = arith.constant 0 : index
    %191 = vector.load %arg28[%c2_188, %c0_189, %c0_190] : memref<3x96x112xf32, #tpu.memory_space<vmem>>, vector<1x96x112xf32>
    %192 = vector.shape_cast %191 : vector<1x96x112xf32> to vector<96x112xf32>
    %cst_191 = arith.constant dense<0.000000e+00> : vector<14x112xf32>
    %193 = tpu.matmul %190, %192, %cst_191 {dimension_numbers = #tpu.dot_dimension_numbers<[1], [0], [0], [1], [0, 0, 1, 1], [], []>} : vector<14x96xf32>, vector<96x112xf32>, vector<14x112xf32> -> vector<14x112xf32>
    %194 = arith.addf %187, %193 : vector<14x112xf32>
    %c0_192 = arith.constant 0 : index
    %c0_193 = arith.constant 0 : index
    %195 = vector.load %arg29[%c0_192, %c0_193] : memref<1x112xf32, #tpu.memory_space<vmem>>, vector<1x112xf32>
    %196 = vector.broadcast %195 : vector<1x112xf32> to vector<14x112xf32>
    %197 = arith.addf %194, %196 : vector<14x112xf32>
    %c0_194 = arith.constant 0 : index
    %c0_195 = arith.constant 0 : index
    %198 = vector.load %arg30[%c0_194, %c0_195] : memref<1x16xf32, #tpu.memory_space<vmem>>, vector<1x16xf32>
    %c0_196 = arith.constant 0 : index
    %c0_197 = arith.constant 0 : index
    %199 = vector.load %arg31[%c0_196, %c0_197] : memref<1x16xf32, #tpu.memory_space<vmem>>, vector<1x16xf32>
    %c0_198 = arith.constant 0 : index
    %c0_199 = arith.constant 0 : index
    %200 = vector.load %arg32[%c0_198, %c0_199] : memref<112x16xf32, #tpu.memory_space<vmem>>, vector<112x16xf32>
    %c0_200 = arith.constant 0 : index
    %c0_201 = arith.constant 0 : index
    %201 = vector.load %arg33[%c0_200, %c0_201] : memref<16x112xf32, #tpu.memory_space<vmem>>, vector<16x112xf32>
    %cst_202 = arith.constant dense<0.000000e+00> : vector<112xf32>
    %202 = vector.multi_reduction <add>, %197, %cst_202 [0] : vector<14x112xf32> to vector<112xf32>
    %203 = vector.shape_cast %202 : vector<112xf32> to vector<1x112xf32>
    %cst_203 = arith.constant dense<0.000000e+00> : vector<1x16xf32>
    %204 = tpu.matmul %203, %200, %cst_203 {dimension_numbers = #tpu.dot_dimension_numbers<[1], [0], [0], [1], [0, 0, 1, 1], [], []>} : vector<1x112xf32>, vector<112x16xf32>, vector<1x16xf32> -> vector<1x16xf32>
    %205 = arith.mulf %197, %197 : vector<14x112xf32>
    %cst_204 = arith.constant dense<0.000000e+00> : vector<112xf32>
    %206 = vector.multi_reduction <add>, %205, %cst_204 [0] : vector<14x112xf32> to vector<112xf32>
    %207 = vector.shape_cast %206 : vector<112xf32> to vector<1x112xf32>
    %cst_205 = arith.constant dense<0.000000e+00> : vector<1x16xf32>
    %208 = tpu.matmul %207, %200, %cst_205 {dimension_numbers = #tpu.dot_dimension_numbers<[1], [0], [0], [1], [0, 0, 1, 1], [], []>} : vector<1x112xf32>, vector<112x16xf32>, vector<1x16xf32> -> vector<1x16xf32>
    %cst_206 = arith.constant 0.0102040814 : f32
    %209 = vector.broadcast %cst_206 : f32 to vector<1x16xf32>
    %210 = arith.mulf %204, %209 : vector<1x16xf32>
    %cst_207 = arith.constant 0.0102040814 : f32
    %211 = vector.broadcast %cst_207 : f32 to vector<1x16xf32>
    %212 = arith.mulf %208, %211 : vector<1x16xf32>
    %213 = arith.mulf %210, %210 : vector<1x16xf32>
    %214 = arith.subf %212, %213 : vector<1x16xf32>
    %cst_208 = arith.constant 9.99999974E-6 : f32
    %215 = vector.broadcast %cst_208 : f32 to vector<1x16xf32>
    %216 = arith.addf %214, %215 : vector<1x16xf32>
    %217 = math.rsqrt %216 : vector<1x16xf32>
    %218 = arith.mulf %198, %217 : vector<1x16xf32>
    %219 = arith.mulf %210, %218 : vector<1x16xf32>
    %220 = arith.subf %199, %219 : vector<1x16xf32>
    %cst_209 = arith.constant dense<0.000000e+00> : vector<1x112xf32>
    %221 = tpu.matmul %218, %201, %cst_209 {dimension_numbers = #tpu.dot_dimension_numbers<[1], [0], [0], [1], [0, 0, 1, 1], [], []>} : vector<1x16xf32>, vector<16x112xf32>, vector<1x112xf32> -> vector<1x112xf32>
    %cst_210 = arith.constant dense<0.000000e+00> : vector<1x112xf32>
    %222 = tpu.matmul %220, %201, %cst_210 {dimension_numbers = #tpu.dot_dimension_numbers<[1], [0], [0], [1], [0, 0, 1, 1], [], []>} : vector<1x16xf32>, vector<16x112xf32>, vector<1x112xf32> -> vector<1x112xf32>
    %223 = vector.broadcast %221 : vector<1x112xf32> to vector<14x112xf32>
    %224 = arith.mulf %197, %223 : vector<14x112xf32>
    %225 = vector.broadcast %222 : vector<1x112xf32> to vector<14x112xf32>
    %226 = arith.addf %224, %225 : vector<14x112xf32>
    %cst_211 = arith.constant 0.000000e+00 : f32
    %227 = vector.broadcast %cst_211 : f32 to vector<14x112xf32>
    %228 = arith.maximumf %226, %227 : vector<14x112xf32>
    %c0_212 = arith.constant 0 : index
    %c0_213 = arith.constant 0 : index
    %c0_214 = arith.constant 0 : index
    %229 = vector.load %arg34[%c0_212, %c0_213, %c0_214] : memref<3x28x14xf32, #tpu.memory_space<vmem>>, vector<1x28x14xf32>
    %230 = vector.shape_cast %229 : vector<1x28x14xf32> to vector<28x14xf32>
    %cst_215 = arith.constant dense<0.000000e+00> : vector<28x112xf32>
    %231 = tpu.matmul %230, %228, %cst_215 {dimension_numbers = #tpu.dot_dimension_numbers<[1], [0], [0], [1], [0, 0, 1, 1], [], []>} : vector<28x14xf32>, vector<14x112xf32>, vector<28x112xf32> -> vector<28x112xf32>
    %c0_216 = arith.constant 0 : index
    %c0_217 = arith.constant 0 : index
    %c0_218 = arith.constant 0 : index
    %232 = vector.load %arg35[%c0_216, %c0_217, %c0_218] : memref<3x112x112xf32, #tpu.memory_space<vmem>>, vector<1x112x112xf32>
    %233 = vector.shape_cast %232 : vector<1x112x112xf32> to vector<112x112xf32>
    %cst_219 = arith.constant dense<0.000000e+00> : vector<28x112xf32>
    %234 = tpu.matmul %231, %233, %cst_219 {dimension_numbers = #tpu.dot_dimension_numbers<[1], [0], [0], [1], [0, 0, 1, 1], [], []>} : vector<28x112xf32>, vector<112x112xf32>, vector<28x112xf32> -> vector<28x112xf32>
    %c1_220 = arith.constant 1 : index
    %c0_221 = arith.constant 0 : index
    %c0_222 = arith.constant 0 : index
    %235 = vector.load %arg34[%c1_220, %c0_221, %c0_222] : memref<3x28x14xf32, #tpu.memory_space<vmem>>, vector<1x28x14xf32>
    %236 = vector.shape_cast %235 : vector<1x28x14xf32> to vector<28x14xf32>
    %cst_223 = arith.constant dense<0.000000e+00> : vector<28x112xf32>
    %237 = tpu.matmul %236, %228, %cst_223 {dimension_numbers = #tpu.dot_dimension_numbers<[1], [0], [0], [1], [0, 0, 1, 1], [], []>} : vector<28x14xf32>, vector<14x112xf32>, vector<28x112xf32> -> vector<28x112xf32>
    %c1_224 = arith.constant 1 : index
    %c0_225 = arith.constant 0 : index
    %c0_226 = arith.constant 0 : index
    %238 = vector.load %arg35[%c1_224, %c0_225, %c0_226] : memref<3x112x112xf32, #tpu.memory_space<vmem>>, vector<1x112x112xf32>
    %239 = vector.shape_cast %238 : vector<1x112x112xf32> to vector<112x112xf32>
    %cst_227 = arith.constant dense<0.000000e+00> : vector<28x112xf32>
    %240 = tpu.matmul %237, %239, %cst_227 {dimension_numbers = #tpu.dot_dimension_numbers<[1], [0], [0], [1], [0, 0, 1, 1], [], []>} : vector<28x112xf32>, vector<112x112xf32>, vector<28x112xf32> -> vector<28x112xf32>
    %241 = arith.addf %234, %240 : vector<28x112xf32>
    %c2_228 = arith.constant 2 : index
    %c0_229 = arith.constant 0 : index
    %c0_230 = arith.constant 0 : index
    %242 = vector.load %arg34[%c2_228, %c0_229, %c0_230] : memref<3x28x14xf32, #tpu.memory_space<vmem>>, vector<1x28x14xf32>
    %243 = vector.shape_cast %242 : vector<1x28x14xf32> to vector<28x14xf32>
    %cst_231 = arith.constant dense<0.000000e+00> : vector<28x112xf32>
    %244 = tpu.matmul %243, %228, %cst_231 {dimension_numbers = #tpu.dot_dimension_numbers<[1], [0], [0], [1], [0, 0, 1, 1], [], []>} : vector<28x14xf32>, vector<14x112xf32>, vector<28x112xf32> -> vector<28x112xf32>
    %c2_232 = arith.constant 2 : index
    %c0_233 = arith.constant 0 : index
    %c0_234 = arith.constant 0 : index
    %245 = vector.load %arg35[%c2_232, %c0_233, %c0_234] : memref<3x112x112xf32, #tpu.memory_space<vmem>>, vector<1x112x112xf32>
    %246 = vector.shape_cast %245 : vector<1x112x112xf32> to vector<112x112xf32>
    %cst_235 = arith.constant dense<0.000000e+00> : vector<28x112xf32>
    %247 = tpu.matmul %244, %246, %cst_235 {dimension_numbers = #tpu.dot_dimension_numbers<[1], [0], [0], [1], [0, 0, 1, 1], [], []>} : vector<28x112xf32>, vector<112x112xf32>, vector<28x112xf32> -> vector<28x112xf32>
    %248 = arith.addf %241, %247 : vector<28x112xf32>
    %c0_236 = arith.constant 0 : index
    %c0_237 = arith.constant 0 : index
    %249 = vector.load %arg36[%c0_236, %c0_237] : memref<1x112xf32, #tpu.memory_space<vmem>>, vector<1x112xf32>
    %250 = vector.broadcast %249 : vector<1x112xf32> to vector<28x112xf32>
    %251 = arith.addf %248, %250 : vector<28x112xf32>
    %c0_238 = arith.constant 0 : index
    %c0_239 = arith.constant 0 : index
    %252 = vector.load %arg37[%c0_238, %c0_239] : memref<1x8xf32, #tpu.memory_space<vmem>>, vector<1x8xf32>
    %c0_240 = arith.constant 0 : index
    %c0_241 = arith.constant 0 : index
    %253 = vector.load %arg38[%c0_240, %c0_241] : memref<1x8xf32, #tpu.memory_space<vmem>>, vector<1x8xf32>
    %c0_242 = arith.constant 0 : index
    %c0_243 = arith.constant 0 : index
    %254 = vector.load %arg39[%c0_242, %c0_243] : memref<112x8xf32, #tpu.memory_space<vmem>>, vector<112x8xf32>
    %c0_244 = arith.constant 0 : index
    %c0_245 = arith.constant 0 : index
    %255 = vector.load %arg40[%c0_244, %c0_245] : memref<8x112xf32, #tpu.memory_space<vmem>>, vector<8x112xf32>
    %cst_246 = arith.constant dense<0.000000e+00> : vector<112xf32>
    %256 = vector.multi_reduction <add>, %251, %cst_246 [0] : vector<28x112xf32> to vector<112xf32>
    %257 = vector.shape_cast %256 : vector<112xf32> to vector<1x112xf32>
    %cst_247 = arith.constant dense<0.000000e+00> : vector<1x8xf32>
    %258 = tpu.matmul %257, %254, %cst_247 {dimension_numbers = #tpu.dot_dimension_numbers<[1], [0], [0], [1], [0, 0, 1, 1], [], []>} : vector<1x112xf32>, vector<112x8xf32>, vector<1x8xf32> -> vector<1x8xf32>
    %259 = arith.mulf %251, %251 : vector<28x112xf32>
    %cst_248 = arith.constant dense<0.000000e+00> : vector<112xf32>
    %260 = vector.multi_reduction <add>, %259, %cst_248 [0] : vector<28x112xf32> to vector<112xf32>
    %261 = vector.shape_cast %260 : vector<112xf32> to vector<1x112xf32>
    %cst_249 = arith.constant dense<0.000000e+00> : vector<1x8xf32>
    %262 = tpu.matmul %261, %254, %cst_249 {dimension_numbers = #tpu.dot_dimension_numbers<[1], [0], [0], [1], [0, 0, 1, 1], [], []>} : vector<1x112xf32>, vector<112x8xf32>, vector<1x8xf32> -> vector<1x8xf32>
    %cst_250 = arith.constant 0.00255102036 : f32
    %263 = vector.broadcast %cst_250 : f32 to vector<1x8xf32>
    %264 = arith.mulf %258, %263 : vector<1x8xf32>
    %cst_251 = arith.constant 0.00255102036 : f32
    %265 = vector.broadcast %cst_251 : f32 to vector<1x8xf32>
    %266 = arith.mulf %262, %265 : vector<1x8xf32>
    %267 = arith.mulf %264, %264 : vector<1x8xf32>
    %268 = arith.subf %266, %267 : vector<1x8xf32>
    %cst_252 = arith.constant 9.99999974E-6 : f32
    %269 = vector.broadcast %cst_252 : f32 to vector<1x8xf32>
    %270 = arith.addf %268, %269 : vector<1x8xf32>
    %271 = math.rsqrt %270 : vector<1x8xf32>
    %272 = arith.mulf %252, %271 : vector<1x8xf32>
    %273 = arith.mulf %264, %272 : vector<1x8xf32>
    %274 = arith.subf %253, %273 : vector<1x8xf32>
    %cst_253 = arith.constant dense<0.000000e+00> : vector<1x112xf32>
    %275 = tpu.matmul %272, %255, %cst_253 {dimension_numbers = #tpu.dot_dimension_numbers<[1], [0], [0], [1], [0, 0, 1, 1], [], []>} : vector<1x8xf32>, vector<8x112xf32>, vector<1x112xf32> -> vector<1x112xf32>
    %cst_254 = arith.constant dense<0.000000e+00> : vector<1x112xf32>
    %276 = tpu.matmul %274, %255, %cst_254 {dimension_numbers = #tpu.dot_dimension_numbers<[1], [0], [0], [1], [0, 0, 1, 1], [], []>} : vector<1x8xf32>, vector<8x112xf32>, vector<1x112xf32> -> vector<1x112xf32>
    %277 = vector.broadcast %275 : vector<1x112xf32> to vector<28x112xf32>
    %278 = arith.mulf %251, %277 : vector<28x112xf32>
    %279 = vector.broadcast %276 : vector<1x112xf32> to vector<28x112xf32>
    %280 = arith.addf %278, %279 : vector<28x112xf32>
    %cst_255 = arith.constant 0.000000e+00 : f32
    %281 = vector.broadcast %cst_255 : f32 to vector<28x112xf32>
    %282 = arith.maximumf %280, %281 : vector<28x112xf32>
    %c0_256 = arith.constant 0 : index
    %c0_257 = arith.constant 0 : index
    %c0_258 = arith.constant 0 : index
    %283 = vector.load %arg41[%c0_256, %c0_257, %c0_258] : memref<3x56x28xf32, #tpu.memory_space<vmem>>, vector<1x56x28xf32>
    %284 = vector.shape_cast %283 : vector<1x56x28xf32> to vector<56x28xf32>
    %cst_259 = arith.constant dense<0.000000e+00> : vector<56x112xf32>
    %285 = tpu.matmul %284, %282, %cst_259 {dimension_numbers = #tpu.dot_dimension_numbers<[1], [0], [0], [1], [0, 0, 1, 1], [], []>} : vector<56x28xf32>, vector<28x112xf32>, vector<56x112xf32> -> vector<56x112xf32>
    %c0_260 = arith.constant 0 : index
    %c0_261 = arith.constant 0 : index
    %c0_262 = arith.constant 0 : index
    %286 = vector.load %arg42[%c0_260, %c0_261, %c0_262] : memref<3x112x28xf32, #tpu.memory_space<vmem>>, vector<1x112x28xf32>
    %287 = vector.shape_cast %286 : vector<1x112x28xf32> to vector<112x28xf32>
    %cst_263 = arith.constant dense<0.000000e+00> : vector<56x28xf32>
    %288 = tpu.matmul %285, %287, %cst_263 {dimension_numbers = #tpu.dot_dimension_numbers<[1], [0], [0], [1], [0, 0, 1, 1], [], []>} : vector<56x112xf32>, vector<112x28xf32>, vector<56x28xf32> -> vector<56x28xf32>
    %c1_264 = arith.constant 1 : index
    %c0_265 = arith.constant 0 : index
    %c0_266 = arith.constant 0 : index
    %289 = vector.load %arg41[%c1_264, %c0_265, %c0_266] : memref<3x56x28xf32, #tpu.memory_space<vmem>>, vector<1x56x28xf32>
    %290 = vector.shape_cast %289 : vector<1x56x28xf32> to vector<56x28xf32>
    %cst_267 = arith.constant dense<0.000000e+00> : vector<56x112xf32>
    %291 = tpu.matmul %290, %282, %cst_267 {dimension_numbers = #tpu.dot_dimension_numbers<[1], [0], [0], [1], [0, 0, 1, 1], [], []>} : vector<56x28xf32>, vector<28x112xf32>, vector<56x112xf32> -> vector<56x112xf32>
    %c1_268 = arith.constant 1 : index
    %c0_269 = arith.constant 0 : index
    %c0_270 = arith.constant 0 : index
    %292 = vector.load %arg42[%c1_268, %c0_269, %c0_270] : memref<3x112x28xf32, #tpu.memory_space<vmem>>, vector<1x112x28xf32>
    %293 = vector.shape_cast %292 : vector<1x112x28xf32> to vector<112x28xf32>
    %cst_271 = arith.constant dense<0.000000e+00> : vector<56x28xf32>
    %294 = tpu.matmul %291, %293, %cst_271 {dimension_numbers = #tpu.dot_dimension_numbers<[1], [0], [0], [1], [0, 0, 1, 1], [], []>} : vector<56x112xf32>, vector<112x28xf32>, vector<56x28xf32> -> vector<56x28xf32>
    %295 = arith.addf %288, %294 : vector<56x28xf32>
    %c2_272 = arith.constant 2 : index
    %c0_273 = arith.constant 0 : index
    %c0_274 = arith.constant 0 : index
    %296 = vector.load %arg41[%c2_272, %c0_273, %c0_274] : memref<3x56x28xf32, #tpu.memory_space<vmem>>, vector<1x56x28xf32>
    %297 = vector.shape_cast %296 : vector<1x56x28xf32> to vector<56x28xf32>
    %cst_275 = arith.constant dense<0.000000e+00> : vector<56x112xf32>
    %298 = tpu.matmul %297, %282, %cst_275 {dimension_numbers = #tpu.dot_dimension_numbers<[1], [0], [0], [1], [0, 0, 1, 1], [], []>} : vector<56x28xf32>, vector<28x112xf32>, vector<56x112xf32> -> vector<56x112xf32>
    %c2_276 = arith.constant 2 : index
    %c0_277 = arith.constant 0 : index
    %c0_278 = arith.constant 0 : index
    %299 = vector.load %arg42[%c2_276, %c0_277, %c0_278] : memref<3x112x28xf32, #tpu.memory_space<vmem>>, vector<1x112x28xf32>
    %300 = vector.shape_cast %299 : vector<1x112x28xf32> to vector<112x28xf32>
    %cst_279 = arith.constant dense<0.000000e+00> : vector<56x28xf32>
    %301 = tpu.matmul %298, %300, %cst_279 {dimension_numbers = #tpu.dot_dimension_numbers<[1], [0], [0], [1], [0, 0, 1, 1], [], []>} : vector<56x112xf32>, vector<112x28xf32>, vector<56x28xf32> -> vector<56x28xf32>
    %302 = arith.addf %295, %301 : vector<56x28xf32>
    %c0_280 = arith.constant 0 : index
    %c0_281 = arith.constant 0 : index
    %303 = vector.load %arg43[%c0_280, %c0_281] : memref<1x28xf32, #tpu.memory_space<vmem>>, vector<1x28xf32>
    %304 = vector.broadcast %303 : vector<1x28xf32> to vector<56x28xf32>
    %305 = arith.addf %302, %304 : vector<56x28xf32>
    %306 = arith.negf %305 : vector<56x28xf32>
    %307 = math.exp %306 : vector<56x28xf32>
    %cst_282 = arith.constant 1.000000e+00 : f32
    %308 = vector.broadcast %cst_282 : f32 to vector<56x28xf32>
    %309 = arith.addf %308, %307 : vector<56x28xf32>
    %310 = arith.divf %308, %309 : vector<56x28xf32>
    %c0_283 = arith.constant 0 : index
    %c0_284 = arith.constant 0 : index
    %311 = vector.load %arg44[%c0_283, %c0_284] : memref<56x28xf32, #tpu.memory_space<vmem>>, vector<56x28xf32>
    tpu.vector_store %arg44[%c0_283, %c0_284], %310 {strides = array<i32>} : memref<56x28xf32, #tpu.memory_space<vmem>>, vector<56x28xf32>,
    return
  }
}

</mosaic_0001>

<llo_original>
// kernel: vae_forward.1
$region0: #{vae_forward.1}
  #allocation0 [shape = 'u32[]', space=smem, size = 0x4, offset = 0x4, fixed_abs, tag = 'smem constant byte address 0x4 - core index']
  #allocation1 [shape = 'u32[72,128]{1,0:T(1,128)}', space=vmem, size = 0x9000, scoped, tag = 'internal scratch']
  %s0 = inlined_call_operand.smem [shape: u32[45], index: -1, kind: input, shape index: {}]
  %s1 = sld [smem:[%s0]]
  %s2 = scalar_lea.smem %s0, 1
  %s3 = sld [smem:[%s2]]
  %s4 = scalar_lea.smem %s0, 2
  %s5 = sld [smem:[%s4]]
  %s6 = scalar_lea.smem %s0, 3
  %s7 = sld [smem:[%s6]]
  %s8 = scalar_lea.smem %s0, 4
  %s9 = sld [smem:[%s8]]
  %s10 = scalar_lea.smem %s0, 5
  %s11 = sld [smem:[%s10]]
  %s12 = scalar_lea.smem %s0, 6
  %s13 = sld [smem:[%s12]]
  %s14 = scalar_lea.smem %s0, 7
  %s15 = sld [smem:[%s14]]
  %s16 = scalar_lea.smem %s0, 8
  %s17 = sld [smem:[%s16]]
  %s18 = scalar_lea.smem %s0, 9
  %s19 = sld [smem:[%s18]]
  %s20 = scalar_lea.smem %s0, 10
  %s21 = sld [smem:[%s20]]
  %s22 = scalar_lea.smem %s0, 11
  %s23 = sld [smem:[%s22]]
  %s24 = scalar_lea.smem %s0, 12
  %s25 = sld [smem:[%s24]]
  %s26 = scalar_lea.smem %s0, 13
  %s27 = sld [smem:[%s26]]
  %s28 = scalar_lea.smem %s0, 14
  %s29 = sld [smem:[%s28]]
  %s30 = scalar_lea.smem %s0, 15
  %s31 = sld [smem:[%s30]]
  %s32 = scalar_lea.smem %s0, 16
  %s33 = sld [smem:[%s32]]
  %s34 = scalar_lea.smem %s0, 17
  %s35 = sld [smem:[%s34]]
  %s36 = scalar_lea.smem %s0, 18
  %s37 = sld [smem:[%s36]]
  %s38 = scalar_lea.smem %s0, 19
  %s39 = sld [smem:[%s38]]
  %s40 = scalar_lea.smem %s0, 20
  %s41 = sld [smem:[%s40]]
  %s42 = scalar_lea.smem %s0, 21
  %s43 = sld [smem:[%s42]]
  %s44 = scalar_lea.smem %s0, 22
  %s45 = sld [smem:[%s44]]
  %s46 = scalar_lea.smem %s0, 23
  %s47 = sld [smem:[%s46]]
  %s48 = scalar_lea.smem %s0, 24
  %s49 = sld [smem:[%s48]]
  %s50 = scalar_lea.smem %s0, 25
  %s51 = sld [smem:[%s50]]
  %s52 = scalar_lea.smem %s0, 26
  %s53 = sld [smem:[%s52]]
  %s54 = scalar_lea.smem %s0, 27
  %s55 = sld [smem:[%s54]]
  %s56 = scalar_lea.smem %s0, 28
  %s57 = sld [smem:[%s56]]
  %s58 = scalar_lea.smem %s0, 29
  %s59 = sld [smem:[%s58]]
  %s60 = scalar_lea.smem %s0, 30
  %s61 = sld [smem:[%s60]]
  %s62 = scalar_lea.smem %s0, 31
  %s63 = sld [smem:[%s62]]
  %s64 = scalar_lea.smem %s0, 32
  %s65 = sld [smem:[%s64]]
  %s66 = scalar_lea.smem %s0, 33
  %s67 = sld [smem:[%s66]]
  %s68 = scalar_lea.smem %s0, 34
  %s69 = sld [smem:[%s68]]
  %s70 = scalar_lea.smem %s0, 35
  %s71 = sld [smem:[%s70]]
  %s72 = scalar_lea.smem %s0, 36
  %s73 = sld [smem:[%s72]]
  %s74 = scalar_lea.smem %s0, 37
  %s75 = sld [smem:[%s74]]
  %s76 = scalar_lea.smem %s0, 38
  %s77 = sld [smem:[%s76]]
  %s78 = scalar_lea.smem %s0, 39
  %s79 = sld [smem:[%s78]]
  %s80 = scalar_lea.smem %s0, 40
  %s81 = sld [smem:[%s80]]
  %s82 = scalar_lea.smem %s0, 41
  %s83 = sld [smem:[%s82]]
  %s84 = scalar_lea.smem %s0, 42
  %s85 = sld [smem:[%s84]]
  %s86 = scalar_lea.smem %s0, 43
  %s87 = sld [smem:[%s86]]
  %s88 = scalar_lea.smem %s0, 44
  %s89 = sld [smem:[%s88]]
  %s90 = sld [smem:[#allocation0]]
  $region190: #{vae_forward.1} parent=0
    _
  %s92 = ssub.s32 1, %s90
  %s93 = scalar_select 0, %s92, %s90
  $region1: #{vae_forward.1} parent=0
    #allocation2 [shape = 'u8[512]{0}', space=vmem, size = 0x400, scoped, tag = 'input window, operand 43, single buffered']
    #allocation3 [shape = 's32[1]{0}', space=sflag, size = 0x4, scoped, tag = 'scoped memory for vae_forward.1']
    #allocation4 [shape = 's32[1]{0}', space=sflag, size = 0x4, scoped, tag = 'scoped memory for vae_forward.1']
    #allocation5 [shape = 'u8[28672]{0}', space=vmem, size = 0x7000, scoped, tag = 'output window, operand 0, single buffered']
    %94 = vsyncpa [#allocation3], 0
    %95 = vsyncpa [#allocation4], 0
    // Predicated region
    $region2: #{vae_forward.1} parent=1 // pred_check
      _
    $region3: #{vae_forward.1} parent=1 // pred_check_branch
      %97 = sbr.rel (0) target = $region5
    $region4: #{vae_forward.1} parent=1 // pred_region
      _
    $region5: #{vae_forward.1} parent=1 // pred_fallthru
      _
    // Predicated region
    $region6: #{vae_forward.1} parent=1 // pred_check
      _
    $region7: #{vae_forward.1} parent=1 // pred_check_branch
      %99 = sbr.rel (0) target = $region9
    $region8: #{vae_forward.1} parent=1 // pred_region
      _
    $region9: #{vae_forward.1} parent=1 // pred_fallthru
      _
    // Predicated region
    $region10: #{vae_forward.1} parent=1 // pred_check
      _
    $region11: #{vae_forward.1} parent=1 // pred_check_branch
      %101 = sbr.rel (0) target = $region13
    $region12: #{vae_forward.1} parent=1 // pred_region
      _
    $region13: #{vae_forward.1} parent=1 // pred_fallthru
      _
    // Predicated region
    $region14: #{vae_forward.1} parent=1 // pred_check
      _
    $region15: #{vae_forward.1} parent=1 // pred_check_branch
      %103 = sbr.rel (0) target = $region17
    $region16: #{vae_forward.1} parent=1 // pred_region
      _
    $region17: #{vae_forward.1} parent=1 // pred_fallthru
      _
    // Predicated region
    $region18: #{vae_forward.1} parent=1 // pred_check
      _
    $region19: #{vae_forward.1} parent=1 // pred_check_branch
      %105 = sbr.rel (0) target = $region21
    $region20: #{vae_forward.1} parent=1 // pred_region
      _
    $region21: #{vae_forward.1} parent=1 // pred_fallthru
      _
    // Predicated region
    $region22: #{vae_forward.1} parent=1 // pred_check
      _
    $region23: #{vae_forward.1} parent=1 // pred_check_branch
      %107 = sbr.rel (0) target = $region25
    $region24: #{vae_forward.1} parent=1 // pred_region
      _
    $region25: #{vae_forward.1} parent=1 // pred_fallthru
      _
    // Predicated region
    $region26: #{vae_forward.1} parent=1 // pred_check
      _
    $region27: #{vae_forward.1} parent=1 // pred_check_branch
      %109 = sbr.rel (0) target = $region29
    $region28: #{vae_forward.1} parent=1 // pred_region
      _
    $region29: #{vae_forward.1} parent=1 // pred_fallthru
      _
    // Predicated region
    $region30: #{vae_forward.1} parent=1 // pred_check
      _
    $region31: #{vae_forward.1} parent=1 // pred_check_branch
      %111 = sbr.rel (0) target = $region33
    $region32: #{vae_forward.1} parent=1 // pred_region
      _
    $region33: #{vae_forward.1} parent=1 // pred_fallthru
      _
    // Predicated region
    $region34: #{vae_forward.1} parent=1 // pred_check
      _
    $region35: #{vae_forward.1} parent=1 // pred_check_branch
      %113 = sbr.rel (0) target = $region37
    $region36: #{vae_forward.1} parent=1 // pred_region
      _
    $region37: #{vae_forward.1} parent=1 // pred_fallthru
      _
    // Predicated region
    $region38: #{vae_forward.1} parent=1 // pred_check
      _
    $region39: #{vae_forward.1} parent=1 // pred_check_branch
      %115 = sbr.rel (0) target = $region41
    $region40: #{vae_forward.1} parent=1 // pred_region
      _
    $region41: #{vae_forward.1} parent=1 // pred_fallthru
      _
    // Predicated region
    $region42: #{vae_forward.1} parent=1 // pred_check
      _
    $region43: #{vae_forward.1} parent=1 // pred_check_branch
      %117 = sbr.rel (0) target = $region45
    $region44: #{vae_forward.1} parent=1 // pred_region
      _
    $region45: #{vae_forward.1} parent=1 // pred_fallthru
      _
    // Predicated region
    $region46: #{vae_forward.1} parent=1 // pred_check
      _
    $region47: #{vae_forward.1} parent=1 // pred_check_branch
      %119 = sbr.rel (0) target = $region49
    $region48: #{vae_forward.1} parent=1 // pred_region
      _
    $region49: #{vae_forward.1} parent=1 // pred_fallthru
      _
    // Predicated region
    $region50: #{vae_forward.1} parent=1 // pred_check
      _
    $region51: #{vae_forward.1} parent=1 // pred_check_branch
      %121 = sbr.rel (0) target = $region53
    $region52: #{vae_forward.1} parent=1 // pred_region
      _
    $region53: #{vae_forward.1} parent=1 // pred_fallthru
      _
    // Predicated region
    $region54: #{vae_forward.1} parent=1 // pred_check
      _
    $region55: #{vae_forward.1} parent=1 // pred_check_branch
      %123 = sbr.rel (0) target = $region57
    $region56: #{vae_forward.1} parent=1 // pred_region
      _
    $region57: #{vae_forward.1} parent=1 // pred_fallthru
      _
    // Predicated region
    $region58: #{vae_forward.1} parent=1 // pred_check
      _
    $region59: #{vae_forward.1} parent=1 // pred_check_branch
      %125 = sbr.rel (0) target = $region61
    $region60: #{vae_forward.1} parent=1 // pred_region
      _
    $region61: #{vae_forward.1} parent=1 // pred_fallthru
      _
    // Predicated region
    $region62: #{vae_forward.1} parent=1 // pred_check
      _
    $region63: #{vae_forward.1} parent=1 // pred_check_branch
      %127 = sbr.rel (0) target = $region65
    $region64: #{vae_forward.1} parent=1 // pred_region
      _
    $region65: #{vae_forward.1} parent=1 // pred_fallthru
      _
    // Predicated region
    $region66: #{vae_forward.1} parent=1 // pred_check
      _
    $region67: #{vae_forward.1} parent=1 // pred_check_branch
      %129 = sbr.rel (0) target = $region69
    $region68: #{vae_forward.1} parent=1 // pred_region
      _
    $region69: #{vae_forward.1} parent=1 // pred_fallthru
      _
    // Predicated region
    $region70: #{vae_forward.1} parent=1 // pred_check
      _
    $region71: #{vae_forward.1} parent=1 // pred_check_branch
      %131 = sbr.rel (0) target = $region73
    $region72: #{vae_forward.1} parent=1 // pred_region
      _
    $region73: #{vae_forward.1} parent=1 // pred_fallthru
      _
    // Predicated region
    $region74: #{vae_forward.1} parent=1 // pred_check
      _
    $region75: #{vae_forward.1} parent=1 // pred_check_branch
      %133 = sbr.rel (0) target = $region77
    $region76: #{vae_forward.1} parent=1 // pred_region
      _
    $region77: #{vae_forward.1} parent=1 // pred_fallthru
      _
    // Predicated region
    $region78: #{vae_forward.1} parent=1 // pred_check
      _
    $region79: #{vae_forward.1} parent=1 // pred_check_branch
      %135 = sbr.rel (0) target = $region81
    $region80: #{vae_forward.1} parent=1 // pred_region
      _
    $region81: #{vae_forward.1} parent=1 // pred_fallthru
      _
    // Predicated region
    $region82: #{vae_forward.1} parent=1 // pred_check
      _
    $region83: #{vae_forward.1} parent=1 // pred_check_branch
      %137 = sbr.rel (0) target = $region85
    $region84: #{vae_forward.1} parent=1 // pred_region
      _
    $region85: #{vae_forward.1} parent=1 // pred_fallthru
      _
    // Predicated region
    $region86: #{vae_forward.1} parent=1 // pred_check
      _
    $region87: #{vae_forward.1} parent=1 // pred_check_branch
      %139 = sbr.rel (0) target = $region89
    $region88: #{vae_forward.1} parent=1 // pred_region
      _
    $region89: #{vae_forward.1} parent=1 // pred_fallthru
      _
    // Predicated region
    $region90: #{vae_forward.1} parent=1 // pred_check
      _
    $region91: #{vae_forward.1} parent=1 // pred_check_branch
      %141 = sbr.rel (0) target = $region93
    $region92: #{vae_forward.1} parent=1 // pred_region
      _
    $region93: #{vae_forward.1} parent=1 // pred_fallthru
      _
    // Predicated region
    $region94: #{vae_forward.1} parent=1 // pred_check
      _
    $region95: #{vae_forward.1} parent=1 // pred_check_branch
      %143 = sbr.rel (0) target = $region97
    $region96: #{vae_forward.1} parent=1 // pred_region
      _
    $region97: #{vae_forward.1} parent=1 // pred_fallthru
      _
    // Predicated region
    $region98: #{vae_forward.1} parent=1 // pred_check
      _
    $region99: #{vae_forward.1} parent=1 // pred_check_branch
      %145 = sbr.rel (0) target = $region101
    $region100: #{vae_forward.1} parent=1 // pred_region
      _
    $region101: #{vae_forward.1} parent=1 // pred_fallthru
      _
    // Predicated region
    $region102: #{vae_forward.1} parent=1 // pred_check
      _
    $region103: #{vae_forward.1} parent=1 // pred_check_branch
      %147 = sbr.rel (0) target = $region105
    $region104: #{vae_forward.1} parent=1 // pred_region
      _
    $region105: #{vae_forward.1} parent=1 // pred_fallthru
      _
    // Predicated region
    $region106: #{vae_forward.1} parent=1 // pred_check
      _
    $region107: #{vae_forward.1} parent=1 // pred_check_branch
      %149 = sbr.rel (0) target = $region109
    $region108: #{vae_forward.1} parent=1 // pred_region
      _
    $region109: #{vae_forward.1} parent=1 // pred_fallthru
      _
    // Predicated region
    $region110: #{vae_forward.1} parent=1 // pred_check
      _
    $region111: #{vae_forward.1} parent=1 // pred_check_branch
      %151 = sbr.rel (0) target = $region113
    $region112: #{vae_forward.1} parent=1 // pred_region
      _
    $region113: #{vae_forward.1} parent=1 // pred_fallthru
      _
    // Predicated region
    $region114: #{vae_forward.1} parent=1 // pred_check
      _
    $region115: #{vae_forward.1} parent=1 // pred_check_branch
      %153 = sbr.rel (0) target = $region117
    $region116: #{vae_forward.1} parent=1 // pred_region
      _
    $region117: #{vae_forward.1} parent=1 // pred_fallthru
      _
    // Predicated region
    $region118: #{vae_forward.1} parent=1 // pred_check
      _
    $region119: #{vae_forward.1} parent=1 // pred_check_branch
      %155 = sbr.rel (0) target = $region121
    $region120: #{vae_forward.1} parent=1 // pred_region
      _
    $region121: #{vae_forward.1} parent=1 // pred_fallthru
      _
    // Predicated region
    $region122: #{vae_forward.1} parent=1 // pred_check
      _
    $region123: #{vae_forward.1} parent=1 // pred_check_branch
      %157 = sbr.rel (0) target = $region125
    $region124: #{vae_forward.1} parent=1 // pred_region
      _
    $region125: #{vae_forward.1} parent=1 // pred_fallthru
      _
    // Predicated region
    $region126: #{vae_forward.1} parent=1 // pred_check
      _
    $region127: #{vae_forward.1} parent=1 // pred_check_branch
      %159 = sbr.rel (0) target = $region129
    $region128: #{vae_forward.1} parent=1 // pred_region
      _
    $region129: #{vae_forward.1} parent=1 // pred_fallthru
      _
    // Predicated region
    $region130: #{vae_forward.1} parent=1 // pred_check
      _
    $region131: #{vae_forward.1} parent=1 // pred_check_branch
      %161 = sbr.rel (0) target = $region133
    $region132: #{vae_forward.1} parent=1 // pred_region
      _
    $region133: #{vae_forward.1} parent=1 // pred_fallthru
      _
    // Predicated region
    $region134: #{vae_forward.1} parent=1 // pred_check
      _
    $region135: #{vae_forward.1} parent=1 // pred_check_branch
      %163 = sbr.rel (0) target = $region137
    $region136: #{vae_forward.1} parent=1 // pred_region
      _
    $region137: #{vae_forward.1} parent=1 // pred_fallthru
      _
    // Predicated region
    $region138: #{vae_forward.1} parent=1 // pred_check
      _
    $region139: #{vae_forward.1} parent=1 // pred_check_branch
      %165 = sbr.rel (0) target = $region141
    $region140: #{vae_forward.1} parent=1 // pred_region
      _
    $region141: #{vae_forward.1} parent=1 // pred_fallthru
      _
    // Predicated region
    $region142: #{vae_forward.1} parent=1 // pred_check
      _
    $region143: #{vae_forward.1} parent=1 // pred_check_branch
      %167 = sbr.rel (0) target = $region145
    $region144: #{vae_forward.1} parent=1 // pred_region
      _
    $region145: #{vae_forward.1} parent=1 // pred_fallthru
      _
    // Predicated region
    $region146: #{vae_forward.1} parent=1 // pred_check
      _
    $region147: #{vae_forward.1} parent=1 // pred_check_branch
      %169 = sbr.rel (0) target = $region149
    $region148: #{vae_forward.1} parent=1 // pred_region
      _
    $region149: #{vae_forward.1} parent=1 // pred_fallthru
      _
    // Predicated region
    $region150: #{vae_forward.1} parent=1 // pred_check
      _
    $region151: #{vae_forward.1} parent=1 // pred_check_branch
      %171 = sbr.rel (0) target = $region153
    $region152: #{vae_forward.1} parent=1 // pred_region
      _
    $region153: #{vae_forward.1} parent=1 // pred_fallthru
      _
    // Predicated region
    $region154: #{vae_forward.1} parent=1 // pred_check
      _
    $region155: #{vae_forward.1} parent=1 // pred_check_branch
      %173 = sbr.rel (0) target = $region157
    $region156: #{vae_forward.1} parent=1 // pred_region
      _
    $region157: #{vae_forward.1} parent=1 // pred_fallthru
      _
    // Predicated region
    $region158: #{vae_forward.1} parent=1 // pred_check
      _
    $region159: #{vae_forward.1} parent=1 // pred_check_branch
      %175 = sbr.rel (0) target = $region161
    $region160: #{vae_forward.1} parent=1 // pred_region
      _
    $region161: #{vae_forward.1} parent=1 // pred_fallthru
      _
    // Predicated region
    $region162: #{vae_forward.1} parent=1 // pred_check
      _
    $region163: #{vae_forward.1} parent=1 // pred_check_branch
      %177 = sbr.rel (0) target = $region165
    $region164: #{vae_forward.1} parent=1 // pred_region
      _
    $region165: #{vae_forward.1} parent=1 // pred_fallthru
      _
    // Predicated region
    $region166: #{vae_forward.1} parent=1 // pred_check
      _
    $region167: #{vae_forward.1} parent=1 // pred_check_branch
      %179 = sbr.rel (0) target = $region169
    $region168: #{vae_forward.1} parent=1 // pred_region
      _
    $region169: #{vae_forward.1} parent=1 // pred_fallthru
      _
    // Predicated region
    $region170: #{vae_forward.1} parent=1 // pred_check
      _
    $region171: #{vae_forward.1} parent=1 // pred_check_branch
      %181 = sbr.rel (0) target = $region173
    $region172: #{vae_forward.1} parent=1 // pred_region
      _
    $region173: #{vae_forward.1} parent=1 // pred_fallthru
      _
    // Predicated region
    $region174: #{vae_forward.1} parent=1 // pred_check
      _
    $region175: #{vae_forward.1} parent=1 // pred_check_branch
      %183 = sbr.rel (0) target = $region177
    $region176: #{vae_forward.1} parent=1 // pred_region
      %185 = vsyncadd [#allocation3], 0
      %s187 = sshll.u32 %s87, 4
      %s188 = int_to_ptr.hbm [resolvable:$true] %s187
      %s189 = sshll.u32 [#allocation2], 4
      %s190 = int_to_ptr.vmem [resolvable:$true] %s189
      %192 = dma.hbm_to_vmem [thread:$0]  %s188, 16, %s190, [#allocation3]
    $region177: #{vae_forward.1} parent=1 // pred_fallthru
      _
    // Predicated region
    $region178: #{vae_forward.1} parent=1 // pred_check
      _
    $region179: #{vae_forward.1} parent=1 // pred_check_branch
      %194 = sbr.rel (0) target = $region181
    $region180: #{vae_forward.1} parent=1 // pred_region
      %196 = dma.done [#allocation3], 16
    $region181: #{vae_forward.1} parent=1 // pred_fallthru
      _
    %v197 = vld [vmem:[%s1] sm:$0xff]
    %v198 = vld [vmem:[%s1 + $0x8] sm:$0xff]
    %v199 = vld [vmem:[%s1 + $0x10] sm:$0xff]
    %v200 = vld [vmem:[%s1 + $0x18] sm:$0xff]
    %v201 = vld [vmem:[%s1 + $0x20] sm:$0xff]
    %v202 = vld [vmem:[%s1 + $0x28] sm:$0xff]
    %v203 = vld [vmem:[%s1 + $0x30] sm:$0xff]
    %v204 = vld [vmem:[%s3] sm:$0x3]
    %v205 = vld [vmem:[%s5] sm:$0xff]
    %v206 = vld [vmem:[%s5 + $0x8] sm:$0xff]
    %v207 = vld [vmem:[%s5 + $0x10] sm:$0xff]
    %v208 = vld [vmem:[%s5 + $0x18] sm:$0xf]
    %vm209 = vcmask 457728
    %v211 = vsel %vm209, %v205, 0
    %v214 = vsel %vm209, %v206, 0
    %v217 = vsel %vm209, %v207, 0
    %v220 = vsel %vm209, %v208, 0
    %222 = vmatpush.msra.mxu0 0.0
    %223 = vmatpush.msra.mxu0 0.0
    %224 = vmatpush.msra.mxu0 0.0
    %225 = vmatpush.msra.mxu0 0.0
    %226 = vmatpush.msra.mxu0 0.0
    %227 = vmatpush.msra.mxu0 0.0
    %228 = vmatpush.msra.mxu0 0.0
    %229 = vmatpush.msra.mxu0 0.0
    %230 = vmatpush.msra.mxu0 0.0
    %231 = vmatpush.msra.mxu0 %v203
    %232 = vmatpush.msra.mxu0 %v202
    %233 = vmatpush.msra.mxu0 %v201
    %234 = vmatpush.msra.mxu0 %v200
    %235 = vmatpush.msra.mxu0 %v199
    %236 = vmatpush.msra.mxu0 %v198
    %237 = vmatpush.msra.mxu0 %v197
    %238 = vmatmul.f32.gmra.mxu0 %v211
    %v239 = vpop.f32.mrf.mxu0
    %v240 = vadd.f32 0.0, %v239
    %241 = vmatmul.f32.gmra.mxu0 %v214
    %v242 = vpop.f32.mrf.mxu0
    %v243 = vadd.f32 0.0, %v242
    %244 = vmatmul.f32.gmra.mxu0 %v217
    %v245 = vpop.f32.mrf.mxu0
    %v246 = vadd.f32 0.0, %v245
    %247 = vmatmul.f32.gmra.mxu0 %v220
    %v248 = vpop.f32.mrf.mxu0
    %v249 = vadd.f32 0.0, %v248
    %250 = vdwg.mxu0
    %v251 = vld [vmem:[%s7] sm:$0xff]
    %v252 = vld [vmem:[%s7 + $0x8] sm:$0xff]
    %v253 = vld [vmem:[%s7 + $0x10] sm:$0xff]
    %v254 = vld [vmem:[%s7 + $0x18] sm:$0xf]
    %s255 = scalar_lea.vmem %s5, 32
    %v256 = vld [vmem:[%s255] sm:$0xff]
    %v257 = vld [vmem:[%s255 + $0x8] sm:$0xff]
    %v258 = vld [vmem:[%s255 + $0x10] sm:$0xff]
    %v259 = vld [vmem:[%s255 + $0x18] sm:$0xf]
    %v261 = vsel %vm209, %v256, 0
    %v264 = vsel %vm209, %v257, 0
    %v267 = vsel %vm209, %v258, 0
    %v270 = vsel %vm209, %v259, 0
    %272 = vmatpush.msra.mxu0 0.0
    %273 = vmatpush.msra.mxu0 0.0
    %274 = vmatpush.msra.mxu0 0.0
    %275 = vmatpush.msra.mxu0 0.0
    %276 = vmatpush.msra.mxu0 0.0
    %277 = vmatpush.msra.mxu0 0.0
    %278 = vmatpush.msra.mxu0 0.0
    %279 = vmatpush.msra.mxu0 0.0
    %280 = vmatpush.msra.mxu0 0.0
    %281 = vmatpush.msra.mxu0 %v203
    %282 = vmatpush.msra.mxu0 %v202
    %283 = vmatpush.msra.mxu0 %v201
    %284 = vmatpush.msra.mxu0 %v200
    %285 = vmatpush.msra.mxu0 %v199
    %286 = vmatpush.msra.mxu0 %v198
    %287 = vmatpush.msra.mxu0 %v197
    %288 = vmatmul.f32.gmra.mxu0 %v261
    %v289 = vpop.f32.mrf.mxu0
    %v290 = vadd.f32 0.0, %v289
    %291 = vmatmul.f32.gmra.mxu0 %v264
    %v292 = vpop.f32.mrf.mxu0
    %v293 = vadd.f32 0.0, %v292
    %294 = vmatmul.f32.gmra.mxu0 %v267
    %v295 = vpop.f32.mrf.mxu0
    %v296 = vadd.f32 0.0, %v295
    %297 = vmatmul.f32.gmra.mxu0 %v270
    %v298 = vpop.f32.mrf.mxu0
    %v299 = vadd.f32 0.0, %v298
    %300 = vdwg.mxu0
    %s301 = scalar_lea.vmem %s7, 32
    %v302 = vld [vmem:[%s301] sm:$0xff]
    %v303 = vld [vmem:[%s301 + $0x8] sm:$0xff]
    %v304 = vld [vmem:[%s301 + $0x10] sm:$0xff]
    %v305 = vld [vmem:[%s301 + $0x18] sm:$0xf]
    %vm306 = vcmask 228352
    %v308 = vsel %vm306, %v290, 0
    %v311 = vsel %vm306, %v293, 0
    %v314 = vsel %vm306, %v296, 0
    %v317 = vsel %vm306, %v299, 0
    %vm319 = vcmask 1043456
    %v321 = vsel %vm319, %v305, 0
    %323 = vmatpush.msra.mxu0 0.0
    %324 = vmatpush.msra.mxu0 0.0
    %325 = vmatpush.msra.mxu0 0.0
    %326 = vmatpush.msra.mxu0 0.0
    %327 = vmatpush.msra.mxu0 0.0
    %328 = vmatpush.msra.mxu0 0.0
    %329 = vmatpush.msra.mxu0 0.0
    %330 = vmatpush.msra.mxu0 0.0
    %331 = vmatpush.msra.mxu0 0.0
    %332 = vmatpush.msra.mxu0 0.0
    %333 = vmatpush.msra.mxu0 0.0
    %334 = vmatpush.msra.mxu0 0.0
    %335 = vmatpush.msra.mxu0 %v321
    %336 = vmatpush.msra.mxu0 %v304
    %337 = vmatpush.msra.mxu0 %v303
    %338 = vmatpush.msra.mxu0 %v302
    %339 = vmatmul.f32.gmra.mxu0 %v308
    %v340 = vpop.f32.mrf.mxu0
    %v341 = vadd.f32 0.0, %v340
    %342 = vmatmul.f32.gmra.mxu0 %v311
    %v343 = vpop.f32.mrf.mxu0
    %v344 = vadd.f32 0.0, %v343
    %345 = vmatmul.f32.gmra.mxu0 %v314
    %v346 = vpop.f32.mrf.mxu0
    %v347 = vadd.f32 0.0, %v346
    %348 = vmatmul.f32.gmra.mxu0 %v317
    %v349 = vpop.f32.mrf.mxu0
    %v350 = vadd.f32 0.0, %v349
    %351 = vdwg.mxu0
    %v353 = vsel %vm306, %v240, 0
    %v356 = vsel %vm306, %v243, 0
    %v359 = vsel %vm306, %v246, 0
    %v362 = vsel %vm306, %v249, 0
    %v365 = vsel %vm319, %v254, 0
    %367 = vmatpush.msra.mxu0 0.0
    %368 = vmatpush.msra.mxu0 0.0
    %369 = vmatpush.msra.mxu0 0.0
    %370 = vmatpush.msra.mxu0 0.0
    %371 = vmatpush.msra.mxu0 0.0
    %372 = vmatpush.msra.mxu0 0.0
    %373 = vmatpush.msra.mxu0 0.0
    %374 = vmatpush.msra.mxu0 0.0
    %375 = vmatpush.msra.mxu0 0.0
    %376 = vmatpush.msra.mxu0 0.0
    %377 = vmatpush.msra.mxu0 0.0
    %378 = vmatpush.msra.mxu0 0.0
    %379 = vmatpush.msra.mxu0 %v365
    %380 = vmatpush.msra.mxu0 %v253
    %381 = vmatpush.msra.mxu0 %v252
    %382 = vmatpush.msra.mxu0 %v251
    %383 = vmatmul.f32.gmra.mxu0 %v353
    %v384 = vpop.f32.mrf.mxu0
    %v385 = vadd.f32 %v341, %v384
    %386 = vmatmul.f32.gmra.mxu0 %v356
    %v387 = vpop.f32.mrf.mxu0
    %v388 = vadd.f32 %v344, %v387
    %389 = vmatmul.f32.gmra.mxu0 %v359
    %v390 = vpop.f32.mrf.mxu0
    %v391 = vadd.f32 %v347, %v390
    %392 = vmatmul.f32.gmra.mxu0 %v362
    %v393 = vpop.f32.mrf.mxu0
    %v394 = vadd.f32 %v350, %v393
    %395 = vdwg.mxu0
    %s396 = scalar_lea.vmem %s5, 64
    %v397 = vld [vmem:[%s396] sm:$0xff]
    %v398 = vld [vmem:[%s396 + $0x8] sm:$0xff]
    %v399 = vld [vmem:[%s396 + $0x10] sm:$0xff]
    %v400 = vld [vmem:[%s396 + $0x18] sm:$0xf]
    %v402 = vsel %vm209, %v397, 0
    %v405 = vsel %vm209, %v398, 0
    %v408 = vsel %vm209, %v399, 0
    %v411 = vsel %vm209, %v400, 0
    %413 = vmatpush.msra.mxu0 0.0
    %414 = vmatpush.msra.mxu0 0.0
    %415 = vmatpush.msra.mxu0 0.0
    %416 = vmatpush.msra.mxu0 0.0
    %417 = vmatpush.msra.mxu0 0.0
    %418 = vmatpush.msra.mxu0 0.0
    %419 = vmatpush.msra.mxu0 0.0
    %420 = vmatpush.msra.mxu0 0.0
    %421 = vmatpush.msra.mxu0 0.0
    %422 = vmatpush.msra.mxu0 %v203
    %423 = vmatpush.msra.mxu0 %v202
    %424 = vmatpush.msra.mxu0 %v201
    %425 = vmatpush.msra.mxu0 %v200
    %426 = vmatpush.msra.mxu0 %v199
    %427 = vmatpush.msra.mxu0 %v198
    %428 = vmatpush.msra.mxu0 %v197
    %429 = vmatmul.f32.gmra.mxu0 %v402
    %v430 = vpop.f32.mrf.mxu0
    %v431 = vadd.f32 0.0, %v430
    %432 = vmatmul.f32.gmra.mxu0 %v405
    %v433 = vpop.f32.mrf.mxu0
    %v434 = vadd.f32 0.0, %v433
    %435 = vmatmul.f32.gmra.mxu0 %v408
    %v436 = vpop.f32.mrf.mxu0
    %v437 = vadd.f32 0.0, %v436
    %438 = vmatmul.f32.gmra.mxu0 %v411
    %v439 = vpop.f32.mrf.mxu0
    %v440 = vadd.f32 0.0, %v439
    %441 = vdwg.mxu0
    %s442 = scalar_lea.vmem %s7, 64
    %v443 = vld [vmem:[%s442] sm:$0xff]
    %v444 = vld [vmem:[%s442 + $0x8] sm:$0xff]
    %v445 = vld [vmem:[%s442 + $0x10] sm:$0xff]
    %v446 = vld [vmem:[%s442 + $0x18] sm:$0xf]
    %v448 = vsel %vm306, %v431, 0
    %v451 = vsel %vm306, %v434, 0
    %v454 = vsel %vm306, %v437, 0
    %v457 = vsel %vm306, %v440, 0
    %v460 = vsel %vm319, %v446, 0
    %462 = vmatpush.msra.mxu0 0.0
    %463 = vmatpush.msra.mxu0 0.0
    %464 = vmatpush.msra.mxu0 0.0
    %465 = vmatpush.msra.mxu0 0.0
    %466 = vmatpush.msra.mxu0 0.0
    %467 = vmatpush.msra.mxu0 0.0
    %468 = vmatpush.msra.mxu0 0.0
    %469 = vmatpush.msra.mxu0 0.0
    %470 = vmatpush.msra.mxu0 0.0
    %471 = vmatpush.msra.mxu0 0.0
    %472 = vmatpush.msra.mxu0 0.0
    %473 = vmatpush.msra.mxu0 0.0
    %474 = vmatpush.msra.mxu0 %v460
    %475 = vmatpush.msra.mxu0 %v445
    %476 = vmatpush.msra.mxu0 %v444
    %477 = vmatpush.msra.mxu0 %v443
    %478 = vmatmul.f32.gmra.mxu0 %v448
    %v479 = vpop.f32.mrf.mxu0
    %v480 = vadd.f32 0.0, %v479
    %481 = vmatmul.f32.gmra.mxu0 %v451
    %v482 = vpop.f32.mrf.mxu0
    %v483 = vadd.f32 0.0, %v482
    %484 = vmatmul.f32.gmra.mxu0 %v454
    %v485 = vpop.f32.mrf.mxu0
    %v486 = vadd.f32 0.0, %v485
    %487 = vmatmul.f32.gmra.mxu0 %v457
    %v488 = vpop.f32.mrf.mxu0
    %v489 = vadd.f32 0.0, %v488
    %490 = vdwg.mxu0
    %v491 = vadd.f32 %v385, %v480
    %v492 = vadd.f32 %v388, %v483
    %v493 = vadd.f32 %v391, %v486
    %v494 = vadd.f32 %v394, %v489
    %v495 = vld [vmem:[%s9] sm:$0x1]
    %v497 = vperm.slane %v495, 0
    %v499 = vadd.f32 %v491, %v497
    %v500 = vadd.f32 %v492, %v497
    %v501 = vadd.f32 %v493, %v497
    %v502 = vadd.f32 %v494, %v497
    %v503 = vmax.f32 %v499, 0.0
    %v504 = vmax.f32 %v500, 0.0
    %v505 = vmax.f32 %v501, 0.0
    %v506 = vmax.f32 %v502, 0.0
    %v507 = vld [vmem:[%s11] sm:$0xff]
    %v508 = vld [vmem:[%s11 + $0x8] sm:$0x3f]
    %v510 = vsel %vm306, %v507, 0
    %v513 = vsel %vm306, %v508, 0
    %v516 = vsel %vm319, %v506, 0
    %518 = vmatpush.msra.mxu0 0.0
    %519 = vmatpush.msra.mxu0 0.0
    %520 = vmatpush.msra.mxu0 0.0
    %521 = vmatpush.msra.mxu0 0.0
    %522 = vmatpush.msra.mxu0 0.0
    %523 = vmatpush.msra.mxu0 0.0
    %524 = vmatpush.msra.mxu0 0.0
    %525 = vmatpush.msra.mxu0 0.0
    %526 = vmatpush.msra.mxu0 0.0
    %527 = vmatpush.msra.mxu0 0.0
    %528 = vmatpush.msra.mxu0 0.0
    %529 = vmatpush.msra.mxu0 0.0
    %530 = vmatpush.msra.mxu0 %v516
    %531 = vmatpush.msra.mxu0 %v505
    %532 = vmatpush.msra.mxu0 %v504
    %533 = vmatpush.msra.mxu0 %v503
    %534 = vmatmul.f32.gmra.mxu0 %v510
    %v535 = vpop.f32.mrf.mxu0
    %v536 = vadd.f32 0.0, %v535
    %537 = vmatmul.f32.gmra.mxu0 %v513
    %v538 = vpop.f32.mrf.mxu0
    %v539 = vadd.f32 0.0, %v538
    %540 = vdwg.mxu0
    %v541 = vld [vmem:[%s13] sm:$0xff]
    %v542 = vld [vmem:[%s13 + $0x8] sm:$0xff]
    %v543 = vld [vmem:[%s13 + $0x10] sm:$0xff]
    %v544 = vld [vmem:[%s13 + $0x18] sm:$0xff]
    %v545 = vld [vmem:[%s13 + $0x20] sm:$0xff]
    %v546 = vld [vmem:[%s13 + $0x28] sm:$0xff]
    %v547 = vld [vmem:[%s13 + $0x30] sm:$0xff]
    %v548 = vld [vmem:[%s13 + $0x38] sm:$0xff]
    %v549 = vld [vmem:[%s13 + $0x40] sm:$0xff]
    %v550 = vld [vmem:[%s13 + $0x48] sm:$0xff]
    %v551 = vld [vmem:[%s13 + $0x50] sm:$0xff]
    %v552 = vld [vmem:[%s13 + $0x58] sm:$0xff]
    %v553 = vld [vmem:[%s13 + $0x60] sm:$0xff]
    %v554 = vld [vmem:[%s13 + $0x68] sm:$0xff]
    %s555 = scalar_lea.vmem %s11, 16
    %v556 = vld [vmem:[%s555] sm:$0xff]
    %v557 = vld [vmem:[%s555 + $0x8] sm:$0x3f]
    %v559 = vsel %vm306, %v556, 0
    %v562 = vsel %vm306, %v557, 0
    %564 = vmatpush.msra.mxu0 0.0
    %565 = vmatpush.msra.mxu0 0.0
    %566 = vmatpush.msra.mxu0 0.0
    %567 = vmatpush.msra.mxu0 0.0
    %568 = vmatpush.msra.mxu0 0.0
    %569 = vmatpush.msra.mxu0 0.0
    %570 = vmatpush.msra.mxu0 0.0
    %571 = vmatpush.msra.mxu0 0.0
    %572 = vmatpush.msra.mxu0 0.0
    %573 = vmatpush.msra.mxu0 0.0
    %574 = vmatpush.msra.mxu0 0.0
    %575 = vmatpush.msra.mxu0 0.0
    %576 = vmatpush.msra.mxu0 %v516
    %577 = vmatpush.msra.mxu0 %v505
    %578 = vmatpush.msra.mxu0 %v504
    %579 = vmatpush.msra.mxu0 %v503
    %580 = vmatmul.f32.gmra.mxu0 %v559
    %v581 = vpop.f32.mrf.mxu0
    %v582 = vadd.f32 0.0, %v581
    %583 = vmatmul.f32.gmra.mxu0 %v562
    %v584 = vpop.f32.mrf.mxu0
    %v585 = vadd.f32 0.0, %v584
    %586 = vdwg.mxu0
    %s587 = scalar_lea.vmem %s13, 112
    %v588 = vld [vmem:[%s587] sm:$0xff]
    %v589 = vld [vmem:[%s587 + $0x8] sm:$0xff]
    %v590 = vld [vmem:[%s587 + $0x10] sm:$0xff]
    %v591 = vld [vmem:[%s587 + $0x18] sm:$0xff]
    %v592 = vld [vmem:[%s587 + $0x20] sm:$0xff]
    %v593 = vld [vmem:[%s587 + $0x28] sm:$0xff]
    %v594 = vld [vmem:[%s587 + $0x30] sm:$0xff]
    %v595 = vld [vmem:[%s587 + $0x38] sm:$0xff]
    %v596 = vld [vmem:[%s587 + $0x40] sm:$0xff]
    %v597 = vld [vmem:[%s587 + $0x48] sm:$0xff]
    %v598 = vld [vmem:[%s587 + $0x50] sm:$0xff]
    %v599 = vld [vmem:[%s587 + $0x58] sm:$0xff]
    %v600 = vld [vmem:[%s587 + $0x60] sm:$0xff]
    %v601 = vld [vmem:[%s587 + $0x68] sm:$0xff]
    %vm602 = vcmask 916480
    %v604 = vsel %vm602, %v582, 0
    %v607 = vsel %vm602, %v585, 0
    %609 = vmatpush.msra.mxu0 0.0
    %610 = vmatpush.msra.mxu0 0.0
    %611 = vmatpush.msra.mxu0 %v601
    %612 = vmatpush.msra.mxu0 %v600
    %613 = vmatpush.msra.mxu0 %v599
    %614 = vmatpush.msra.mxu0 %v598
    %615 = vmatpush.msra.mxu0 %v597
    %616 = vmatpush.msra.mxu0 %v596
    %617 = vmatpush.msra.mxu0 %v595
    %618 = vmatpush.msra.mxu0 %v594
    %619 = vmatpush.msra.mxu0 %v593
    %620 = vmatpush.msra.mxu0 %v592
    %621 = vmatpush.msra.mxu0 %v591
    %622 = vmatpush.msra.mxu0 %v590
    %623 = vmatpush.msra.mxu0 %v589
    %624 = vmatpush.msra.mxu0 %v588
    %625 = vmatmul.f32.gmra.mxu0 %v604
    %v626 = vpop.f32.mrf.mxu0
    %v627 = vadd.f32 0.0, %v626
    %628 = vmatmul.f32.gmra.mxu0 %v607
    %v629 = vpop.f32.mrf.mxu0
    %v630 = vadd.f32 0.0, %v629
    %631 = vdwg.mxu0
    %v633 = vsel %vm602, %v536, 0
    %v636 = vsel %vm602, %v539, 0
    %638 = vmatpush.msra.mxu0 0.0
    %639 = vmatpush.msra.mxu0 0.0
    %640 = vmatpush.msra.mxu0 %v554
    %641 = vmatpush.msra.mxu0 %v553
    %642 = vmatpush.msra.mxu0 %v552
    %643 = vmatpush.msra.mxu0 %v551
    %644 = vmatpush.msra.mxu0 %v550
    %645 = vmatpush.msra.mxu0 %v549
    %646 = vmatpush.msra.mxu0 %v548
    %647 = vmatpush.msra.mxu0 %v547
    %648 = vmatpush.msra.mxu0 %v546
    %649 = vmatpush.msra.mxu0 %v545
    %650 = vmatpush.msra.mxu0 %v544
    %651 = vmatpush.msra.mxu0 %v543
    %652 = vmatpush.msra.mxu0 %v542
    %653 = vmatpush.msra.mxu0 %v541
    %654 = vmatmul.f32.gmra.mxu0 %v633
    %v655 = vpop.f32.mrf.mxu0
    %v656 = vadd.f32 %v627, %v655
    %657 = vmatmul.f32.gmra.mxu0 %v636
    %v658 = vpop.f32.mrf.mxu0
    %v659 = vadd.f32 %v630, %v658
    %660 = vdwg.mxu0
    %s661 = scalar_lea.vmem %s11, 32
    %v662 = vld [vmem:[%s661] sm:$0xff]
    %v663 = vld [vmem:[%s661 + $0x8] sm:$0x3f]
    %v665 = vsel %vm306, %v662, 0
    %v668 = vsel %vm306, %v663, 0
    %670 = vmatpush.msra.mxu0 0.0
    %671 = vmatpush.msra.mxu0 0.0
    %672 = vmatpush.msra.mxu0 0.0
    %673 = vmatpush.msra.mxu0 0.0
    %674 = vmatpush.msra.mxu0 0.0
    %675 = vmatpush.msra.mxu0 0.0
    %676 = vmatpush.msra.mxu0 0.0
    %677 = vmatpush.msra.mxu0 0.0
    %678 = vmatpush.msra.mxu0 0.0
    %679 = vmatpush.msra.mxu0 0.0
    %680 = vmatpush.msra.mxu0 0.0
    %681 = vmatpush.msra.mxu0 0.0
    %682 = vmatpush.msra.mxu0 %v516
    %683 = vmatpush.msra.mxu0 %v505
    %684 = vmatpush.msra.mxu0 %v504
    %685 = vmatpush.msra.mxu0 %v503
    %686 = vmatmul.f32.gmra.mxu0 %v665
    %v687 = vpop.f32.mrf.mxu0
    %v688 = vadd.f32 0.0, %v687
    %689 = vmatmul.f32.gmra.mxu0 %v668
    %v690 = vpop.f32.mrf.mxu0
    %v691 = vadd.f32 0.0, %v690
    %692 = vdwg.mxu0
    %s693 = scalar_lea.vmem %s13, 224
    %v694 = vld [vmem:[%s693] sm:$0xff]
    %v695 = vld [vmem:[%s693 + $0x8] sm:$0xff]
    %v696 = vld [vmem:[%s693 + $0x10] sm:$0xff]
    %v697 = vld [vmem:[%s693 + $0x18] sm:$0xff]
    %v698 = vld [vmem:[%s693 + $0x20] sm:$0xff]
    %v699 = vld [vmem:[%s693 + $0x28] sm:$0xff]
    %v700 = vld [vmem:[%s693 + $0x30] sm:$0xff]
    %v701 = vld [vmem:[%s693 + $0x38] sm:$0xff]
    %v702 = vld [vmem:[%s693 + $0x40] sm:$0xff]
    %v703 = vld [vmem:[%s693 + $0x48] sm:$0xff]
    %v704 = vld [vmem:[%s693 + $0x50] sm:$0xff]
    %v705 = vld [vmem:[%s693 + $0x58] sm:$0xff]
    %v706 = vld [vmem:[%s693 + $0x60] sm:$0xff]
    %v707 = vld [vmem:[%s693 + $0x68] sm:$0xff]
    %v709 = vsel %vm602, %v688, 0
    %v712 = vsel %vm602, %v691, 0
    %714 = vmatpush.msra.mxu0 0.0
    %715 = vmatpush.msra.mxu0 0.0
    %716 = vmatpush.msra.mxu0 %v707
    %717 = vmatpush.msra.mxu0 %v706
    %718 = vmatpush.msra.mxu0 %v705
    %719 = vmatpush.msra.mxu0 %v704
    %720 = vmatpush.msra.mxu0 %v703
    %721 = vmatpush.msra.mxu0 %v702
    %722 = vmatpush.msra.mxu0 %v701
    %723 = vmatpush.msra.mxu0 %v700
    %724 = vmatpush.msra.mxu0 %v699
    %725 = vmatpush.msra.mxu0 %v698
    %726 = vmatpush.msra.mxu0 %v697
    %727 = vmatpush.msra.mxu0 %v696
    %728 = vmatpush.msra.mxu0 %v695
    %729 = vmatpush.msra.mxu0 %v694
    %730 = vmatmul.f32.gmra.mxu0 %v709
    %v731 = vpop.f32.mrf.mxu0
    %v732 = vadd.f32 0.0, %v731
    %733 = vmatmul.f32.gmra.mxu0 %v712
    %v734 = vpop.f32.mrf.mxu0
    %v735 = vadd.f32 0.0, %v734
    %736 = vdwg.mxu0
    %v737 = vadd.f32 %v656, %v732
    %v738 = vadd.f32 %v659, %v735
    %v739 = vld [vmem:[%s15] sm:$0x1]
    %v741 = vperm.slane %v739, 0
    %v743 = vadd.f32 %v737, %v741
    %v744 = vadd.f32 %v738, %v741
    %v745 = vld [vmem:[%s17] sm:$0x1]
    %v746 = vld [vmem:[%s19] sm:$0x1]
    %v747 = vld [vmem:[%s21] sm:$0xff]
    %v748 = vld [vmem:[%s21 + $0x8] sm:$0xff]
    %v749 = vld [vmem:[%s21 + $0x10] sm:$0xff]
    %v750 = vld [vmem:[%s21 + $0x18] sm:$0xff]
    %v751 = vld [vmem:[%s21 + $0x20] sm:$0xff]
    %v752 = vld [vmem:[%s21 + $0x28] sm:$0xff]
    %v753 = vld [vmem:[%s21 + $0x30] sm:$0xff]
    %v754 = vld [vmem:[%s21 + $0x38] sm:$0xff]
    %v755 = vld [vmem:[%s21 + $0x40] sm:$0xff]
    %v756 = vld [vmem:[%s21 + $0x48] sm:$0xff]
    %v757 = vld [vmem:[%s21 + $0x50] sm:$0xff]
    %v758 = vld [vmem:[%s21 + $0x58] sm:$0xff]
    %v759 = vld [vmem:[%s21 + $0x60] sm:$0xff]
    %v760 = vld [vmem:[%s21 + $0x68] sm:$0xff]
    %v761 = vld [vmem:[%s23] sm:$0xff]
    %v762 = vld [vmem:[%s23 + $0x8] sm:$0xff]
    %v763 = vsel %vm602, %v743, 0.0
    %vm764 = vcmask 914432
    %v765 = vsel %vm764, %v744, 0.0
    %v766 = vadd.f32 %v763, %v765
    %v767 = vrot.slane %v766, 4
    %v768 = vadd.f32 %v766, %v767
    %v769 = vrot.slane %v768, 2
    %v770 = vadd.f32 %v768, %v769
    %v771 = vrot.slane %v770, 1
    %v772 = vadd.f32 %v770, %v771
    %v774 = vsel %vm602, %v772, 0
    %776 = vmatpush.msra.mxu0 0.0
    %777 = vmatpush.msra.mxu0 0.0
    %778 = vmatpush.msra.mxu0 %v760
    %779 = vmatpush.msra.mxu0 %v759
    %780 = vmatpush.msra.mxu0 %v758
    %781 = vmatpush.msra.mxu0 %v757
    %782 = vmatpush.msra.mxu0 %v756
    %783 = vmatpush.msra.mxu0 %v755
    %784 = vmatpush.msra.mxu0 %v754
    %785 = vmatpush.msra.mxu0 %v753
    %786 = vmatpush.msra.mxu0 %v752
    %787 = vmatpush.msra.mxu0 %v751
    %788 = vmatpush.msra.mxu0 %v750
    %789 = vmatpush.msra.mxu0 %v749
    %790 = vmatpush.msra.mxu0 %v748
    %791 = vmatpush.msra.mxu0 %v747
    %792 = vmatmul.f32.gmra.mxu0 %v774
    %v793 = vpop.f32.mrf.mxu0
    %v794 = vadd.f32 0.0, %v793
    %795 = vdwg.mxu0
    %v796 = vmul.f32 %v743, %v743
    %v797 = vmul.f32 %v744, %v744
    %v798 = vsel %vm602, %v796, 0.0
    %v799 = vsel %vm764, %v797, 0.0
    %v800 = vadd.f32 %v798, %v799
    %v801 = vrot.slane %v800, 4
    %v802 = vadd.f32 %v800, %v801
    %v803 = vrot.slane %v802, 2
    %v804 = vadd.f32 %v802, %v803
    %v805 = vrot.slane %v804, 1
    %v806 = vadd.f32 %v804, %v805
    %v808 = vsel %vm602, %v806, 0
    %810 = vmatpush.msra.mxu0 0.0
    %811 = vmatpush.msra.mxu0 0.0
    %812 = vmatpush.msra.mxu0 %v760
    %813 = vmatpush.msra.mxu0 %v759
    %814 = vmatpush.msra.mxu0 %v758
    %815 = vmatpush.msra.mxu0 %v757
    %816 = vmatpush.msra.mxu0 %v756
    %817 = vmatpush.msra.mxu0 %v755
    %818 = vmatpush.msra.mxu0 %v754
    %819 = vmatpush.msra.mxu0 %v753
    %820 = vmatpush.msra.mxu0 %v752
    %821 = vmatpush.msra.mxu0 %v751
    %822 = vmatpush.msra.mxu0 %v750
    %823 = vmatpush.msra.mxu0 %v749
    %824 = vmatpush.msra.mxu0 %v748
    %825 = vmatpush.msra.mxu0 %v747
    %826 = vmatmul.f32.gmra.mxu0 %v808
    %v827 = vpop.f32.mrf.mxu0
    %v828 = vadd.f32 0.0, %v827
    %829 = vdwg.mxu0
    %v830 = vmul.f32 %v794, 0.010204081
    %v831 = vmul.f32 %v828, 0.010204081
    %v832 = vmul.f32 %v830, %v830
    %v833 = vsub.f32 %v831, %v832
    %v834 = vadd.f32 %v833, 1e-05
    %v835 = vrsqrt.pop %v834
    %v836 = vmul.f32 %v835, %v834
    %v837 = vmul.f32 %v836, %v835
    %v838 = vmul.f32 0.5, %v837
    %v839 = vsub.f32 1.5, %v838
    %v840 = vmul.f32 %v835, %v839
    %vm841 = vweird.f32 %v834
    %vm842 = vweird.f32 %v835
    %vm843 = vmor %vm841, %vm842
    %v844 = vsel %vm843, %v835, %v840
    %v845 = vmul.f32 %v745, %v844
    %v846 = vmul.f32 %v830, %v845
    %v847 = vsub.f32 %v746, %v846
    %vm848 = vcmask 130048
    %v850 = vsel %vm848, %v845, 0
    %852 = vmatpush.msra.mxu0 0.0
    %853 = vmatpush.msra.mxu0 0.0
    %854 = vmatpush.msra.mxu0 0.0
    %855 = vmatpush.msra.mxu0 0.0
    %856 = vmatpush.msra.mxu0 0.0
    %857 = vmatpush.msra.mxu0 0.0
    %858 = vmatpush.msra.mxu0 0.0
    %859 = vmatpush.msra.mxu0 0.0
    %860 = vmatpush.msra.mxu0 0.0
    %861 = vmatpush.msra.mxu0 0.0
    %862 = vmatpush.msra.mxu0 0.0
    %863 = vmatpush.msra.mxu0 0.0
    %864 = vmatpush.msra.mxu0 0.0
    %865 = vmatpush.msra.mxu0 0.0
    %866 = vmatpush.msra.mxu0 %v762
    %867 = vmatpush.msra.mxu0 %v761
    %868 = vmatmul.f32.gmra.mxu0 %v850
    %v869 = vpop.f32.mrf.mxu0
    %v870 = vadd.f32 0.0, %v869
    %871 = vdwg.mxu0
    %v873 = vsel %vm848, %v847, 0
    %875 = vmatpush.msra.mxu0 0.0
    %876 = vmatpush.msra.mxu0 0.0
    %877 = vmatpush.msra.mxu0 0.0
    %878 = vmatpush.msra.mxu0 0.0
    %879 = vmatpush.msra.mxu0 0.0
    %880 = vmatpush.msra.mxu0 0.0
    %881 = vmatpush.msra.mxu0 0.0
    %882 = vmatpush.msra.mxu0 0.0
    %883 = vmatpush.msra.mxu0 0.0
    %884 = vmatpush.msra.mxu0 0.0
    %885 = vmatpush.msra.mxu0 0.0
    %886 = vmatpush.msra.mxu0 0.0
    %887 = vmatpush.msra.mxu0 0.0
    %888 = vmatpush.msra.mxu0 0.0
    %889 = vmatpush.msra.mxu0 %v762
    %890 = vmatpush.msra.mxu0 %v761
    %891 = vmatmul.f32.gmra.mxu0 %v873
    %v892 = vpop.f32.mrf.mxu0
    %v893 = vadd.f32 0.0, %v892
    %894 = vdwg.mxu0
    %v895 = vperm.slane %v870, 0
    %v896 = vmul.f32 %v743, %v895
    %v897 = vmul.f32 %v744, %v895
    %v898 = vperm.slane %v893, 0
    %v899 = vadd.f32 %v896, %v898
    %v900 = vadd.f32 %v897, %v898
    %v901 = vmax.f32 %v899, 0.0
    %v902 = vmax.f32 %v900, 0.0
    %v903 = vld [vmem:[%s25] sm:$0x3f]
    %vm904 = vcmask 113664
    %v906 = vsel %vm904, %v903, 0
    %vm908 = vcmask 1045504
    %v910 = vsel %vm908, %v902, 0
    %912 = vmatpush.msra.mxu0 0.0
    %913 = vmatpush.msra.mxu0 0.0
    %914 = vmatpush.msra.mxu0 0.0
    %915 = vmatpush.msra.mxu0 0.0
    %916 = vmatpush.msra.mxu0 0.0
    %917 = vmatpush.msra.mxu0 0.0
    %918 = vmatpush.msra.mxu0 0.0
    %919 = vmatpush.msra.mxu0 0.0
    %920 = vmatpush.msra.mxu0 0.0
    %921 = vmatpush.msra.mxu0 0.0
    %922 = vmatpush.msra.mxu0 0.0
    %923 = vmatpush.msra.mxu0 0.0
    %924 = vmatpush.msra.mxu0 0.0
    %925 = vmatpush.msra.mxu0 0.0
    %926 = vmatpush.msra.mxu0 %v910
    %927 = vmatpush.msra.mxu0 %v901
    %928 = vmatmul.f32.gmra.mxu0 %v906
    %v929 = vpop.f32.mrf.mxu0
    %v930 = vadd.f32 0.0, %v929
    %931 = vdwg.mxu0
    %v932 = vld [vmem:[%s27] sm:$0xff]
    %v933 = vld [vmem:[%s27 + $0x8] sm:$0xff]
    %v934 = vld [vmem:[%s27 + $0x10] sm:$0xff]
    %v935 = vld [vmem:[%s27 + $0x18] sm:$0xff]
    %v936 = vld [vmem:[%s27 + $0x20] sm:$0xff]
    %v937 = vld [vmem:[%s27 + $0x28] sm:$0xff]
    %v938 = vld [vmem:[%s27 + $0x30] sm:$0xff]
    %v939 = vld [vmem:[%s27 + $0x38] sm:$0xff]
    %v940 = vld [vmem:[%s27 + $0x40] sm:$0xff]
    %v941 = vld [vmem:[%s27 + $0x48] sm:$0xff]
    %v942 = vld [vmem:[%s27 + $0x50] sm:$0xff]
    %v943 = vld [vmem:[%s27 + $0x58] sm:$0xff]
    %v944 = vld [vmem:[%s27 + $0x60] sm:$0xff]
    %v945 = vld [vmem:[%s27 + $0x68] sm:$0xff]
    %s946 = scalar_lea.vmem %s25, 8
    %v947 = vld [vmem:[%s946] sm:$0x3f]
    %v949 = vsel %vm904, %v947, 0
    %951 = vmatpush.msra.mxu0 0.0
    %952 = vmatpush.msra.mxu0 0.0
    %953 = vmatpush.msra.mxu0 0.0
    %954 = vmatpush.msra.mxu0 0.0
    %955 = vmatpush.msra.mxu0 0.0
    %956 = vmatpush.msra.mxu0 0.0
    %957 = vmatpush.msra.mxu0 0.0
    %958 = vmatpush.msra.mxu0 0.0
    %959 = vmatpush.msra.mxu0 0.0
    %960 = vmatpush.msra.mxu0 0.0
    %961 = vmatpush.msra.mxu0 0.0
    %962 = vmatpush.msra.mxu0 0.0
    %963 = vmatpush.msra.mxu0 0.0
    %964 = vmatpush.msra.mxu0 0.0
    %965 = vmatpush.msra.mxu0 %v910
    %966 = vmatpush.msra.mxu0 %v901
    %967 = vmatmul.f32.gmra.mxu0 %v949
    %v968 = vpop.f32.mrf.mxu0
    %v969 = vadd.f32 0.0, %v968
    %970 = vdwg.mxu0
    %s971 = scalar_lea.vmem %s27, 112
    %v972 = vld [vmem:[%s971] sm:$0xff]
    %v973 = vld [vmem:[%s971 + $0x8] sm:$0xff]
    %v974 = vld [vmem:[%s971 + $0x10] sm:$0xff]
    %v975 = vld [vmem:[%s971 + $0x18] sm:$0xff]
    %v976 = vld [vmem:[%s971 + $0x20] sm:$0xff]
    %v977 = vld [vmem:[%s971 + $0x28] sm:$0xff]
    %v978 = vld [vmem:[%s971 + $0x30] sm:$0xff]
    %v979 = vld [vmem:[%s971 + $0x38] sm:$0xff]
    %v980 = vld [vmem:[%s971 + $0x40] sm:$0xff]
    %v981 = vld [vmem:[%s971 + $0x48] sm:$0xff]
    %v982 = vld [vmem:[%s971 + $0x50] sm:$0xff]
    %v983 = vld [vmem:[%s971 + $0x58] sm:$0xff]
    %v984 = vld [vmem:[%s971 + $0x60] sm:$0xff]
    %v985 = vld [vmem:[%s971 + $0x68] sm:$0xff]
    %v987 = vsel %vm602, %v969, 0
    %989 = vmatpush.msra.mxu0 0.0
    %990 = vmatpush.msra.mxu0 0.0
    %991 = vmatpush.msra.mxu0 %v985
    %992 = vmatpush.msra.mxu0 %v984
    %993 = vmatpush.msra.mxu0 %v983
    %994 = vmatpush.msra.mxu0 %v982
    %995 = vmatpush.msra.mxu0 %v981
    %996 = vmatpush.msra.mxu0 %v980
    %997 = vmatpush.msra.mxu0 %v979
    %998 = vmatpush.msra.mxu0 %v978
    %999 = vmatpush.msra.mxu0 %v977
    %1000 = vmatpush.msra.mxu0 %v976
    %1001 = vmatpush.msra.mxu0 %v975
    %1002 = vmatpush.msra.mxu0 %v974
    %1003 = vmatpush.msra.mxu0 %v973
    %1004 = vmatpush.msra.mxu0 %v972
    %1005 = vmatmul.f32.gmra.mxu0 %v987
    %v1006 = vpop.f32.mrf.mxu0
    %v1007 = vadd.f32 0.0, %v1006
    %1008 = vdwg.mxu0
    %v1010 = vsel %vm602, %v930, 0
    %1012 = vmatpush.msra.mxu0 0.0
    %1013 = vmatpush.msra.mxu0 0.0
    %1014 = vmatpush.msra.mxu0 %v945
    %1015 = vmatpush.msra.mxu0 %v944
    %1016 = vmatpush.msra.mxu0 %v943
    %1017 = vmatpush.msra.mxu0 %v942
    %1018 = vmatpush.msra.mxu0 %v941
    %1019 = vmatpush.msra.mxu0 %v940
    %1020 = vmatpush.msra.mxu0 %v939
    %1021 = vmatpush.msra.mxu0 %v938
    %1022 = vmatpush.msra.mxu0 %v937
    %1023 = vmatpush.msra.mxu0 %v936
    %1024 = vmatpush.msra.mxu0 %v935
    %1025 = vmatpush.msra.mxu0 %v934
    %1026 = vmatpush.msra.mxu0 %v933
    %1027 = vmatpush.msra.mxu0 %v932
    %1028 = vmatmul.f32.gmra.mxu0 %v1010
    %v1029 = vpop.f32.mrf.mxu0
    %v1030 = vadd.f32 %v1007, %v1029
    %1031 = vdwg.mxu0
    %s1032 = scalar_lea.vmem %s25, 16
    %v1033 = vld [vmem:[%s1032] sm:$0x3f]
    %v1035 = vsel %vm904, %v1033, 0
    %1037 = vmatpush.msra.mxu0 0.0
    %1038 = vmatpush.msra.mxu0 0.0
    %1039 = vmatpush.msra.mxu0 0.0
    %1040 = vmatpush.msra.mxu0 0.0
    %1041 = vmatpush.msra.mxu0 0.0
    %1042 = vmatpush.msra.mxu0 0.0
    %1043 = vmatpush.msra.mxu0 0.0
    %1044 = vmatpush.msra.mxu0 0.0
    %1045 = vmatpush.msra.mxu0 0.0
    %1046 = vmatpush.msra.mxu0 0.0
    %1047 = vmatpush.msra.mxu0 0.0
    %1048 = vmatpush.msra.mxu0 0.0
    %1049 = vmatpush.msra.mxu0 0.0
    %1050 = vmatpush.msra.mxu0 0.0
    %1051 = vmatpush.msra.mxu0 %v910
    %1052 = vmatpush.msra.mxu0 %v901
    %1053 = vmatmul.f32.gmra.mxu0 %v1035
    %v1054 = vpop.f32.mrf.mxu0
    %v1055 = vadd.f32 0.0, %v1054
    %1056 = vdwg.mxu0
    %s1057 = scalar_lea.vmem %s27, 224
    %v1058 = vld [vmem:[%s1057] sm:$0xff]
    %v1059 = vld [vmem:[%s1057 + $0x8] sm:$0xff]
    %v1060 = vld [vmem:[%s1057 + $0x10] sm:$0xff]
    %v1061 = vld [vmem:[%s1057 + $0x18] sm:$0xff]
    %v1062 = vld [vmem:[%s1057 + $0x20] sm:$0xff]
    %v1063 = vld [vmem:[%s1057 + $0x28] sm:$0xff]
    %v1064 = vld [vmem:[%s1057 + $0x30] sm:$0xff]
    %v1065 = vld [vmem:[%s1057 + $0x38] sm:$0xff]
    %v1066 = vld [vmem:[%s1057 + $0x40] sm:$0xff]
    %v1067 = vld [vmem:[%s1057 + $0x48] sm:$0xff]
    %v1068 = vld [vmem:[%s1057 + $0x50] sm:$0xff]
    %v1069 = vld [vmem:[%s1057 + $0x58] sm:$0xff]
    %v1070 = vld [vmem:[%s1057 + $0x60] sm:$0xff]
    %v1071 = vld [vmem:[%s1057 + $0x68] sm:$0xff]
    %v1073 = vsel %vm602, %v1055, 0
    %1075 = vmatpush.msra.mxu0 0.0
    %1076 = vmatpush.msra.mxu0 0.0
    %1077 = vmatpush.msra.mxu0 %v1071
    %1078 = vmatpush.msra.mxu0 %v1070
    %1079 = vmatpush.msra.mxu0 %v1069
    %1080 = vmatpush.msra.mxu0 %v1068
    %1081 = vmatpush.msra.mxu0 %v1067
    %1082 = vmatpush.msra.mxu0 %v1066
    %1083 = vmatpush.msra.mxu0 %v1065
    %1084 = vmatpush.msra.mxu0 %v1064
    %1085 = vmatpush.msra.mxu0 %v1063
    %1086 = vmatpush.msra.mxu0 %v1062
    %1087 = vmatpush.msra.mxu0 %v1061
    %1088 = vmatpush.msra.mxu0 %v1060
    %1089 = vmatpush.msra.mxu0 %v1059
    %1090 = vmatpush.msra.mxu0 %v1058
    %1091 = vmatmul.f32.gmra.mxu0 %v1073
    %v1092 = vpop.f32.mrf.mxu0
    %v1093 = vadd.f32 0.0, %v1092
    %1094 = vdwg.mxu0
    %v1095 = vadd.f32 %v1030, %v1093
    %v1096 = vld [vmem:[%s29] sm:$0x1]
    %v1098 = vperm.slane %v1096, 0
    %v1100 = vadd.f32 %v1095, %v1098
    %v1101 = vmax.f32 %v1100, 0.0
    %v1102 = vld [vmem:[%s31] sm:$0x3]
    %vm1103 = vcmask 48128
    %v1105 = vsel %vm1103, %v1102, 0
    %v1108 = vsel %vm908, %v1101, 0
    %1110 = vmatpush.msra.mxu0 0.0
    %1111 = vmatpush.msra.mxu0 0.0
    %1112 = vmatpush.msra.mxu0 0.0
    %1113 = vmatpush.msra.mxu0 0.0
    %1114 = vmatpush.msra.mxu0 0.0
    %1115 = vmatpush.msra.mxu0 0.0
    %1116 = vmatpush.msra.mxu0 0.0
    %1117 = vmatpush.msra.mxu0 0.0
    %1118 = vmatpush.msra.mxu0 0.0
    %1119 = vmatpush.msra.mxu0 0.0
    %1120 = vmatpush.msra.mxu0 0.0
    %1121 = vmatpush.msra.mxu0 0.0
    %1122 = vmatpush.msra.mxu0 0.0
    %1123 = vmatpush.msra.mxu0 0.0
    %1124 = vmatpush.msra.mxu0 0.0
    %1125 = vmatpush.msra.mxu0 %v1108
    %1126 = vmatmul.f32.gmra.mxu0 %v1105
    %v1127 = vpop.f32.mrf.mxu0
    %v1128 = vadd.f32 0.0, %v1127
    %1129 = vdwg.mxu0
    %v1130 = vld [vmem:[%s33] sm:$0xff]
    %v1131 = vld [vmem:[%s33 + $0x8] sm:$0xff]
    %v1132 = vld [vmem:[%s33 + $0x10] sm:$0xff]
    %v1133 = vld [vmem:[%s33 + $0x18] sm:$0xff]
    %v1134 = vld [vmem:[%s33 + $0x20] sm:$0xff]
    %v1135 = vld [vmem:[%s33 + $0x28] sm:$0xff]
    %v1136 = vld [vmem:[%s33 + $0x30] sm:$0xff]
    %v1137 = vld [vmem:[%s33 + $0x38] sm:$0xff]
    %v1138 = vld [vmem:[%s33 + $0x40] sm:$0xff]
    %v1139 = vld [vmem:[%s33 + $0x48] sm:$0xff]
    %v1140 = vld [vmem:[%s33 + $0x50] sm:$0xff]
    %v1141 = vld [vmem:[%s33 + $0x58] sm:$0xff]
    %s1142 = scalar_lea.vmem %s31, 2
    %v1143 = vld [vmem:[%s1142] sm:$0x3]
    %v1145 = vsel %vm1103, %v1143, 0
    %1147 = vmatpush.msra.mxu0 0.0
    %1148 = vmatpush.msra.mxu0 0.0
    %1149 = vmatpush.msra.mxu0 0.0
    %1150 = vmatpush.msra.mxu0 0.0
    %1151 = vmatpush.msra.mxu0 0.0
    %1152 = vmatpush.msra.mxu0 0.0
    %1153 = vmatpush.msra.mxu0 0.0
    %1154 = vmatpush.msra.mxu0 0.0
    %1155 = vmatpush.msra.mxu0 0.0
    %1156 = vmatpush.msra.mxu0 0.0
    %1157 = vmatpush.msra.mxu0 0.0
    %1158 = vmatpush.msra.mxu0 0.0
    %1159 = vmatpush.msra.mxu0 0.0
    %1160 = vmatpush.msra.mxu0 0.0
    %1161 = vmatpush.msra.mxu0 0.0
    %1162 = vmatpush.msra.mxu0 %v1108
    %1163 = vmatmul.f32.gmra.mxu0 %v1145
    %v1164 = vpop.f32.mrf.mxu0
    %v1165 = vadd.f32 0.0, %v1164
    %1166 = vdwg.mxu0
    %s1167 = scalar_lea.vmem %s33, 96
    %v1168 = vld [vmem:[%s1167] sm:$0xff]
    %v1169 = vld [vmem:[%s1167 + $0x8] sm:$0xff]
    %v1170 = vld [vmem:[%s1167 + $0x10] sm:$0xff]
    %v1171 = vld [vmem:[%s1167 + $0x18] sm:$0xff]
    %v1172 = vld [vmem:[%s1167 + $0x20] sm:$0xff]
    %v1173 = vld [vmem:[%s1167 + $0x28] sm:$0xff]
    %v1174 = vld [vmem:[%s1167 + $0x30] sm:$0xff]
    %v1175 = vld [vmem:[%s1167 + $0x38] sm:$0xff]
    %v1176 = vld [vmem:[%s1167 + $0x40] sm:$0xff]
    %v1177 = vld [vmem:[%s1167 + $0x48] sm:$0xff]
    %v1178 = vld [vmem:[%s1167 + $0x50] sm:$0xff]
    %v1179 = vld [vmem:[%s1167 + $0x58] sm:$0xff]
    %vm1180 = vcmask 785408
    %v1182 = vsel %vm1180, %v1165, 0
    %1184 = vmatpush.msra.mxu0 0.0
    %1185 = vmatpush.msra.mxu0 0.0
    %1186 = vmatpush.msra.mxu0 0.0
    %1187 = vmatpush.msra.mxu0 0.0
    %1188 = vmatpush.msra.mxu0 %v1179
    %1189 = vmatpush.msra.mxu0 %v1178
    %1190 = vmatpush.msra.mxu0 %v1177
    %1191 = vmatpush.msra.mxu0 %v1176
    %1192 = vmatpush.msra.mxu0 %v1175
    %1193 = vmatpush.msra.mxu0 %v1174
    %1194 = vmatpush.msra.mxu0 %v1173
    %1195 = vmatpush.msra.mxu0 %v1172
    %1196 = vmatpush.msra.mxu0 %v1171
    %1197 = vmatpush.msra.mxu0 %v1170
    %1198 = vmatpush.msra.mxu0 %v1169
    %1199 = vmatpush.msra.mxu0 %v1168
    %1200 = vmatmul.f32.gmra.mxu0 %v1182
    %v1201 = vpop.f32.mrf.mxu0
    %v1202 = vadd.f32 0.0, %v1201
    %1203 = vdwg.mxu0
    %v1205 = vsel %vm1180, %v1128, 0
    %1207 = vmatpush.msra.mxu0 0.0
    %1208 = vmatpush.msra.mxu0 0.0
    %1209 = vmatpush.msra.mxu0 0.0
    %1210 = vmatpush.msra.mxu0 0.0
    %1211 = vmatpush.msra.mxu0 %v1141
    %1212 = vmatpush.msra.mxu0 %v1140
    %1213 = vmatpush.msra.mxu0 %v1139
    %1214 = vmatpush.msra.mxu0 %v1138
    %1215 = vmatpush.msra.mxu0 %v1137
    %1216 = vmatpush.msra.mxu0 %v1136
    %1217 = vmatpush.msra.mxu0 %v1135
    %1218 = vmatpush.msra.mxu0 %v1134
    %1219 = vmatpush.msra.mxu0 %v1133
    %1220 = vmatpush.msra.mxu0 %v1132
    %1221 = vmatpush.msra.mxu0 %v1131
    %1222 = vmatpush.msra.mxu0 %v1130
    %1223 = vmatmul.f32.gmra.mxu0 %v1205
    %v1224 = vpop.f32.mrf.mxu0
    %v1225 = vadd.f32 %v1202, %v1224
    %1226 = vdwg.mxu0
    %s1227 = scalar_lea.vmem %s31, 4
    %v1228 = vld [vmem:[%s1227] sm:$0x3]
    %v1230 = vsel %vm1103, %v1228, 0
    %1232 = vmatpush.msra.mxu0 0.0
    %1233 = vmatpush.msra.mxu0 0.0
    %1234 = vmatpush.msra.mxu0 0.0
    %1235 = vmatpush.msra.mxu0 0.0
    %1236 = vmatpush.msra.mxu0 0.0
    %1237 = vmatpush.msra.mxu0 0.0
    %1238 = vmatpush.msra.mxu0 0.0
    %1239 = vmatpush.msra.mxu0 0.0
    %1240 = vmatpush.msra.mxu0 0.0
    %1241 = vmatpush.msra.mxu0 0.0
    %1242 = vmatpush.msra.mxu0 0.0
    %1243 = vmatpush.msra.mxu0 0.0
    %1244 = vmatpush.msra.mxu0 0.0
    %1245 = vmatpush.msra.mxu0 0.0
    %1246 = vmatpush.msra.mxu0 0.0
    %1247 = vmatpush.msra.mxu0 %v1108
    %1248 = vmatmul.f32.gmra.mxu0 %v1230
    %v1249 = vpop.f32.mrf.mxu0
    %v1250 = vadd.f32 0.0, %v1249
    %1251 = vdwg.mxu0
    %s1252 = scalar_lea.vmem %s33, 192
    %v1253 = vld [vmem:[%s1252] sm:$0xff]
    %v1254 = vld [vmem:[%s1252 + $0x8] sm:$0xff]
    %v1255 = vld [vmem:[%s1252 + $0x10] sm:$0xff]
    %v1256 = vld [vmem:[%s1252 + $0x18] sm:$0xff]
    %v1257 = vld [vmem:[%s1252 + $0x20] sm:$0xff]
    %v1258 = vld [vmem:[%s1252 + $0x28] sm:$0xff]
    %v1259 = vld [vmem:[%s1252 + $0x30] sm:$0xff]
    %v1260 = vld [vmem:[%s1252 + $0x38] sm:$0xff]
    %v1261 = vld [vmem:[%s1252 + $0x40] sm:$0xff]
    %v1262 = vld [vmem:[%s1252 + $0x48] sm:$0xff]
    %v1263 = vld [vmem:[%s1252 + $0x50] sm:$0xff]
    %v1264 = vld [vmem:[%s1252 + $0x58] sm:$0xff]
    %v1266 = vsel %vm1180, %v1250, 0
    %1268 = vmatpush.msra.mxu0 0.0
    %1269 = vmatpush.msra.mxu0 0.0
    %1270 = vmatpush.msra.mxu0 0.0
    %1271 = vmatpush.msra.mxu0 0.0
    %1272 = vmatpush.msra.mxu0 %v1264
    %1273 = vmatpush.msra.mxu0 %v1263
    %1274 = vmatpush.msra.mxu0 %v1262
    %1275 = vmatpush.msra.mxu0 %v1261
    %1276 = vmatpush.msra.mxu0 %v1260
    %1277 = vmatpush.msra.mxu0 %v1259
    %1278 = vmatpush.msra.mxu0 %v1258
    %1279 = vmatpush.msra.mxu0 %v1257
    %1280 = vmatpush.msra.mxu0 %v1256
    %1281 = vmatpush.msra.mxu0 %v1255
    %1282 = vmatpush.msra.mxu0 %v1254
    %1283 = vmatpush.msra.mxu0 %v1253
    %1284 = vmatmul.f32.gmra.mxu0 %v1266
    %v1285 = vpop.f32.mrf.mxu0
    %v1286 = vadd.f32 0.0, %v1285
    %1287 = vdwg.mxu0
    %v1288 = vadd.f32 %v1225, %v1286
    %v1289 = vld [vmem:[%s35] sm:$0x1]
    %v1291 = vperm.slane %v1289, 0
    %v1293 = vadd.f32 %v1288, %v1291
    %v1294 = vmax.f32 %v1293, 0.0
    %v1295 = vld [vmem:[%s37] sm:$0xff]
    %v1296 = vld [vmem:[%s37 + $0x8] sm:$0xff]
    %v1297 = vld [vmem:[%s37 + $0x10] sm:$0xff]
    %v1298 = vld [vmem:[%s37 + $0x18] sm:$0xff]
    %v1299 = vld [vmem:[%s37 + $0x20] sm:$0xff]
    %v1300 = vld [vmem:[%s37 + $0x28] sm:$0xff]
    %v1301 = vld [vmem:[%s37 + $0x30] sm:$0xff]
    %v1302 = vld [vmem:[%s37 + $0x38] sm:$0xff]
    %v1303 = vld [vmem:[%s37 + $0x40] sm:$0xff]
    %v1304 = vld [vmem:[%s37 + $0x48] sm:$0xff]
    %v1305 = vld [vmem:[%s37 + $0x50] sm:$0xff]
    %v1306 = vld [vmem:[%s37 + $0x58] sm:$0xff]
    %v1307 = vld [vmem:[%s37 + $0x60] sm:$0xff]
    %v1308 = vld [vmem:[%s37 + $0x68] sm:$0xff]
    %v1309 = vld [vmem:[%s37 + $0x70] sm:$0xff]
    %v1310 = vld [vmem:[%s37 + $0x78] sm:$0xff]
    %v1311 = vld [vmem:[%s39] sm:$0x1]
    %v1312 = vld [vmem:[%s41] sm:$0xff]
    %v1313 = vld [vmem:[%s41 + $0x8] sm:$0xff]
    %v1314 = vld [vmem:[%s41 + $0x10] sm:$0xff]
    %v1315 = vld [vmem:[%s41 + $0x18] sm:$0xff]
    %v1316 = vld [vmem:[%s41 + $0x20] sm:$0xff]
    %v1317 = vld [vmem:[%s41 + $0x28] sm:$0xff]
    %v1318 = vld [vmem:[%s41 + $0x30] sm:$0xff]
    %v1319 = vld [vmem:[%s41 + $0x38] sm:$0xff]
    %v1320 = vld [vmem:[%s41 + $0x40] sm:$0xff]
    %v1321 = vld [vmem:[%s41 + $0x48] sm:$0xff]
    %v1322 = vld [vmem:[%s41 + $0x50] sm:$0xff]
    %v1323 = vld [vmem:[%s41 + $0x58] sm:$0xff]
    %v1324 = vld [vmem:[%s41 + $0x60] sm:$0xff]
    %v1325 = vld [vmem:[%s41 + $0x68] sm:$0xff]
    %v1326 = vld [vmem:[%s41 + $0x70] sm:$0xff]
    %v1327 = vld [vmem:[%s41 + $0x78] sm:$0xff]
    %v1328 = vld [vmem:[%s43] sm:$0x1]
    %v1330 = vperm.slane %v1311, 0
    %1332 = vmatpush.msra.mxu0 %v1310
    %1333 = vmatpush.msra.mxu0 %v1309
    %1334 = vmatpush.msra.mxu0 %v1308
    %1335 = vmatpush.msra.mxu0 %v1307
    %1336 = vmatpush.msra.mxu0 %v1306
    %1337 = vmatpush.msra.mxu0 %v1305
    %1338 = vmatpush.msra.mxu0 %v1304
    %1339 = vmatpush.msra.mxu0 %v1303
    %1340 = vmatpush.msra.mxu0 %v1302
    %1341 = vmatpush.msra.mxu0 %v1301
    %1342 = vmatpush.msra.mxu0 %v1300
    %1343 = vmatpush.msra.mxu0 %v1299
    %1344 = vmatpush.msra.mxu0 %v1298
    %1345 = vmatpush.msra.mxu0 %v1297
    %1346 = vmatpush.msra.mxu0 %v1296
    %1347 = vmatpush.msra.mxu0 %v1295
    %1348 = vmatmul.f32.gmra.mxu0 %v1294
    %v1349 = vpop.f32.mrf.mxu0
    %v1350 = vadd.f32 %v1330, %v1349
    %1351 = vdwg.mxu0
    %v1353 = vperm.slane %v1328, 0
    %1355 = vmatpush.msra.mxu0 %v1327
    %1356 = vmatpush.msra.mxu0 %v1326
    %1357 = vmatpush.msra.mxu0 %v1325
    %1358 = vmatpush.msra.mxu0 %v1324
    %1359 = vmatpush.msra.mxu0 %v1323
    %1360 = vmatpush.msra.mxu0 %v1322
    %1361 = vmatpush.msra.mxu0 %v1321
    %1362 = vmatpush.msra.mxu0 %v1320
    %1363 = vmatpush.msra.mxu0 %v1319
    %1364 = vmatpush.msra.mxu0 %v1318
    %1365 = vmatpush.msra.mxu0 %v1317
    %1366 = vmatpush.msra.mxu0 %v1316
    %1367 = vmatpush.msra.mxu0 %v1315
    %1368 = vmatpush.msra.mxu0 %v1314
    %1369 = vmatpush.msra.mxu0 %v1313
    %1370 = vmatpush.msra.mxu0 %v1312
    %1371 = vmatmul.f32.gmra.mxu0 %v1294
    %v1372 = vpop.f32.mrf.mxu0
    %v1373 = vadd.f32 %v1353, %v1372
    %1374 = vdwg.mxu0
    %v1375 = vmul.f32 %v1373, 1.442695
    %v1376 = vpow.pop %v1375
    %v1377 = vmul.f32 %v1376, %v204
    %v1378 = vadd.f32 %v1350, %v1377
    %v1379 = vld [vmem:[%s45] sm:$0xff]
    %v1380 = vld [vmem:[%s47] sm:$0x1]
    %v1382 = vperm.slane %v1380, 0
    %vm1384 = vcmask 64512
    %v1386 = vsel %vm1384, %v1378, 0
    %1388 = vmatpush.msra.mxu0 0.0
    %1389 = vmatpush.msra.mxu0 0.0
    %1390 = vmatpush.msra.mxu0 0.0
    %1391 = vmatpush.msra.mxu0 0.0
    %1392 = vmatpush.msra.mxu0 0.0
    %1393 = vmatpush.msra.mxu0 0.0
    %1394 = vmatpush.msra.mxu0 0.0
    %1395 = vmatpush.msra.mxu0 0.0
    %1396 = vmatpush.msra.mxu0 0.0
    %1397 = vmatpush.msra.mxu0 0.0
    %1398 = vmatpush.msra.mxu0 0.0
    %1399 = vmatpush.msra.mxu0 0.0
    %1400 = vmatpush.msra.mxu0 0.0
    %1401 = vmatpush.msra.mxu0 0.0
    %1402 = vmatpush.msra.mxu0 0.0
    %1403 = vmatpush.msra.mxu0 %v1379
    %1404 = vmatmul.f32.gmra.mxu0 %v1386
    %v1405 = vpop.f32.mrf.mxu0
    %v1406 = vadd.f32 %v1382, %v1405
    %1407 = vdwg.mxu0
    %v1408 = vmax.f32 %v1406, 0.0
    %v1409 = vld [vmem:[%s49] sm:$0x3f]
    %vm1410 = vcmask 15360
    %v1412 = vsel %vm1410, %v1409, 0
    %vm1414 = vcmask 1041408
    %v1416 = vsel %vm1414, %v1408, 0
    %1418 = vmatpush.msra.mxu0 0.0
    %1419 = vmatpush.msra.mxu0 0.0
    %1420 = vmatpush.msra.mxu0 0.0
    %1421 = vmatpush.msra.mxu0 0.0
    %1422 = vmatpush.msra.mxu0 0.0
    %1423 = vmatpush.msra.mxu0 0.0
    %1424 = vmatpush.msra.mxu0 0.0
    %1425 = vmatpush.msra.mxu0 0.0
    %1426 = vmatpush.msra.mxu0 0.0
    %1427 = vmatpush.msra.mxu0 0.0
    %1428 = vmatpush.msra.mxu0 0.0
    %1429 = vmatpush.msra.mxu0 0.0
    %1430 = vmatpush.msra.mxu0 0.0
    %1431 = vmatpush.msra.mxu0 0.0
    %1432 = vmatpush.msra.mxu0 0.0
    %1433 = vmatpush.msra.mxu0 %v1416
    %1434 = vmatmul.f32.gmra.mxu0 %v1412
    %v1435 = vpop.f32.mrf.mxu0
    %v1436 = vadd.f32 0.0, %v1435
    %1437 = vdwg.mxu0
    %v1438 = vld [vmem:[%s51] sm:$0xff]
    %v1439 = vld [vmem:[%s51 + $0x8] sm:$0xff]
    %v1440 = vld [vmem:[%s51 + $0x10] sm:$0xff]
    %v1441 = vld [vmem:[%s51 + $0x18] sm:$0xff]
    %v1442 = vld [vmem:[%s51 + $0x20] sm:$0xff]
    %v1443 = vld [vmem:[%s51 + $0x28] sm:$0xff]
    %v1444 = vld [vmem:[%s51 + $0x30] sm:$0xff]
    %v1445 = vld [vmem:[%s51 + $0x38] sm:$0xff]
    %v1446 = vld [vmem:[%s51 + $0x40] sm:$0xff]
    %v1447 = vld [vmem:[%s51 + $0x48] sm:$0xff]
    %v1448 = vld [vmem:[%s51 + $0x50] sm:$0xff]
    %v1449 = vld [vmem:[%s51 + $0x58] sm:$0xff]
    %v1450 = vld [vmem:[%s51 + $0x60] sm:$0xff]
    %v1451 = vld [vmem:[%s51 + $0x68] sm:$0xff]
    %v1452 = vld [vmem:[%s51 + $0x70] sm:$0xff]
    %v1453 = vld [vmem:[%s51 + $0x78] sm:$0xff]
    %s1454 = scalar_lea.vmem %s49, 8
    %v1455 = vld [vmem:[%s1454] sm:$0x3f]
    %v1457 = vsel %vm1410, %v1455, 0
    %1459 = vmatpush.msra.mxu0 0.0
    %1460 = vmatpush.msra.mxu0 0.0
    %1461 = vmatpush.msra.mxu0 0.0
    %1462 = vmatpush.msra.mxu0 0.0
    %1463 = vmatpush.msra.mxu0 0.0
    %1464 = vmatpush.msra.mxu0 0.0
    %1465 = vmatpush.msra.mxu0 0.0
    %1466 = vmatpush.msra.mxu0 0.0
    %1467 = vmatpush.msra.mxu0 0.0
    %1468 = vmatpush.msra.mxu0 0.0
    %1469 = vmatpush.msra.mxu0 0.0
    %1470 = vmatpush.msra.mxu0 0.0
    %1471 = vmatpush.msra.mxu0 0.0
    %1472 = vmatpush.msra.mxu0 0.0
    %1473 = vmatpush.msra.mxu0 0.0
    %1474 = vmatpush.msra.mxu0 %v1416
    %1475 = vmatmul.f32.gmra.mxu0 %v1457
    %v1476 = vpop.f32.mrf.mxu0
    %v1477 = vadd.f32 0.0, %v1476
    %1478 = vdwg.mxu0
    %s1479 = scalar_lea.vmem %s51, 128
    %v1480 = vld [vmem:[%s1479] sm:$0xff]
    %v1481 = vld [vmem:[%s1479 + $0x8] sm:$0xff]
    %v1482 = vld [vmem:[%s1479 + $0x10] sm:$0xff]
    %v1483 = vld [vmem:[%s1479 + $0x18] sm:$0xff]
    %v1484 = vld [vmem:[%s1479 + $0x20] sm:$0xff]
    %v1485 = vld [vmem:[%s1479 + $0x28] sm:$0xff]
    %v1486 = vld [vmem:[%s1479 + $0x30] sm:$0xff]
    %v1487 = vld [vmem:[%s1479 + $0x38] sm:$0xff]
    %v1488 = vld [vmem:[%s1479 + $0x40] sm:$0xff]
    %v1489 = vld [vmem:[%s1479 + $0x48] sm:$0xff]
    %v1490 = vld [vmem:[%s1479 + $0x50] sm:$0xff]
    %v1491 = vld [vmem:[%s1479 + $0x58] sm:$0xff]
    %v1492 = vld [vmem:[%s1479 + $0x60] sm:$0xff]
    %v1493 = vld [vmem:[%s1479 + $0x68] sm:$0xff]
    %v1494 = vld [vmem:[%s1479 + $0x70] sm:$0xff]
    %v1495 = vld [vmem:[%s1479 + $0x78] sm:$0xff]
    %1496 = vmatpush.msra.mxu0 %v1495
    %1497 = vmatpush.msra.mxu0 %v1494
    %1498 = vmatpush.msra.mxu0 %v1493
    %1499 = vmatpush.msra.mxu0 %v1492
    %1500 = vmatpush.msra.mxu0 %v1491
    %1501 = vmatpush.msra.mxu0 %v1490
    %1502 = vmatpush.msra.mxu0 %v1489
    %1503 = vmatpush.msra.mxu0 %v1488
    %1504 = vmatpush.msra.mxu0 %v1487
    %1505 = vmatpush.msra.mxu0 %v1486
    %1506 = vmatpush.msra.mxu0 %v1485
    %1507 = vmatpush.msra.mxu0 %v1484
    %1508 = vmatpush.msra.mxu0 %v1483
    %1509 = vmatpush.msra.mxu0 %v1482
    %1510 = vmatpush.msra.mxu0 %v1481
    %1511 = vmatpush.msra.mxu0 %v1480
    %1512 = vmatmul.f32.gmra.mxu0 %v1477
    %v1513 = vpop.f32.mrf.mxu0
    %v1514 = vadd.f32 0.0, %v1513
    %1515 = vdwg.mxu0
    %1516 = vmatpush.msra.mxu0 %v1453
    %1517 = vmatpush.msra.mxu0 %v1452
    %1518 = vmatpush.msra.mxu0 %v1451
    %1519 = vmatpush.msra.mxu0 %v1450
    %1520 = vmatpush.msra.mxu0 %v1449
    %1521 = vmatpush.msra.mxu0 %v1448
    %1522 = vmatpush.msra.mxu0 %v1447
    %1523 = vmatpush.msra.mxu0 %v1446
    %1524 = vmatpush.msra.mxu0 %v1445
    %1525 = vmatpush.msra.mxu0 %v1444
    %1526 = vmatpush.msra.mxu0 %v1443
    %1527 = vmatpush.msra.mxu0 %v1442
    %1528 = vmatpush.msra.mxu0 %v1441
    %1529 = vmatpush.msra.mxu0 %v1440
    %1530 = vmatpush.msra.mxu0 %v1439
    %1531 = vmatpush.msra.mxu0 %v1438
    %1532 = vmatmul.f32.gmra.mxu0 %v1436
    %v1533 = vpop.f32.mrf.mxu0
    %v1534 = vadd.f32 %v1514, %v1533
    %1535 = vdwg.mxu0
    %s1536 = scalar_lea.vmem %s49, 16
    %v1537 = vld [vmem:[%s1536] sm:$0x3f]
    %v1539 = vsel %vm1410, %v1537, 0
    %1541 = vmatpush.msra.mxu0 0.0
    %1542 = vmatpush.msra.mxu0 0.0
    %1543 = vmatpush.msra.mxu0 0.0
    %1544 = vmatpush.msra.mxu0 0.0
    %1545 = vmatpush.msra.mxu0 0.0
    %1546 = vmatpush.msra.mxu0 0.0
    %1547 = vmatpush.msra.mxu0 0.0
    %1548 = vmatpush.msra.mxu0 0.0
    %1549 = vmatpush.msra.mxu0 0.0
    %1550 = vmatpush.msra.mxu0 0.0
    %1551 = vmatpush.msra.mxu0 0.0
    %1552 = vmatpush.msra.mxu0 0.0
    %1553 = vmatpush.msra.mxu0 0.0
    %1554 = vmatpush.msra.mxu0 0.0
    %1555 = vmatpush.msra.mxu0 0.0
    %1556 = vmatpush.msra.mxu0 %v1416
    %1557 = vmatmul.f32.gmra.mxu0 %v1539
    %v1558 = vpop.f32.mrf.mxu0
    %v1559 = vadd.f32 0.0, %v1558
    %1560 = vdwg.mxu0
    %s1561 = scalar_lea.vmem %s51, 256
    %v1562 = vld [vmem:[%s1561] sm:$0xff]
    %v1563 = vld [vmem:[%s1561 + $0x8] sm:$0xff]
    %v1564 = vld [vmem:[%s1561 + $0x10] sm:$0xff]
    %v1565 = vld [vmem:[%s1561 + $0x18] sm:$0xff]
    %v1566 = vld [vmem:[%s1561 + $0x20] sm:$0xff]
    %v1567 = vld [vmem:[%s1561 + $0x28] sm:$0xff]
    %v1568 = vld [vmem:[%s1561 + $0x30] sm:$0xff]
    %v1569 = vld [vmem:[%s1561 + $0x38] sm:$0xff]
    %v1570 = vld [vmem:[%s1561 + $0x40] sm:$0xff]
    %v1571 = vld [vmem:[%s1561 + $0x48] sm:$0xff]
    %v1572 = vld [vmem:[%s1561 + $0x50] sm:$0xff]
    %v1573 = vld [vmem:[%s1561 + $0x58] sm:$0xff]
    %v1574 = vld [vmem:[%s1561 + $0x60] sm:$0xff]
    %v1575 = vld [vmem:[%s1561 + $0x68] sm:$0xff]
    %v1576 = vld [vmem:[%s1561 + $0x70] sm:$0xff]
    %v1577 = vld [vmem:[%s1561 + $0x78] sm:$0xff]
    %1578 = vmatpush.msra.mxu0 %v1577
    %1579 = vmatpush.msra.mxu0 %v1576
    %1580 = vmatpush.msra.mxu0 %v1575
    %1581 = vmatpush.msra.mxu0 %v1574
    %1582 = vmatpush.msra.mxu0 %v1573
    %1583 = vmatpush.msra.mxu0 %v1572
    %1584 = vmatpush.msra.mxu0 %v1571
    %1585 = vmatpush.msra.mxu0 %v1570
    %1586 = vmatpush.msra.mxu0 %v1569
    %1587 = vmatpush.msra.mxu0 %v1568
    %1588 = vmatpush.msra.mxu0 %v1567
    %1589 = vmatpush.msra.mxu0 %v1566
    %1590 = vmatpush.msra.mxu0 %v1565
    %1591 = vmatpush.msra.mxu0 %v1564
    %1592 = vmatpush.msra.mxu0 %v1563
    %1593 = vmatpush.msra.mxu0 %v1562
    %1594 = vmatmul.f32.gmra.mxu0 %v1559
    %v1595 = vpop.f32.mrf.mxu0
    %v1596 = vadd.f32 0.0, %v1595
    %1597 = vdwg.mxu0
    %v1598 = vadd.f32 %v1534, %v1596
    %v1599 = vld [vmem:[%s53] sm:$0x3f]
    %v1600 = vadd.f32 %v1598, %v1599
    %v1601 = vmax.f32 %v1600, 0.0
    %v1602 = vld [vmem:[%s55] sm:$0xff]
    %v1603 = vld [vmem:[%s55 + $0x8] sm:$0x3f]
    %v1605 = vsel %vm1103, %v1602, 0
    %v1608 = vsel %vm1103, %v1603, 0
    %v1611 = vsel %vm908, %v1601, 0
    %1613 = vmatpush.msra.mxu0 0.0
    %1614 = vmatpush.msra.mxu0 0.0
    %1615 = vmatpush.msra.mxu0 0.0
    %1616 = vmatpush.msra.mxu0 0.0
    %1617 = vmatpush.msra.mxu0 0.0
    %1618 = vmatpush.msra.mxu0 0.0
    %1619 = vmatpush.msra.mxu0 0.0
    %1620 = vmatpush.msra.mxu0 0.0
    %1621 = vmatpush.msra.mxu0 0.0
    %1622 = vmatpush.msra.mxu0 0.0
    %1623 = vmatpush.msra.mxu0 0.0
    %1624 = vmatpush.msra.mxu0 0.0
    %1625 = vmatpush.msra.mxu0 0.0
    %1626 = vmatpush.msra.mxu0 0.0
    %1627 = vmatpush.msra.mxu0 0.0
    %1628 = vmatpush.msra.mxu0 %v1611
    %1629 = vmatmul.f32.gmra.mxu0 %v1605
    %v1630 = vpop.f32.mrf.mxu0
    %v1631 = vadd.f32 0.0, %v1630
    %1632 = vmatmul.f32.gmra.mxu0 %v1608
    %v1633 = vpop.f32.mrf.mxu0
    %v1634 = vadd.f32 0.0, %v1633
    %1635 = vdwg.mxu0
    %v1636 = vld [vmem:[%s57] sm:$0xff]
    %v1637 = vld [vmem:[%s57 + $0x8] sm:$0xff]
    %v1638 = vld [vmem:[%s57 + $0x10] sm:$0xff]
    %v1639 = vld [vmem:[%s57 + $0x18] sm:$0xff]
    %v1640 = vld [vmem:[%s57 + $0x20] sm:$0xff]
    %v1641 = vld [vmem:[%s57 + $0x28] sm:$0xff]
    %v1642 = vld [vmem:[%s57 + $0x30] sm:$0xff]
    %v1643 = vld [vmem:[%s57 + $0x38] sm:$0xff]
    %v1644 = vld [vmem:[%s57 + $0x40] sm:$0xff]
    %v1645 = vld [vmem:[%s57 + $0x48] sm:$0xff]
    %v1646 = vld [vmem:[%s57 + $0x50] sm:$0xff]
    %v1647 = vld [vmem:[%s57 + $0x58] sm:$0xff]
    %s1648 = scalar_lea.vmem %s55, 16
    %v1649 = vld [vmem:[%s1648] sm:$0xff]
    %v1650 = vld [vmem:[%s1648 + $0x8] sm:$0x3f]
    %v1652 = vsel %vm1103, %v1649, 0
    %v1655 = vsel %vm1103, %v1650, 0
    %1657 = vmatpush.msra.mxu0 0.0
    %1658 = vmatpush.msra.mxu0 0.0
    %1659 = vmatpush.msra.mxu0 0.0
    %1660 = vmatpush.msra.mxu0 0.0
    %1661 = vmatpush.msra.mxu0 0.0
    %1662 = vmatpush.msra.mxu0 0.0
    %1663 = vmatpush.msra.mxu0 0.0
    %1664 = vmatpush.msra.mxu0 0.0
    %1665 = vmatpush.msra.mxu0 0.0
    %1666 = vmatpush.msra.mxu0 0.0
    %1667 = vmatpush.msra.mxu0 0.0
    %1668 = vmatpush.msra.mxu0 0.0
    %1669 = vmatpush.msra.mxu0 0.0
    %1670 = vmatpush.msra.mxu0 0.0
    %1671 = vmatpush.msra.mxu0 0.0
    %1672 = vmatpush.msra.mxu0 %v1611
    %1673 = vmatmul.f32.gmra.mxu0 %v1652
    %v1674 = vpop.f32.mrf.mxu0
    %v1675 = vadd.f32 0.0, %v1674
    %1676 = vmatmul.f32.gmra.mxu0 %v1655
    %v1677 = vpop.f32.mrf.mxu0
    %v1678 = vadd.f32 0.0, %v1677
    %1679 = vdwg.mxu0
    %s1680 = scalar_lea.vmem %s57, 96
    %v1681 = vld [vmem:[%s1680] sm:$0xff]
    %v1682 = vld [vmem:[%s1680 + $0x8] sm:$0xff]
    %v1683 = vld [vmem:[%s1680 + $0x10] sm:$0xff]
    %v1684 = vld [vmem:[%s1680 + $0x18] sm:$0xff]
    %v1685 = vld [vmem:[%s1680 + $0x20] sm:$0xff]
    %v1686 = vld [vmem:[%s1680 + $0x28] sm:$0xff]
    %v1687 = vld [vmem:[%s1680 + $0x30] sm:$0xff]
    %v1688 = vld [vmem:[%s1680 + $0x38] sm:$0xff]
    %v1689 = vld [vmem:[%s1680 + $0x40] sm:$0xff]
    %v1690 = vld [vmem:[%s1680 + $0x48] sm:$0xff]
    %v1691 = vld [vmem:[%s1680 + $0x50] sm:$0xff]
    %v1692 = vld [vmem:[%s1680 + $0x58] sm:$0xff]
    %v1694 = vsel %vm1180, %v1675, 0
    %v1697 = vsel %vm1180, %v1678, 0
    %1699 = vmatpush.msra.mxu0 0.0
    %1700 = vmatpush.msra.mxu0 0.0
    %1701 = vmatpush.msra.mxu0 0.0
    %1702 = vmatpush.msra.mxu0 0.0
    %1703 = vmatpush.msra.mxu0 %v1692
    %1704 = vmatpush.msra.mxu0 %v1691
    %1705 = vmatpush.msra.mxu0 %v1690
    %1706 = vmatpush.msra.mxu0 %v1689
    %1707 = vmatpush.msra.mxu0 %v1688
    %1708 = vmatpush.msra.mxu0 %v1687
    %1709 = vmatpush.msra.mxu0 %v1686
    %1710 = vmatpush.msra.mxu0 %v1685
    %1711 = vmatpush.msra.mxu0 %v1684
    %1712 = vmatpush.msra.mxu0 %v1683
    %1713 = vmatpush.msra.mxu0 %v1682
    %1714 = vmatpush.msra.mxu0 %v1681
    %1715 = vmatmul.f32.gmra.mxu0 %v1694
    %v1716 = vpop.f32.mrf.mxu0
    %v1717 = vadd.f32 0.0, %v1716
    %1718 = vmatmul.f32.gmra.mxu0 %v1697
    %v1719 = vpop.f32.mrf.mxu0
    %v1720 = vadd.f32 0.0, %v1719
    %1721 = vdwg.mxu0
    %v1723 = vsel %vm1180, %v1631, 0
    %v1726 = vsel %vm1180, %v1634, 0
    %1728 = vmatpush.msra.mxu0 0.0
    %1729 = vmatpush.msra.mxu0 0.0
    %1730 = vmatpush.msra.mxu0 0.0
    %1731 = vmatpush.msra.mxu0 0.0
    %1732 = vmatpush.msra.mxu0 %v1647
    %1733 = vmatpush.msra.mxu0 %v1646
    %1734 = vmatpush.msra.mxu0 %v1645
    %1735 = vmatpush.msra.mxu0 %v1644
    %1736 = vmatpush.msra.mxu0 %v1643
    %1737 = vmatpush.msra.mxu0 %v1642
    %1738 = vmatpush.msra.mxu0 %v1641
    %1739 = vmatpush.msra.mxu0 %v1640
    %1740 = vmatpush.msra.mxu0 %v1639
    %1741 = vmatpush.msra.mxu0 %v1638
    %1742 = vmatpush.msra.mxu0 %v1637
    %1743 = vmatpush.msra.mxu0 %v1636
    %1744 = vmatmul.f32.gmra.mxu0 %v1723
    %v1745 = vpop.f32.mrf.mxu0
    %v1746 = vadd.f32 %v1717, %v1745
    %1747 = vmatmul.f32.gmra.mxu0 %v1726
    %v1748 = vpop.f32.mrf.mxu0
    %v1749 = vadd.f32 %v1720, %v1748
    %1750 = vdwg.mxu0
    %s1751 = scalar_lea.vmem %s55, 32
    %v1752 = vld [vmem:[%s1751] sm:$0xff]
    %v1753 = vld [vmem:[%s1751 + $0x8] sm:$0x3f]
    %v1755 = vsel %vm1103, %v1752, 0
    %v1758 = vsel %vm1103, %v1753, 0
    %1760 = vmatpush.msra.mxu0 0.0
    %1761 = vmatpush.msra.mxu0 0.0
    %1762 = vmatpush.msra.mxu0 0.0
    %1763 = vmatpush.msra.mxu0 0.0
    %1764 = vmatpush.msra.mxu0 0.0
    %1765 = vmatpush.msra.mxu0 0.0
    %1766 = vmatpush.msra.mxu0 0.0
    %1767 = vmatpush.msra.mxu0 0.0
    %1768 = vmatpush.msra.mxu0 0.0
    %1769 = vmatpush.msra.mxu0 0.0
    %1770 = vmatpush.msra.mxu0 0.0
    %1771 = vmatpush.msra.mxu0 0.0
    %1772 = vmatpush.msra.mxu0 0.0
    %1773 = vmatpush.msra.mxu0 0.0
    %1774 = vmatpush.msra.mxu0 0.0
    %1775 = vmatpush.msra.mxu0 %v1611
    %1776 = vmatmul.f32.gmra.mxu0 %v1755
    %v1777 = vpop.f32.mrf.mxu0
    %v1778 = vadd.f32 0.0, %v1777
    %1779 = vmatmul.f32.gmra.mxu0 %v1758
    %v1780 = vpop.f32.mrf.mxu0
    %v1781 = vadd.f32 0.0, %v1780
    %1782 = vdwg.mxu0
    %s1783 = scalar_lea.vmem %s57, 192
    %v1784 = vld [vmem:[%s1783] sm:$0xff]
    %v1785 = vld [vmem:[%s1783 + $0x8] sm:$0xff]
    %v1786 = vld [vmem:[%s1783 + $0x10] sm:$0xff]
    %v1787 = vld [vmem:[%s1783 + $0x18] sm:$0xff]
    %v1788 = vld [vmem:[%s1783 + $0x20] sm:$0xff]
    %v1789 = vld [vmem:[%s1783 + $0x28] sm:$0xff]
    %v1790 = vld [vmem:[%s1783 + $0x30] sm:$0xff]
    %v1791 = vld [vmem:[%s1783 + $0x38] sm:$0xff]
    %v1792 = vld [vmem:[%s1783 + $0x40] sm:$0xff]
    %v1793 = vld [vmem:[%s1783 + $0x48] sm:$0xff]
    %v1794 = vld [vmem:[%s1783 + $0x50] sm:$0xff]
    %v1795 = vld [vmem:[%s1783 + $0x58] sm:$0xff]
    %v1797 = vsel %vm1180, %v1778, 0
    %v1800 = vsel %vm1180, %v1781, 0
    %1802 = vmatpush.msra.mxu0 0.0
    %1803 = vmatpush.msra.mxu0 0.0
    %1804 = vmatpush.msra.mxu0 0.0
    %1805 = vmatpush.msra.mxu0 0.0
    %1806 = vmatpush.msra.mxu0 %v1795
    %1807 = vmatpush.msra.mxu0 %v1794
    %1808 = vmatpush.msra.mxu0 %v1793
    %1809 = vmatpush.msra.mxu0 %v1792
    %1810 = vmatpush.msra.mxu0 %v1791
    %1811 = vmatpush.msra.mxu0 %v1790
    %1812 = vmatpush.msra.mxu0 %v1789
    %1813 = vmatpush.msra.mxu0 %v1788
    %1814 = vmatpush.msra.mxu0 %v1787
    %1815 = vmatpush.msra.mxu0 %v1786
    %1816 = vmatpush.msra.mxu0 %v1785
    %1817 = vmatpush.msra.mxu0 %v1784
    %1818 = vmatmul.f32.gmra.mxu0 %v1797
    %v1819 = vpop.f32.mrf.mxu0
    %v1820 = vadd.f32 0.0, %v1819
    %1821 = vmatmul.f32.gmra.mxu0 %v1800
    %v1822 = vpop.f32.mrf.mxu0
    %v1823 = vadd.f32 0.0, %v1822
    %1824 = vdwg.mxu0
    %v1825 = vadd.f32 %v1746, %v1820
    %v1826 = vadd.f32 %v1749, %v1823
    %v1827 = vld [vmem:[%s59] sm:$0x1]
    %v1829 = vperm.slane %v1827, 0
    %v1831 = vadd.f32 %v1825, %v1829
    %v1832 = vadd.f32 %v1826, %v1829
    %v1833 = vld [vmem:[%s61] sm:$0x1]
    %v1834 = vld [vmem:[%s63] sm:$0x1]
    %v1835 = vld [vmem:[%s65] sm:$0xff]
    %v1836 = vld [vmem:[%s65 + $0x8] sm:$0xff]
    %v1837 = vld [vmem:[%s65 + $0x10] sm:$0xff]
    %v1838 = vld [vmem:[%s65 + $0x18] sm:$0xff]
    %v1839 = vld [vmem:[%s65 + $0x20] sm:$0xff]
    %v1840 = vld [vmem:[%s65 + $0x28] sm:$0xff]
    %v1841 = vld [vmem:[%s65 + $0x30] sm:$0xff]
    %v1842 = vld [vmem:[%s65 + $0x38] sm:$0xff]
    %v1843 = vld [vmem:[%s65 + $0x40] sm:$0xff]
    %v1844 = vld [vmem:[%s65 + $0x48] sm:$0xff]
    %v1845 = vld [vmem:[%s65 + $0x50] sm:$0xff]
    %v1846 = vld [vmem:[%s65 + $0x58] sm:$0xff]
    %v1847 = vld [vmem:[%s65 + $0x60] sm:$0xff]
    %v1848 = vld [vmem:[%s65 + $0x68] sm:$0xff]
    %v1849 = vld [vmem:[%s67] sm:$0xff]
    %v1850 = vld [vmem:[%s67 + $0x8] sm:$0xff]
    %v1851 = vsel %vm602, %v1831, 0.0
    %v1852 = vsel %vm764, %v1832, 0.0
    %v1853 = vadd.f32 %v1851, %v1852
    %v1854 = vrot.slane %v1853, 4
    %v1855 = vadd.f32 %v1853, %v1854
    %v1856 = vrot.slane %v1855, 2
    %v1857 = vadd.f32 %v1855, %v1856
    %v1858 = vrot.slane %v1857, 1
    %v1859 = vadd.f32 %v1857, %v1858
    %v1861 = vsel %vm602, %v1859, 0
    %1863 = vmatpush.msra.mxu0 0.0
    %1864 = vmatpush.msra.mxu0 0.0
    %1865 = vmatpush.msra.mxu0 %v1848
    %1866 = vmatpush.msra.mxu0 %v1847
    %1867 = vmatpush.msra.mxu0 %v1846
    %1868 = vmatpush.msra.mxu0 %v1845
    %1869 = vmatpush.msra.mxu0 %v1844
    %1870 = vmatpush.msra.mxu0 %v1843
    %1871 = vmatpush.msra.mxu0 %v1842
    %1872 = vmatpush.msra.mxu0 %v1841
    %1873 = vmatpush.msra.mxu0 %v1840
    %1874 = vmatpush.msra.mxu0 %v1839
    %1875 = vmatpush.msra.mxu0 %v1838
    %1876 = vmatpush.msra.mxu0 %v1837
    %1877 = vmatpush.msra.mxu0 %v1836
    %1878 = vmatpush.msra.mxu0 %v1835
    %1879 = vmatmul.f32.gmra.mxu0 %v1861
    %v1880 = vpop.f32.mrf.mxu0
    %v1881 = vadd.f32 0.0, %v1880
    %1882 = vdwg.mxu0
    %v1883 = vmul.f32 %v1831, %v1831
    %v1884 = vmul.f32 %v1832, %v1832
    %v1885 = vsel %vm602, %v1883, 0.0
    %v1886 = vsel %vm764, %v1884, 0.0
    %v1887 = vadd.f32 %v1885, %v1886
    %v1888 = vrot.slane %v1887, 4
    %v1889 = vadd.f32 %v1887, %v1888
    %v1890 = vrot.slane %v1889, 2
    %v1891 = vadd.f32 %v1889, %v1890
    %v1892 = vrot.slane %v1891, 1
    %v1893 = vadd.f32 %v1891, %v1892
    %v1895 = vsel %vm602, %v1893, 0
    %1897 = vmatpush.msra.mxu0 0.0
    %1898 = vmatpush.msra.mxu0 0.0
    %1899 = vmatpush.msra.mxu0 %v1848
    %1900 = vmatpush.msra.mxu0 %v1847
    %1901 = vmatpush.msra.mxu0 %v1846
    %1902 = vmatpush.msra.mxu0 %v1845
    %1903 = vmatpush.msra.mxu0 %v1844
    %1904 = vmatpush.msra.mxu0 %v1843
    %1905 = vmatpush.msra.mxu0 %v1842
    %1906 = vmatpush.msra.mxu0 %v1841
    %1907 = vmatpush.msra.mxu0 %v1840
    %1908 = vmatpush.msra.mxu0 %v1839
    %1909 = vmatpush.msra.mxu0 %v1838
    %1910 = vmatpush.msra.mxu0 %v1837
    %1911 = vmatpush.msra.mxu0 %v1836
    %1912 = vmatpush.msra.mxu0 %v1835
    %1913 = vmatmul.f32.gmra.mxu0 %v1895
    %v1914 = vpop.f32.mrf.mxu0
    %v1915 = vadd.f32 0.0, %v1914
    %1916 = vdwg.mxu0
    %v1917 = vmul.f32 %v1881, 0.010204081
    %v1918 = vmul.f32 %v1915, 0.010204081
    %v1919 = vmul.f32 %v1917, %v1917
    %v1920 = vsub.f32 %v1918, %v1919
    %v1921 = vadd.f32 %v1920, 1e-05
    %v1922 = vrsqrt.pop %v1921
    %v1923 = vmul.f32 %v1922, %v1921
    %v1924 = vmul.f32 %v1923, %v1922
    %v1925 = vmul.f32 0.5, %v1924
    %v1926 = vsub.f32 1.5, %v1925
    %v1927 = vmul.f32 %v1922, %v1926
    %vm1928 = vweird.f32 %v1921
    %vm1929 = vweird.f32 %v1922
    %vm1930 = vmor %vm1928, %vm1929
    %v1931 = vsel %vm1930, %v1922, %v1927
    %v1932 = vmul.f32 %v1833, %v1931
    %v1933 = vmul.f32 %v1917, %v1932
    %v1934 = vsub.f32 %v1834, %v1933
    %v1936 = vsel %vm848, %v1932, 0
    %1938 = vmatpush.msra.mxu0 0.0
    %1939 = vmatpush.msra.mxu0 0.0
    %1940 = vmatpush.msra.mxu0 0.0
    %1941 = vmatpush.msra.mxu0 0.0
    %1942 = vmatpush.msra.mxu0 0.0
    %1943 = vmatpush.msra.mxu0 0.0
    %1944 = vmatpush.msra.mxu0 0.0
    %1945 = vmatpush.msra.mxu0 0.0
    %1946 = vmatpush.msra.mxu0 0.0
    %1947 = vmatpush.msra.mxu0 0.0
    %1948 = vmatpush.msra.mxu0 0.0
    %1949 = vmatpush.msra.mxu0 0.0
    %1950 = vmatpush.msra.mxu0 0.0
    %1951 = vmatpush.msra.mxu0 0.0
    %1952 = vmatpush.msra.mxu0 %v1850
    %1953 = vmatpush.msra.mxu0 %v1849
    %1954 = vmatmul.f32.gmra.mxu0 %v1936
    %v1955 = vpop.f32.mrf.mxu0
    %v1956 = vadd.f32 0.0, %v1955
    %1957 = vdwg.mxu0
    %v1959 = vsel %vm848, %v1934, 0
    %1961 = vmatpush.msra.mxu0 0.0
    %1962 = vmatpush.msra.mxu0 0.0
    %1963 = vmatpush.msra.mxu0 0.0
    %1964 = vmatpush.msra.mxu0 0.0
    %1965 = vmatpush.msra.mxu0 0.0
    %1966 = vmatpush.msra.mxu0 0.0
    %1967 = vmatpush.msra.mxu0 0.0
    %1968 = vmatpush.msra.mxu0 0.0
    %1969 = vmatpush.msra.mxu0 0.0
    %1970 = vmatpush.msra.mxu0 0.0
    %1971 = vmatpush.msra.mxu0 0.0
    %1972 = vmatpush.msra.mxu0 0.0
    %1973 = vmatpush.msra.mxu0 0.0
    %1974 = vmatpush.msra.mxu0 0.0
    %1975 = vmatpush.msra.mxu0 %v1850
    %1976 = vmatpush.msra.mxu0 %v1849
    %1977 = vmatmul.f32.gmra.mxu0 %v1959
    %v1978 = vpop.f32.mrf.mxu0
    %v1979 = vadd.f32 0.0, %v1978
    %1980 = vdwg.mxu0
    %v1981 = vperm.slane %v1956, 0
    %v1982 = vmul.f32 %v1831, %v1981
    %v1983 = vmul.f32 %v1832, %v1981
    %v1984 = vperm.slane %v1979, 0
    %v1985 = vadd.f32 %v1982, %v1984
    %v1986 = vadd.f32 %v1983, %v1984
    %v1987 = vmax.f32 %v1985, 0.0
    %v1988 = vmax.f32 %v1986, 0.0
    %v1989 = vld [vmem:[%s69] sm:$0xff]
    %v1990 = vld [vmem:[%s69 + $0x8] sm:$0xff]
    %v1991 = vld [vmem:[%s69 + $0x10] sm:$0xff]
    %v1992 = vld [vmem:[%s69 + $0x18] sm:$0xf]
    %v1994 = vsel %vm904, %v1989, 0
    %v1997 = vsel %vm904, %v1990, 0
    %v2000 = vsel %vm904, %v1991, 0
    %v2003 = vsel %vm904, %v1992, 0
    %v2006 = vsel %vm908, %v1988, 0
    %2008 = vmatpush.msra.mxu0 0.0
    %2009 = vmatpush.msra.mxu0 0.0
    %2010 = vmatpush.msra.mxu0 0.0
    %2011 = vmatpush.msra.mxu0 0.0
    %2012 = vmatpush.msra.mxu0 0.0
    %2013 = vmatpush.msra.mxu0 0.0
    %2014 = vmatpush.msra.mxu0 0.0
    %2015 = vmatpush.msra.mxu0 0.0
    %2016 = vmatpush.msra.mxu0 0.0
    %2017 = vmatpush.msra.mxu0 0.0
    %2018 = vmatpush.msra.mxu0 0.0
    %2019 = vmatpush.msra.mxu0 0.0
    %2020 = vmatpush.msra.mxu0 0.0
    %2021 = vmatpush.msra.mxu0 0.0
    %2022 = vmatpush.msra.mxu0 %v2006
    %2023 = vmatpush.msra.mxu0 %v1987
    %2024 = vmatmul.f32.gmra.mxu0 %v1994
    %v2025 = vpop.f32.mrf.mxu0
    %v2026 = vadd.f32 0.0, %v2025
    %2027 = vmatmul.f32.gmra.mxu0 %v1997
    %v2028 = vpop.f32.mrf.mxu0
    %v2029 = vadd.f32 0.0, %v2028
    %2030 = vmatmul.f32.gmra.mxu0 %v2000
    %v2031 = vpop.f32.mrf.mxu0
    %v2032 = vadd.f32 0.0, %v2031
    %2033 = vmatmul.f32.gmra.mxu0 %v2003
    %v2034 = vpop.f32.mrf.mxu0
    %v2035 = vadd.f32 0.0, %v2034
    %2036 = vdwg.mxu0
    %v2037 = vld [vmem:[%s71] sm:$0xff]
    %v2038 = vld [vmem:[%s71 + $0x8] sm:$0xff]
    %v2039 = vld [vmem:[%s71 + $0x10] sm:$0xff]
    %v2040 = vld [vmem:[%s71 + $0x18] sm:$0xff]
    %v2041 = vld [vmem:[%s71 + $0x20] sm:$0xff]
    %v2042 = vld [vmem:[%s71 + $0x28] sm:$0xff]
    %v2043 = vld [vmem:[%s71 + $0x30] sm:$0xff]
    %v2044 = vld [vmem:[%s71 + $0x38] sm:$0xff]
    %v2045 = vld [vmem:[%s71 + $0x40] sm:$0xff]
    %v2046 = vld [vmem:[%s71 + $0x48] sm:$0xff]
    %v2047 = vld [vmem:[%s71 + $0x50] sm:$0xff]
    %v2048 = vld [vmem:[%s71 + $0x58] sm:$0xff]
    %v2049 = vld [vmem:[%s71 + $0x60] sm:$0xff]
    %v2050 = vld [vmem:[%s71 + $0x68] sm:$0xff]
    %s2051 = scalar_lea.vmem %s69, 32
    %v2052 = vld [vmem:[%s2051] sm:$0xff]
    %v2053 = vld [vmem:[%s2051 + $0x8] sm:$0xff]
    %v2054 = vld [vmem:[%s2051 + $0x10] sm:$0xff]
    %v2055 = vld [vmem:[%s2051 + $0x18] sm:$0xf]
    %v2057 = vsel %vm904, %v2052, 0
    %v2060 = vsel %vm904, %v2053, 0
    %v2063 = vsel %vm904, %v2054, 0
    %v2066 = vsel %vm904, %v2055, 0
    %2068 = vmatpush.msra.mxu0 0.0
    %2069 = vmatpush.msra.mxu0 0.0
    %2070 = vmatpush.msra.mxu0 0.0
    %2071 = vmatpush.msra.mxu0 0.0
    %2072 = vmatpush.msra.mxu0 0.0
    %2073 = vmatpush.msra.mxu0 0.0
    %2074 = vmatpush.msra.mxu0 0.0
    %2075 = vmatpush.msra.mxu0 0.0
    %2076 = vmatpush.msra.mxu0 0.0
    %2077 = vmatpush.msra.mxu0 0.0
    %2078 = vmatpush.msra.mxu0 0.0
    %2079 = vmatpush.msra.mxu0 0.0
    %2080 = vmatpush.msra.mxu0 0.0
    %2081 = vmatpush.msra.mxu0 0.0
    %2082 = vmatpush.msra.mxu0 %v2006
    %2083 = vmatpush.msra.mxu0 %v1987
    %2084 = vmatmul.f32.gmra.mxu0 %v2057
    %v2085 = vpop.f32.mrf.mxu0
    %v2086 = vadd.f32 0.0, %v2085
    %2087 = vmatmul.f32.gmra.mxu0 %v2060
    %v2088 = vpop.f32.mrf.mxu0
    %v2089 = vadd.f32 0.0, %v2088
    %2090 = vmatmul.f32.gmra.mxu0 %v2063
    %v2091 = vpop.f32.mrf.mxu0
    %v2092 = vadd.f32 0.0, %v2091
    %2093 = vmatmul.f32.gmra.mxu0 %v2066
    %v2094 = vpop.f32.mrf.mxu0
    %v2095 = vadd.f32 0.0, %v2094
    %2096 = vdwg.mxu0
    %s2097 = scalar_lea.vmem %s71, 112
    %v2098 = vld [vmem:[%s2097] sm:$0xff]
    %v2099 = vld [vmem:[%s2097 + $0x8] sm:$0xff]
    %v2100 = vld [vmem:[%s2097 + $0x10] sm:$0xff]
    %v2101 = vld [vmem:[%s2097 + $0x18] sm:$0xff]
    %v2102 = vld [vmem:[%s2097 + $0x20] sm:$0xff]
    %v2103 = vld [vmem:[%s2097 + $0x28] sm:$0xff]
    %v2104 = vld [vmem:[%s2097 + $0x30] sm:$0xff]
    %v2105 = vld [vmem:[%s2097 + $0x38] sm:$0xff]
    %v2106 = vld [vmem:[%s2097 + $0x40] sm:$0xff]
    %v2107 = vld [vmem:[%s2097 + $0x48] sm:$0xff]
    %v2108 = vld [vmem:[%s2097 + $0x50] sm:$0xff]
    %v2109 = vld [vmem:[%s2097 + $0x58] sm:$0xff]
    %v2110 = vld [vmem:[%s2097 + $0x60] sm:$0xff]
    %v2111 = vld [vmem:[%s2097 + $0x68] sm:$0xff]
    %v2113 = vsel %vm602, %v2086, 0
    %v2116 = vsel %vm602, %v2089, 0
    %v2119 = vsel %vm602, %v2092, 0
    %v2122 = vsel %vm602, %v2095, 0
    %2124 = vmatpush.msra.mxu0 0.0
    %2125 = vmatpush.msra.mxu0 0.0
    %2126 = vmatpush.msra.mxu0 %v2111
    %2127 = vmatpush.msra.mxu0 %v2110
    %2128 = vmatpush.msra.mxu0 %v2109
    %2129 = vmatpush.msra.mxu0 %v2108
    %2130 = vmatpush.msra.mxu0 %v2107
    %2131 = vmatpush.msra.mxu0 %v2106
    %2132 = vmatpush.msra.mxu0 %v2105
    %2133 = vmatpush.msra.mxu0 %v2104
    %2134 = vmatpush.msra.mxu0 %v2103
    %2135 = vmatpush.msra.mxu0 %v2102
    %2136 = vmatpush.msra.mxu0 %v2101
    %2137 = vmatpush.msra.mxu0 %v2100
    %2138 = vmatpush.msra.mxu0 %v2099
    %2139 = vmatpush.msra.mxu0 %v2098
    %2140 = vmatmul.f32.gmra.mxu0 %v2113
    %v2141 = vpop.f32.mrf.mxu0
    %v2142 = vadd.f32 0.0, %v2141
    %2143 = vmatmul.f32.gmra.mxu0 %v2116
    %v2144 = vpop.f32.mrf.mxu0
    %v2145 = vadd.f32 0.0, %v2144
    %2146 = vmatmul.f32.gmra.mxu0 %v2119
    %v2147 = vpop.f32.mrf.mxu0
    %v2148 = vadd.f32 0.0, %v2147
    %2149 = vmatmul.f32.gmra.mxu0 %v2122
    %v2150 = vpop.f32.mrf.mxu0
    %v2151 = vadd.f32 0.0, %v2150
    %2152 = vdwg.mxu0
    %v2154 = vsel %vm602, %v2026, 0
    %v2157 = vsel %vm602, %v2029, 0
    %v2160 = vsel %vm602, %v2032, 0
    %v2163 = vsel %vm602, %v2035, 0
    %2165 = vmatpush.msra.mxu0 0.0
    %2166 = vmatpush.msra.mxu0 0.0
    %2167 = vmatpush.msra.mxu0 %v2050
    %2168 = vmatpush.msra.mxu0 %v2049
    %2169 = vmatpush.msra.mxu0 %v2048
    %2170 = vmatpush.msra.mxu0 %v2047
    %2171 = vmatpush.msra.mxu0 %v2046
    %2172 = vmatpush.msra.mxu0 %v2045
    %2173 = vmatpush.msra.mxu0 %v2044
    %2174 = vmatpush.msra.mxu0 %v2043
    %2175 = vmatpush.msra.mxu0 %v2042
    %2176 = vmatpush.msra.mxu0 %v2041
    %2177 = vmatpush.msra.mxu0 %v2040
    %2178 = vmatpush.msra.mxu0 %v2039
    %2179 = vmatpush.msra.mxu0 %v2038
    %2180 = vmatpush.msra.mxu0 %v2037
    %2181 = vmatmul.f32.gmra.mxu0 %v2154
    %v2182 = vpop.f32.mrf.mxu0
    %v2183 = vadd.f32 %v2142, %v2182
    %2184 = vmatmul.f32.gmra.mxu0 %v2157
    %v2185 = vpop.f32.mrf.mxu0
    %v2186 = vadd.f32 %v2145, %v2185
    %2187 = vmatmul.f32.gmra.mxu0 %v2160
    %v2188 = vpop.f32.mrf.mxu0
    %v2189 = vadd.f32 %v2148, %v2188
    %2190 = vmatmul.f32.gmra.mxu0 %v2163
    %v2191 = vpop.f32.mrf.mxu0
    %v2192 = vadd.f32 %v2151, %v2191
    %2193 = vdwg.mxu0
    %s2194 = scalar_lea.vmem %s69, 64
    %v2195 = vld [vmem:[%s2194] sm:$0xff]
    %v2196 = vld [vmem:[%s2194 + $0x8] sm:$0xff]
    %v2197 = vld [vmem:[%s2194 + $0x10] sm:$0xff]
    %v2198 = vld [vmem:[%s2194 + $0x18] sm:$0xf]
    %v2200 = vsel %vm904, %v2195, 0
    %v2203 = vsel %vm904, %v2196, 0
    %v2206 = vsel %vm904, %v2197, 0
    %v2209 = vsel %vm904, %v2198, 0
    %2211 = vmatpush.msra.mxu0 0.0
    %2212 = vmatpush.msra.mxu0 0.0
    %2213 = vmatpush.msra.mxu0 0.0
    %2214 = vmatpush.msra.mxu0 0.0
    %2215 = vmatpush.msra.mxu0 0.0
    %2216 = vmatpush.msra.mxu0 0.0
    %2217 = vmatpush.msra.mxu0 0.0
    %2218 = vmatpush.msra.mxu0 0.0
    %2219 = vmatpush.msra.mxu0 0.0
    %2220 = vmatpush.msra.mxu0 0.0
    %2221 = vmatpush.msra.mxu0 0.0
    %2222 = vmatpush.msra.mxu0 0.0
    %2223 = vmatpush.msra.mxu0 0.0
    %2224 = vmatpush.msra.mxu0 0.0
    %2225 = vmatpush.msra.mxu0 %v2006
    %2226 = vmatpush.msra.mxu0 %v1987
    %2227 = vmatmul.f32.gmra.mxu0 %v2200
    %v2228 = vpop.f32.mrf.mxu0
    %v2229 = vadd.f32 0.0, %v2228
    %2230 = vmatmul.f32.gmra.mxu0 %v2203
    %v2231 = vpop.f32.mrf.mxu0
    %v2232 = vadd.f32 0.0, %v2231
    %2233 = vmatmul.f32.gmra.mxu0 %v2206
    %v2234 = vpop.f32.mrf.mxu0
    %v2235 = vadd.f32 0.0, %v2234
    %2236 = vmatmul.f32.gmra.mxu0 %v2209
    %v2237 = vpop.f32.mrf.mxu0
    %v2238 = vadd.f32 0.0, %v2237
    %2239 = vdwg.mxu0
    %s2240 = scalar_lea.vmem %s71, 224
    %v2241 = vld [vmem:[%s2240] sm:$0xff]
    %v2242 = vld [vmem:[%s2240 + $0x8] sm:$0xff]
    %v2243 = vld [vmem:[%s2240 + $0x10] sm:$0xff]
    %v2244 = vld [vmem:[%s2240 + $0x18] sm:$0xff]
    %v2245 = vld [vmem:[%s2240 + $0x20] sm:$0xff]
    %v2246 = vld [vmem:[%s2240 + $0x28] sm:$0xff]
    %v2247 = vld [vmem:[%s2240 + $0x30] sm:$0xff]
    %v2248 = vld [vmem:[%s2240 + $0x38] sm:$0xff]
    %v2249 = vld [vmem:[%s2240 + $0x40] sm:$0xff]
    %v2250 = vld [vmem:[%s2240 + $0x48] sm:$0xff]
    %v2251 = vld [vmem:[%s2240 + $0x50] sm:$0xff]
    %v2252 = vld [vmem:[%s2240 + $0x58] sm:$0xff]
    %v2253 = vld [vmem:[%s2240 + $0x60] sm:$0xff]
    %v2254 = vld [vmem:[%s2240 + $0x68] sm:$0xff]
    %v2256 = vsel %vm602, %v2229, 0
    %v2259 = vsel %vm602, %v2232, 0
    %v2262 = vsel %vm602, %v2235, 0
    %v2265 = vsel %vm602, %v2238, 0
    %2267 = vmatpush.msra.mxu0 0.0
    %2268 = vmatpush.msra.mxu0 0.0
    %2269 = vmatpush.msra.mxu0 %v2254
    %2270 = vmatpush.msra.mxu0 %v2253
    %2271 = vmatpush.msra.mxu0 %v2252
    %2272 = vmatpush.msra.mxu0 %v2251
    %2273 = vmatpush.msra.mxu0 %v2250
    %2274 = vmatpush.msra.mxu0 %v2249
    %2275 = vmatpush.msra.mxu0 %v2248
    %2276 = vmatpush.msra.mxu0 %v2247
    %2277 = vmatpush.msra.mxu0 %v2246
    %2278 = vmatpush.msra.mxu0 %v2245
    %2279 = vmatpush.msra.mxu0 %v2244
    %2280 = vmatpush.msra.mxu0 %v2243
    %2281 = vmatpush.msra.mxu0 %v2242
    %2282 = vmatpush.msra.mxu0 %v2241
    %2283 = vmatmul.f32.gmra.mxu0 %v2256
    %v2284 = vpop.f32.mrf.mxu0
    %v2285 = vadd.f32 0.0, %v2284
    %2286 = vmatmul.f32.gmra.mxu0 %v2259
    %v2287 = vpop.f32.mrf.mxu0
    %v2288 = vadd.f32 0.0, %v2287
    %2289 = vmatmul.f32.gmra.mxu0 %v2262
    %v2290 = vpop.f32.mrf.mxu0
    %v2291 = vadd.f32 0.0, %v2290
    %2292 = vmatmul.f32.gmra.mxu0 %v2265
    %v2293 = vpop.f32.mrf.mxu0
    %v2294 = vadd.f32 0.0, %v2293
    %2295 = vdwg.mxu0
    %v2296 = vadd.f32 %v2183, %v2285
    %v2297 = vadd.f32 %v2186, %v2288
    %v2298 = vadd.f32 %v2189, %v2291
    %v2299 = vadd.f32 %v2192, %v2294
    %v2300 = vld [vmem:[%s73] sm:$0x1]
    %v2302 = vperm.slane %v2300, 0
    %v2304 = vadd.f32 %v2296, %v2302
    %v2305 = vadd.f32 %v2297, %v2302
    %v2306 = vadd.f32 %v2298, %v2302
    %v2307 = vadd.f32 %v2299, %v2302
    %v2308 = vld [vmem:[%s75] sm:$0x1]
    %v2309 = vld [vmem:[%s77] sm:$0x1]
    %v2310 = vld [vmem:[%s79] sm:$0xff]
    %v2311 = vld [vmem:[%s79 + $0x8] sm:$0xff]
    %v2312 = vld [vmem:[%s79 + $0x10] sm:$0xff]
    %v2313 = vld [vmem:[%s79 + $0x18] sm:$0xff]
    %v2314 = vld [vmem:[%s79 + $0x20] sm:$0xff]
    %v2315 = vld [vmem:[%s79 + $0x28] sm:$0xff]
    %v2316 = vld [vmem:[%s79 + $0x30] sm:$0xff]
    %v2317 = vld [vmem:[%s79 + $0x38] sm:$0xff]
    %v2318 = vld [vmem:[%s79 + $0x40] sm:$0xff]
    %v2319 = vld [vmem:[%s79 + $0x48] sm:$0xff]
    %v2320 = vld [vmem:[%s79 + $0x50] sm:$0xff]
    %v2321 = vld [vmem:[%s79 + $0x58] sm:$0xff]
    %v2322 = vld [vmem:[%s79 + $0x60] sm:$0xff]
    %v2323 = vld [vmem:[%s79 + $0x68] sm:$0xff]
    %v2324 = vld [vmem:[%s81] sm:$0xff]
    %v2325 = vsel %vm602, %v2304, 0.0
    %v2326 = vsel %vm602, %v2305, 0.0
    %v2327 = vadd.f32 %v2325, %v2326
    %v2328 = vsel %vm602, %v2306, 0.0
    %v2329 = vadd.f32 %v2327, %v2328
    %vm2330 = vcmask 912384
    %v2331 = vsel %vm2330, %v2307, 0.0
    %v2332 = vadd.f32 %v2329, %v2331
    %v2333 = vrot.slane %v2332, 4
    %v2334 = vadd.f32 %v2332, %v2333
    %v2335 = vrot.slane %v2334, 2
    %v2336 = vadd.f32 %v2334, %v2335
    %v2337 = vrot.slane %v2336, 1
    %v2338 = vadd.f32 %v2336, %v2337
    %v2340 = vsel %vm602, %v2338, 0
    %2342 = vmatpush.msra.mxu0 0.0
    %2343 = vmatpush.msra.mxu0 0.0
    %2344 = vmatpush.msra.mxu0 %v2323
    %2345 = vmatpush.msra.mxu0 %v2322
    %2346 = vmatpush.msra.mxu0 %v2321
    %2347 = vmatpush.msra.mxu0 %v2320
    %2348 = vmatpush.msra.mxu0 %v2319
    %2349 = vmatpush.msra.mxu0 %v2318
    %2350 = vmatpush.msra.mxu0 %v2317
    %2351 = vmatpush.msra.mxu0 %v2316
    %2352 = vmatpush.msra.mxu0 %v2315
    %2353 = vmatpush.msra.mxu0 %v2314
    %2354 = vmatpush.msra.mxu0 %v2313
    %2355 = vmatpush.msra.mxu0 %v2312
    %2356 = vmatpush.msra.mxu0 %v2311
    %2357 = vmatpush.msra.mxu0 %v2310
    %2358 = vmatmul.f32.gmra.mxu0 %v2340
    %v2359 = vpop.f32.mrf.mxu0
    %v2360 = vadd.f32 0.0, %v2359
    %2361 = vdwg.mxu0
    %v2362 = vmul.f32 %v2304, %v2304
    %v2363 = vmul.f32 %v2305, %v2305
    %v2364 = vmul.f32 %v2306, %v2306
    %v2365 = vmul.f32 %v2307, %v2307
    %v2366 = vsel %vm602, %v2362, 0.0
    %v2367 = vsel %vm602, %v2363, 0.0
    %v2368 = vadd.f32 %v2366, %v2367
    %v2369 = vsel %vm602, %v2364, 0.0
    %v2370 = vadd.f32 %v2368, %v2369
    %v2371 = vsel %vm2330, %v2365, 0.0
    %v2372 = vadd.f32 %v2370, %v2371
    %v2373 = vrot.slane %v2372, 4
    %v2374 = vadd.f32 %v2372, %v2373
    %v2375 = vrot.slane %v2374, 2
    %v2376 = vadd.f32 %v2374, %v2375
    %v2377 = vrot.slane %v2376, 1
    %v2378 = vadd.f32 %v2376, %v2377
    %v2380 = vsel %vm602, %v2378, 0
    %2382 = vmatpush.msra.mxu0 0.0
    %2383 = vmatpush.msra.mxu0 0.0
    %2384 = vmatpush.msra.mxu0 %v2323
    %2385 = vmatpush.msra.mxu0 %v2322
    %2386 = vmatpush.msra.mxu0 %v2321
    %2387 = vmatpush.msra.mxu0 %v2320
    %2388 = vmatpush.msra.mxu0 %v2319
    %2389 = vmatpush.msra.mxu0 %v2318
    %2390 = vmatpush.msra.mxu0 %v2317
    %2391 = vmatpush.msra.mxu0 %v2316
    %2392 = vmatpush.msra.mxu0 %v2315
    %2393 = vmatpush.msra.mxu0 %v2314
    %2394 = vmatpush.msra.mxu0 %v2313
    %2395 = vmatpush.msra.mxu0 %v2312
    %2396 = vmatpush.msra.mxu0 %v2311
    %2397 = vmatpush.msra.mxu0 %v2310
    %2398 = vmatmul.f32.gmra.mxu0 %v2380
    %v2399 = vpop.f32.mrf.mxu0
    %v2400 = vadd.f32 0.0, %v2399
    %2401 = vdwg.mxu0
    %v2402 = vmul.f32 %v2360, 0.0025510204
    %v2403 = vmul.f32 %v2400, 0.0025510204
    %v2404 = vmul.f32 %v2402, %v2402
    %v2405 = vsub.f32 %v2403, %v2404
    %v2406 = vadd.f32 %v2405, 1e-05
    %v2407 = vrsqrt.pop %v2406
    %v2408 = vmul.f32 %v2407, %v2406
    %v2409 = vmul.f32 %v2408, %v2407
    %v2410 = vmul.f32 0.5, %v2409
    %v2411 = vsub.f32 1.5, %v2410
    %v2412 = vmul.f32 %v2407, %v2411
    %vm2413 = vweird.f32 %v2406
    %vm2414 = vweird.f32 %v2407
    %vm2415 = vmor %vm2413, %vm2414
    %v2416 = vsel %vm2415, %v2407, %v2412
    %v2417 = vmul.f32 %v2308, %v2416
    %v2418 = vmul.f32 %v2402, %v2417
    %v2419 = vsub.f32 %v2309, %v2418
    %v2421 = vsel %vm1384, %v2417, 0
    %2423 = vmatpush.msra.mxu0 0.0
    %2424 = vmatpush.msra.mxu0 0.0
    %2425 = vmatpush.msra.mxu0 0.0
    %2426 = vmatpush.msra.mxu0 0.0
    %2427 = vmatpush.msra.mxu0 0.0
    %2428 = vmatpush.msra.mxu0 0.0
    %2429 = vmatpush.msra.mxu0 0.0
    %2430 = vmatpush.msra.mxu0 0.0
    %2431 = vmatpush.msra.mxu0 0.0
    %2432 = vmatpush.msra.mxu0 0.0
    %2433 = vmatpush.msra.mxu0 0.0
    %2434 = vmatpush.msra.mxu0 0.0
    %2435 = vmatpush.msra.mxu0 0.0
    %2436 = vmatpush.msra.mxu0 0.0
    %2437 = vmatpush.msra.mxu0 0.0
    %2438 = vmatpush.msra.mxu0 %v2324
    %2439 = vmatmul.f32.gmra.mxu0 %v2421
    %v2440 = vpop.f32.mrf.mxu0
    %v2441 = vadd.f32 0.0, %v2440
    %2442 = vdwg.mxu0
    %v2444 = vsel %vm1384, %v2419, 0
    %2446 = vmatpush.msra.mxu0 0.0
    %2447 = vmatpush.msra.mxu0 0.0
    %2448 = vmatpush.msra.mxu0 0.0
    %2449 = vmatpush.msra.mxu0 0.0
    %2450 = vmatpush.msra.mxu0 0.0
    %2451 = vmatpush.msra.mxu0 0.0
    %2452 = vmatpush.msra.mxu0 0.0
    %2453 = vmatpush.msra.mxu0 0.0
    %2454 = vmatpush.msra.mxu0 0.0
    %2455 = vmatpush.msra.mxu0 0.0
    %2456 = vmatpush.msra.mxu0 0.0
    %2457 = vmatpush.msra.mxu0 0.0
    %2458 = vmatpush.msra.mxu0 0.0
    %2459 = vmatpush.msra.mxu0 0.0
    %2460 = vmatpush.msra.mxu0 0.0
    %2461 = vmatpush.msra.mxu0 %v2324
    %2462 = vmatmul.f32.gmra.mxu0 %v2444
    %v2463 = vpop.f32.mrf.mxu0
    %v2464 = vadd.f32 0.0, %v2463
    %2465 = vdwg.mxu0
    %v2466 = vperm.slane %v2441, 0
    %v2467 = vmul.f32 %v2304, %v2466
    %v2468 = vmul.f32 %v2305, %v2466
    %v2469 = vmul.f32 %v2306, %v2466
    %v2470 = vmul.f32 %v2307, %v2466
    %v2471 = vperm.slane %v2464, 0
    %v2472 = vadd.f32 %v2467, %v2471
    %v2473 = vadd.f32 %v2468, %v2471
    %v2474 = vadd.f32 %v2469, %v2471
    %v2475 = vadd.f32 %v2470, %v2471
    %v2476 = vmax.f32 %v2472, 0.0
    %v2477 = vmax.f32 %v2473, 0.0
    %v2478 = vmax.f32 %v2474, 0.0
    %v2479 = vmax.f32 %v2475, 0.0
    %v2480 = vld [vmem:[%s83] sm:$0xff]
    %v2481 = vld [vmem:[%s83 + $0x8] sm:$0xff]
    %v2482 = vld [vmem:[%s83 + $0x10] sm:$0xff]
    %v2483 = vld [vmem:[%s83 + $0x18] sm:$0xff]
    %v2484 = vld [vmem:[%s83 + $0x20] sm:$0xff]
    %v2485 = vld [vmem:[%s83 + $0x28] sm:$0xff]
    %v2486 = vld [vmem:[%s83 + $0x30] sm:$0xff]
    %v2488 = vsel %vm306, %v2480, 0
    %v2491 = vsel %vm306, %v2481, 0
    %v2494 = vsel %vm306, %v2482, 0
    %v2497 = vsel %vm306, %v2483, 0
    %v2500 = vsel %vm306, %v2484, 0
    %v2503 = vsel %vm306, %v2485, 0
    %v2506 = vsel %vm306, %v2486, 0
    %v2509 = vsel %vm319, %v2479, 0
    %2511 = vmatpush.msra.mxu0 0.0
    %2512 = vmatpush.msra.mxu0 0.0
    %2513 = vmatpush.msra.mxu0 0.0
    %2514 = vmatpush.msra.mxu0 0.0
    %2515 = vmatpush.msra.mxu0 0.0
    %2516 = vmatpush.msra.mxu0 0.0
    %2517 = vmatpush.msra.mxu0 0.0
    %2518 = vmatpush.msra.mxu0 0.0
    %2519 = vmatpush.msra.mxu0 0.0
    %2520 = vmatpush.msra.mxu0 0.0
    %2521 = vmatpush.msra.mxu0 0.0
    %2522 = vmatpush.msra.mxu0 0.0
    %2523 = vmatpush.msra.mxu0 %v2509
    %2524 = vmatpush.msra.mxu0 %v2478
    %2525 = vmatpush.msra.mxu0 %v2477
    %2526 = vmatpush.msra.mxu0 %v2476
    %2527 = vmatmul.f32.gmra.mxu0 %v2488
    %v2528 = vpop.f32.mrf.mxu0
    %v2529 = vadd.f32 0.0, %v2528
    %2530 = vmatmul.f32.gmra.mxu0 %v2491
    %v2531 = vpop.f32.mrf.mxu0
    %v2532 = vadd.f32 0.0, %v2531
    %2533 = vmatmul.f32.gmra.mxu0 %v2494
    %v2534 = vpop.f32.mrf.mxu0
    %v2535 = vadd.f32 0.0, %v2534
    %2536 = vmatmul.f32.gmra.mxu0 %v2497
    %v2537 = vpop.f32.mrf.mxu0
    %v2538 = vadd.f32 0.0, %v2537
    %2539 = vmatmul.f32.gmra.mxu0 %v2500
    %v2540 = vpop.f32.mrf.mxu0
    %v2541 = vadd.f32 0.0, %v2540
    %2542 = vmatmul.f32.gmra.mxu0 %v2503
    %v2543 = vpop.f32.mrf.mxu0
    %v2544 = vadd.f32 0.0, %v2543
    %2545 = vmatmul.f32.gmra.mxu0 %v2506
    %v2546 = vpop.f32.mrf.mxu0
    %v2547 = vadd.f32 0.0, %v2546
    %2548 = vdwg.mxu0
    %v2549 = vld [vmem:[%s85] sm:$0xff]
    %v2550 = vld [vmem:[%s85 + $0x8] sm:$0xff]
    %v2551 = vld [vmem:[%s85 + $0x10] sm:$0xff]
    %v2552 = vld [vmem:[%s85 + $0x18] sm:$0xff]
    %v2553 = vld [vmem:[%s85 + $0x20] sm:$0xff]
    %v2554 = vld [vmem:[%s85 + $0x28] sm:$0xff]
    %v2555 = vld [vmem:[%s85 + $0x30] sm:$0xff]
    %v2556 = vld [vmem:[%s85 + $0x38] sm:$0xff]
    %v2557 = vld [vmem:[%s85 + $0x40] sm:$0xff]
    %v2558 = vld [vmem:[%s85 + $0x48] sm:$0xff]
    %v2559 = vld [vmem:[%s85 + $0x50] sm:$0xff]
    %v2560 = vld [vmem:[%s85 + $0x58] sm:$0xff]
    %v2561 = vld [vmem:[%s85 + $0x60] sm:$0xff]
    %v2562 = vld [vmem:[%s85 + $0x68] sm:$0xff]
    %s2563 = scalar_lea.vmem %s83, 56
    %v2564 = vld [vmem:[%s2563] sm:$0xff]
    %v2565 = vld [vmem:[%s2563 + $0x8] sm:$0xff]
    %v2566 = vld [vmem:[%s2563 + $0x10] sm:$0xff]
    %v2567 = vld [vmem:[%s2563 + $0x18] sm:$0xff]
    %v2568 = vld [vmem:[%s2563 + $0x20] sm:$0xff]
    %v2569 = vld [vmem:[%s2563 + $0x28] sm:$0xff]
    %v2570 = vld [vmem:[%s2563 + $0x30] sm:$0xff]
    %v2572 = vsel %vm306, %v2564, 0
    %v2575 = vsel %vm306, %v2565, 0
    %v2578 = vsel %vm306, %v2566, 0
    %v2581 = vsel %vm306, %v2567, 0
    %v2584 = vsel %vm306, %v2568, 0
    %v2587 = vsel %vm306, %v2569, 0
    %v2590 = vsel %vm306, %v2570, 0
    %2592 = vmatpush.msra.mxu0 0.0
    %2593 = vmatpush.msra.mxu0 0.0
    %2594 = vmatpush.msra.mxu0 0.0
    %2595 = vmatpush.msra.mxu0 0.0
    %2596 = vmatpush.msra.mxu0 0.0
    %2597 = vmatpush.msra.mxu0 0.0
    %2598 = vmatpush.msra.mxu0 0.0
    %2599 = vmatpush.msra.mxu0 0.0
    %2600 = vmatpush.msra.mxu0 0.0
    %2601 = vmatpush.msra.mxu0 0.0
    %2602 = vmatpush.msra.mxu0 0.0
    %2603 = vmatpush.msra.mxu0 0.0
    %2604 = vmatpush.msra.mxu0 %v2509
    %2605 = vmatpush.msra.mxu0 %v2478
    %2606 = vmatpush.msra.mxu0 %v2477
    %2607 = vmatpush.msra.mxu0 %v2476
    %2608 = vmatmul.f32.gmra.mxu0 %v2572
    %v2609 = vpop.f32.mrf.mxu0
    %v2610 = vadd.f32 0.0, %v2609
    %2611 = vmatmul.f32.gmra.mxu0 %v2575
    %v2612 = vpop.f32.mrf.mxu0
    %v2613 = vadd.f32 0.0, %v2612
    %2614 = vmatmul.f32.gmra.mxu0 %v2578
    %v2615 = vpop.f32.mrf.mxu0
    %v2616 = vadd.f32 0.0, %v2615
    %2617 = vmatmul.f32.gmra.mxu0 %v2581
    %v2618 = vpop.f32.mrf.mxu0
    %v2619 = vadd.f32 0.0, %v2618
    %2620 = vmatmul.f32.gmra.mxu0 %v2584
    %v2621 = vpop.f32.mrf.mxu0
    %v2622 = vadd.f32 0.0, %v2621
    %2623 = vmatmul.f32.gmra.mxu0 %v2587
    %v2624 = vpop.f32.mrf.mxu0
    %v2625 = vadd.f32 0.0, %v2624
    %2626 = vmatmul.f32.gmra.mxu0 %v2590
    %v2627 = vpop.f32.mrf.mxu0
    %v2628 = vadd.f32 0.0, %v2627
    %2629 = vdwg.mxu0
    %s2630 = scalar_lea.vmem %s85, 112
    %v2631 = vld [vmem:[%s2630] sm:$0xff]
    %v2632 = vld [vmem:[%s2630 + $0x8] sm:$0xff]
    %v2633 = vld [vmem:[%s2630 + $0x10] sm:$0xff]
    %v2634 = vld [vmem:[%s2630 + $0x18] sm:$0xff]
    %v2635 = vld [vmem:[%s2630 + $0x20] sm:$0xff]
    %v2636 = vld [vmem:[%s2630 + $0x28] sm:$0xff]
    %v2637 = vld [vmem:[%s2630 + $0x30] sm:$0xff]
    %v2638 = vld [vmem:[%s2630 + $0x38] sm:$0xff]
    %v2639 = vld [vmem:[%s2630 + $0x40] sm:$0xff]
    %v2640 = vld [vmem:[%s2630 + $0x48] sm:$0xff]
    %v2641 = vld [vmem:[%s2630 + $0x50] sm:$0xff]
    %v2642 = vld [vmem:[%s2630 + $0x58] sm:$0xff]
    %v2643 = vld [vmem:[%s2630 + $0x60] sm:$0xff]
    %v2644 = vld [vmem:[%s2630 + $0x68] sm:$0xff]
    %v2646 = vsel %vm602, %v2610, 0
    %v2649 = vsel %vm602, %v2613, 0
    %v2652 = vsel %vm602, %v2616, 0
    %v2655 = vsel %vm602, %v2619, 0
    %v2658 = vsel %vm602, %v2622, 0
    %v2661 = vsel %vm602, %v2625, 0
    %v2664 = vsel %vm602, %v2628, 0
    %2666 = vmatpush.msra.mxu0 0.0
    %2667 = vmatpush.msra.mxu0 0.0
    %2668 = vmatpush.msra.mxu0 %v2644
    %2669 = vmatpush.msra.mxu0 %v2643
    %2670 = vmatpush.msra.mxu0 %v2642
    %2671 = vmatpush.msra.mxu0 %v2641
    %2672 = vmatpush.msra.mxu0 %v2640
    %2673 = vmatpush.msra.mxu0 %v2639
    %2674 = vmatpush.msra.mxu0 %v2638
    %2675 = vmatpush.msra.mxu0 %v2637
    %2676 = vmatpush.msra.mxu0 %v2636
    %2677 = vmatpush.msra.mxu0 %v2635
    %2678 = vmatpush.msra.mxu0 %v2634
    %2679 = vmatpush.msra.mxu0 %v2633
    %2680 = vmatpush.msra.mxu0 %v2632
    %2681 = vmatpush.msra.mxu0 %v2631
    %2682 = vmatmul.f32.gmra.mxu0 %v2646
    %v2683 = vpop.f32.mrf.mxu0
    %v2684 = vadd.f32 0.0, %v2683
    %2685 = vmatmul.f32.gmra.mxu0 %v2649
    %v2686 = vpop.f32.mrf.mxu0
    %v2687 = vadd.f32 0.0, %v2686
    %2688 = vmatmul.f32.gmra.mxu0 %v2652
    %v2689 = vpop.f32.mrf.mxu0
    %v2690 = vadd.f32 0.0, %v2689
    %2691 = vmatmul.f32.gmra.mxu0 %v2655
    %v2692 = vpop.f32.mrf.mxu0
    %v2693 = vadd.f32 0.0, %v2692
    %2694 = vmatmul.f32.gmra.mxu0 %v2658
    %v2695 = vpop.f32.mrf.mxu0
    %v2696 = vadd.f32 0.0, %v2695
    %2697 = vmatmul.f32.gmra.mxu0 %v2661
    %v2698 = vpop.f32.mrf.mxu0
    %v2699 = vadd.f32 0.0, %v2698
    %2700 = vmatmul.f32.gmra.mxu0 %v2664
    %v2701 = vpop.f32.mrf.mxu0
    %v2702 = vadd.f32 0.0, %v2701
    %2703 = vdwg.mxu0
    %v2705 = vsel %vm602, %v2529, 0
    %v2708 = vsel %vm602, %v2532, 0
    %v2711 = vsel %vm602, %v2535, 0
    %v2714 = vsel %vm602, %v2538, 0
    %v2717 = vsel %vm602, %v2541, 0
    %v2720 = vsel %vm602, %v2544, 0
    %v2723 = vsel %vm602, %v2547, 0
    %2725 = vmatpush.msra.mxu0 0.0
    %2726 = vmatpush.msra.mxu0 0.0
    %2727 = vmatpush.msra.mxu0 %v2562
    %2728 = vmatpush.msra.mxu0 %v2561
    %2729 = vmatpush.msra.mxu0 %v2560
    %2730 = vmatpush.msra.mxu0 %v2559
    %2731 = vmatpush.msra.mxu0 %v2558
    %2732 = vmatpush.msra.mxu0 %v2557
    %2733 = vmatpush.msra.mxu0 %v2556
    %2734 = vmatpush.msra.mxu0 %v2555
    %2735 = vmatpush.msra.mxu0 %v2554
    %2736 = vmatpush.msra.mxu0 %v2553
    %2737 = vmatpush.msra.mxu0 %v2552
    %2738 = vmatpush.msra.mxu0 %v2551
    %2739 = vmatpush.msra.mxu0 %v2550
    %2740 = vmatpush.msra.mxu0 %v2549
    %2741 = vmatmul.f32.gmra.mxu0 %v2705
    %v2742 = vpop.f32.mrf.mxu0
    %v2743 = vadd.f32 %v2684, %v2742
    %2744 = vmatmul.f32.gmra.mxu0 %v2708
    %v2745 = vpop.f32.mrf.mxu0
    %v2746 = vadd.f32 %v2687, %v2745
    %2747 = vmatmul.f32.gmra.mxu0 %v2711
    %v2748 = vpop.f32.mrf.mxu0
    %v2749 = vadd.f32 %v2690, %v2748
    %2750 = vmatmul.f32.gmra.mxu0 %v2714
    %v2751 = vpop.f32.mrf.mxu0
    %v2752 = vadd.f32 %v2693, %v2751
    %2753 = vmatmul.f32.gmra.mxu0 %v2717
    %v2754 = vpop.f32.mrf.mxu0
    %v2755 = vadd.f32 %v2696, %v2754
    %2756 = vmatmul.f32.gmra.mxu0 %v2720
    %v2757 = vpop.f32.mrf.mxu0
    %v2758 = vadd.f32 %v2699, %v2757
    %2759 = vmatmul.f32.gmra.mxu0 %v2723
    %v2760 = vpop.f32.mrf.mxu0
    %v2761 = vadd.f32 %v2702, %v2760
    %2762 = vdwg.mxu0
    %s2763 = scalar_lea.vmem %s83, 112
    %v2764 = vld [vmem:[%s2763] sm:$0xff]
    %v2765 = vld [vmem:[%s2763 + $0x8] sm:$0xff]
    %v2766 = vld [vmem:[%s2763 + $0x10] sm:$0xff]
    %v2767 = vld [vmem:[%s2763 + $0x18] sm:$0xff]
    %v2768 = vld [vmem:[%s2763 + $0x20] sm:$0xff]
    %v2769 = vld [vmem:[%s2763 + $0x28] sm:$0xff]
    %v2770 = vld [vmem:[%s2763 + $0x30] sm:$0xff]
    %v2772 = vsel %vm306, %v2764, 0
    %v2775 = vsel %vm306, %v2765, 0
    %v2778 = vsel %vm306, %v2766, 0
    %v2781 = vsel %vm306, %v2767, 0
    %v2784 = vsel %vm306, %v2768, 0
    %v2787 = vsel %vm306, %v2769, 0
    %v2790 = vsel %vm306, %v2770, 0
    %2792 = vmatpush.msra.mxu0 0.0
    %2793 = vmatpush.msra.mxu0 0.0
    %2794 = vmatpush.msra.mxu0 0.0
    %2795 = vmatpush.msra.mxu0 0.0
    %2796 = vmatpush.msra.mxu0 0.0
    %2797 = vmatpush.msra.mxu0 0.0
    %2798 = vmatpush.msra.mxu0 0.0
    %2799 = vmatpush.msra.mxu0 0.0
    %2800 = vmatpush.msra.mxu0 0.0
    %2801 = vmatpush.msra.mxu0 0.0
    %2802 = vmatpush.msra.mxu0 0.0
    %2803 = vmatpush.msra.mxu0 0.0
    %2804 = vmatpush.msra.mxu0 %v2509
    %2805 = vmatpush.msra.mxu0 %v2478
    %2806 = vmatpush.msra.mxu0 %v2477
    %2807 = vmatpush.msra.mxu0 %v2476
    %2808 = vmatmul.f32.gmra.mxu0 %v2772
    %v2809 = vpop.f32.mrf.mxu0
    %v2810 = vadd.f32 0.0, %v2809
    %2811 = vmatmul.f32.gmra.mxu0 %v2775
    %v2812 = vpop.f32.mrf.mxu0
    %v2813 = vadd.f32 0.0, %v2812
    %2814 = vmatmul.f32.gmra.mxu0 %v2778
    %v2815 = vpop.f32.mrf.mxu0
    %v2816 = vadd.f32 0.0, %v2815
    %2817 = vmatmul.f32.gmra.mxu0 %v2781
    %v2818 = vpop.f32.mrf.mxu0
    %v2819 = vadd.f32 0.0, %v2818
    %2820 = vmatmul.f32.gmra.mxu0 %v2784
    %v2821 = vpop.f32.mrf.mxu0
    %v2822 = vadd.f32 0.0, %v2821
    %2823 = vmatmul.f32.gmra.mxu0 %v2787
    %v2824 = vpop.f32.mrf.mxu0
    %v2825 = vadd.f32 0.0, %v2824
    %2826 = vmatmul.f32.gmra.mxu0 %v2790
    %v2827 = vpop.f32.mrf.mxu0
    %v2828 = vadd.f32 0.0, %v2827
    %2829 = vdwg.mxu0
    %s2830 = scalar_lea.vmem %s85, 224
    %v2831 = vld [vmem:[%s2830] sm:$0xff]
    %v2832 = vld [vmem:[%s2830 + $0x8] sm:$0xff]
    %v2833 = vld [vmem:[%s2830 + $0x10] sm:$0xff]
    %v2834 = vld [vmem:[%s2830 + $0x18] sm:$0xff]
    %v2835 = vld [vmem:[%s2830 + $0x20] sm:$0xff]
    %v2836 = vld [vmem:[%s2830 + $0x28] sm:$0xff]
    %v2837 = vld [vmem:[%s2830 + $0x30] sm:$0xff]
    %v2838 = vld [vmem:[%s2830 + $0x38] sm:$0xff]
    %v2839 = vld [vmem:[%s2830 + $0x40] sm:$0xff]
    %v2840 = vld [vmem:[%s2830 + $0x48] sm:$0xff]
    %v2841 = vld [vmem:[%s2830 + $0x50] sm:$0xff]
    %v2842 = vld [vmem:[%s2830 + $0x58] sm:$0xff]
    %v2843 = vld [vmem:[%s2830 + $0x60] sm:$0xff]
    %v2844 = vld [vmem:[%s2830 + $0x68] sm:$0xff]
    %v2846 = vsel %vm602, %v2810, 0
    %v2849 = vsel %vm602, %v2813, 0
    %v2852 = vsel %vm602, %v2816, 0
    %v2855 = vsel %vm602, %v2819, 0
    %v2858 = vsel %vm602, %v2822, 0
    %v2861 = vsel %vm602, %v2825, 0
    %v2864 = vsel %vm602, %v2828, 0
    %2866 = vmatpush.msra.mxu0 0.0
    %2867 = vmatpush.msra.mxu0 0.0
    %2868 = vmatpush.msra.mxu0 %v2844
    %2869 = vmatpush.msra.mxu0 %v2843
    %2870 = vmatpush.msra.mxu0 %v2842
    %2871 = vmatpush.msra.mxu0 %v2841
    %2872 = vmatpush.msra.mxu0 %v2840
    %2873 = vmatpush.msra.mxu0 %v2839
    %2874 = vmatpush.msra.mxu0 %v2838
    %2875 = vmatpush.msra.mxu0 %v2837
    %2876 = vmatpush.msra.mxu0 %v2836
    %2877 = vmatpush.msra.mxu0 %v2835
    %2878 = vmatpush.msra.mxu0 %v2834
    %2879 = vmatpush.msra.mxu0 %v2833
    %2880 = vmatpush.msra.mxu0 %v2832
    %2881 = vmatpush.msra.mxu0 %v2831
    %2882 = vmatmul.f32.gmra.mxu0 %v2846
    %v2883 = vpop.f32.mrf.mxu0
    %v2884 = vadd.f32 0.0, %v2883
    %2885 = vmatmul.f32.gmra.mxu0 %v2849
    %v2886 = vpop.f32.mrf.mxu0
    %v2887 = vadd.f32 0.0, %v2886
    %2888 = vmatmul.f32.gmra.mxu0 %v2852
    %v2889 = vpop.f32.mrf.mxu0
    %v2890 = vadd.f32 0.0, %v2889
    %2891 = vmatmul.f32.gmra.mxu0 %v2855
    %v2892 = vpop.f32.mrf.mxu0
    %v2893 = vadd.f32 0.0, %v2892
    %2894 = vmatmul.f32.gmra.mxu0 %v2858
    %v2895 = vpop.f32.mrf.mxu0
    %v2896 = vadd.f32 0.0, %v2895
    %2897 = vmatmul.f32.gmra.mxu0 %v2861
    %v2898 = vpop.f32.mrf.mxu0
    %v2899 = vadd.f32 0.0, %v2898
    %2900 = vmatmul.f32.gmra.mxu0 %v2864
    %v2901 = vpop.f32.mrf.mxu0
    %v2902 = vadd.f32 0.0, %v2901
    %2903 = vdwg.mxu0
    %v2904 = vadd.f32 %v2743, %v2884
    %v2905 = vadd.f32 %v2746, %v2887
    %v2906 = vadd.f32 %v2749, %v2890
    %v2907 = vadd.f32 %v2752, %v2893
    %v2908 = vadd.f32 %v2755, %v2896
    %v2909 = vadd.f32 %v2758, %v2899
    %v2910 = vadd.f32 %v2761, %v2902
    %v2911 = vld [vmem:[#allocation2] sm:$0x1]
    %v2913 = vperm.slane %v2911, 0
    %v2915 = vadd.f32 %v2904, %v2913
    %v2916 = vadd.f32 %v2905, %v2913
    %v2917 = vadd.f32 %v2906, %v2913
    %v2918 = vadd.f32 %v2907, %v2913
    %v2919 = vadd.f32 %v2908, %v2913
    %v2920 = vadd.f32 %v2909, %v2913
    %v2921 = vadd.f32 %v2910, %v2913
    %v2922 = vxor.u32 %v2915, 2147483648
    %v2923 = vxor.u32 %v2916, 2147483648
    %v2924 = vxor.u32 %v2917, 2147483648
    %v2925 = vxor.u32 %v2918, 2147483648
    %v2926 = vxor.u32 %v2919, 2147483648
    %v2927 = vxor.u32 %v2920, 2147483648
    %v2928 = vxor.u32 %v2921, 2147483648
    %v2929 = vmul.f32 %v2922, 1.442695
    %v2930 = vpow.pop %v2929
    %v2931 = vmul.f32 %v2923, 1.442695
    %v2932 = vpow.pop %v2931
    %v2933 = vmul.f32 %v2924, 1.442695
    %v2934 = vpow.pop %v2933
    %v2935 = vmul.f32 %v2925, 1.442695
    %v2936 = vpow.pop %v2935
    %v2937 = vmul.f32 %v2926, 1.442695
    %v2938 = vpow.pop %v2937
    %v2939 = vmul.f32 %v2927, 1.442695
    %v2940 = vpow.pop %v2939
    %v2941 = vmul.f32 %v2928, 1.442695
    %v2942 = vpow.pop %v2941
    %v2943 = vadd.f32 %v2930, 1.0
    %v2944 = vadd.f32 %v2932, 1.0
    %v2945 = vadd.f32 %v2934, 1.0
    %v2946 = vadd.f32 %v2936, 1.0
    %v2947 = vadd.f32 %v2938, 1.0
    %v2948 = vadd.f32 %v2940, 1.0
    %v2949 = vadd.f32 %v2942, 1.0
    %v2950 = vrcp.pop %v2943
    %v2951 = vmul.f32 %v2943, %v2950
    %v2952 = vsub.f32 1.0, %v2951
    %v2953 = vmul.f32 %v2950, %v2952
    %v2954 = vadd.f32 %v2950, %v2953
    %vm2955 = vweird.f32 %v2943
    %vm2956 = vweird.f32 %v2950
    %vm2957 = vmor %vm2955, %vm2956
    %v2958 = vsel %vm2957, %v2950, %v2954
    %v2959 = vand.u32 2147483647, %v2943
    %vm2960 = vcmp.eq.f32.partialorder %v2959, 8.507059e+37
    %v2961 = vand.u32 %v2943, 2147483648
    %v2962 = vor.u32 1.1754944e-38, %v2961
    %v2963 = vsel %vm2960, %v2962, %v2958
    %v2964 = vmul.f32 1.0, %v2963
    %v2965 = vrcp.pop %v2944
    %v2966 = vmul.f32 %v2944, %v2965
    %v2967 = vsub.f32 1.0, %v2966
    %v2968 = vmul.f32 %v2965, %v2967
    %v2969 = vadd.f32 %v2965, %v2968
    %vm2970 = vweird.f32 %v2944
    %vm2971 = vweird.f32 %v2965
    %vm2972 = vmor %vm2970, %vm2971
    %v2973 = vsel %vm2972, %v2965, %v2969
    %v2974 = vand.u32 2147483647, %v2944
    %vm2975 = vcmp.eq.f32.partialorder %v2974, 8.507059e+37
    %v2976 = vand.u32 %v2944, 2147483648
    %v2977 = vor.u32 1.1754944e-38, %v2976
    %v2978 = vsel %vm2975, %v2977, %v2973
    %v2979 = vmul.f32 1.0, %v2978
    %v2980 = vrcp.pop %v2945
    %v2981 = vmul.f32 %v2945, %v2980
    %v2982 = vsub.f32 1.0, %v2981
    %v2983 = vmul.f32 %v2980, %v2982
    %v2984 = vadd.f32 %v2980, %v2983
    %vm2985 = vweird.f32 %v2945
    %vm2986 = vweird.f32 %v2980
    %vm2987 = vmor %vm2985, %vm2986
    %v2988 = vsel %vm2987, %v2980, %v2984
    %v2989 = vand.u32 2147483647, %v2945
    %vm2990 = vcmp.eq.f32.partialorder %v2989, 8.507059e+37
    %v2991 = vand.u32 %v2945, 2147483648
    %v2992 = vor.u32 1.1754944e-38, %v2991
    %v2993 = vsel %vm2990, %v2992, %v2988
    %v2994 = vmul.f32 1.0, %v2993
    %v2995 = vrcp.pop %v2946
    %v2996 = vmul.f32 %v2946, %v2995
    %v2997 = vsub.f32 1.0, %v2996
    %v2998 = vmul.f32 %v2995, %v2997
    %v2999 = vadd.f32 %v2995, %v2998
    %vm3000 = vweird.f32 %v2946
    %vm3001 = vweird.f32 %v2995
    %vm3002 = vmor %vm3000, %vm3001
    %v3003 = vsel %vm3002, %v2995, %v2999
    %v3004 = vand.u32 2147483647, %v2946
    %vm3005 = vcmp.eq.f32.partialorder %v3004, 8.507059e+37
    %v3006 = vand.u32 %v2946, 2147483648
    %v3007 = vor.u32 1.1754944e-38, %v3006
    %v3008 = vsel %vm3005, %v3007, %v3003
    %v3009 = vmul.f32 1.0, %v3008
    %v3010 = vrcp.pop %v2947
    %v3011 = vmul.f32 %v2947, %v3010
    %v3012 = vsub.f32 1.0, %v3011
    %v3013 = vmul.f32 %v3010, %v3012
    %v3014 = vadd.f32 %v3010, %v3013
    %vm3015 = vweird.f32 %v2947
    %vm3016 = vweird.f32 %v3010
    %vm3017 = vmor %vm3015, %vm3016
    %v3018 = vsel %vm3017, %v3010, %v3014
    %v3019 = vand.u32 2147483647, %v2947
    %vm3020 = vcmp.eq.f32.partialorder %v3019, 8.507059e+37
    %v3021 = vand.u32 %v2947, 2147483648
    %v3022 = vor.u32 1.1754944e-38, %v3021
    %v3023 = vsel %vm3020, %v3022, %v3018
    %v3024 = vmul.f32 1.0, %v3023
    %v3025 = vrcp.pop %v2948
    %v3026 = vmul.f32 %v2948, %v3025
    %v3027 = vsub.f32 1.0, %v3026
    %v3028 = vmul.f32 %v3025, %v3027
    %v3029 = vadd.f32 %v3025, %v3028
    %vm3030 = vweird.f32 %v2948
    %vm3031 = vweird.f32 %v3025
    %vm3032 = vmor %vm3030, %vm3031
    %v3033 = vsel %vm3032, %v3025, %v3029
    %v3034 = vand.u32 2147483647, %v2948
    %vm3035 = vcmp.eq.f32.partialorder %v3034, 8.507059e+37
    %v3036 = vand.u32 %v2948, 2147483648
    %v3037 = vor.u32 1.1754944e-38, %v3036
    %v3038 = vsel %vm3035, %v3037, %v3033
    %v3039 = vmul.f32 1.0, %v3038
    %v3040 = vrcp.pop %v2949
    %v3041 = vmul.f32 %v2949, %v3040
    %v3042 = vsub.f32 1.0, %v3041
    %v3043 = vmul.f32 %v3040, %v3042
    %v3044 = vadd.f32 %v3040, %v3043
    %vm3045 = vweird.f32 %v2949
    %vm3046 = vweird.f32 %v3040
    %vm3047 = vmor %vm3045, %vm3046
    %v3048 = vsel %vm3047, %v3040, %v3044
    %v3049 = vand.u32 2147483647, %v2949
    %vm3050 = vcmp.eq.f32.partialorder %v3049, 8.507059e+37
    %v3051 = vand.u32 %v2949, 2147483648
    %v3052 = vor.u32 1.1754944e-38, %v3051
    %v3053 = vsel %vm3050, %v3052, %v3048
    %v3054 = vmul.f32 1.0, %v3053
    %3055 = vst.msk [vmem:[#allocation5] sm:$0xff] %vm306, %v2964
    %3056 = vst.msk [vmem:[#allocation5 + $0x8] sm:$0xff] %vm306, %v2979
    %3057 = vst.msk [vmem:[#allocation5 + $0x10] sm:$0xff] %vm306, %v2994
    %3058 = vst.msk [vmem:[#allocation5 + $0x18] sm:$0xff] %vm306, %v3009
    %3059 = vst.msk [vmem:[#allocation5 + $0x20] sm:$0xff] %vm306, %v3024
    %3060 = vst.msk [vmem:[#allocation5 + $0x28] sm:$0xff] %vm306, %v3039
    %3061 = vst.msk [vmem:[#allocation5 + $0x30] sm:$0xff] %vm306, %v3054
    // Predicated region
    $region182: #{vae_forward.1} parent=1 // pred_check
      _
    $region183: #{vae_forward.1} parent=1 // pred_check_branch
      %3063 = sbr.rel (0) target = $region185
    $region184: #{vae_forward.1} parent=1 // pred_region
      %3065 = vsyncadd [#allocation4], 0
      %s3066 = sshll.u32 [#allocation5], 4
      %s3067 = int_to_ptr.vmem [resolvable:$true] %s3066
      %s3068 = sshll.u32 %s89, 4
      %s3069 = int_to_ptr.hbm [resolvable:$true] %s3068
      %3074 = dma.vmem_to_hbm [thread:$0]  %s3067, 896, %s3069, [#allocation4], 128, 128, 8
    $region185: #{vae_forward.1} parent=1 // pred_fallthru
      _
    // Predicated region
    $region186: #{vae_forward.1} parent=1 // pred_check
      _
    $region187: #{vae_forward.1} parent=1 // pred_check_branch
      %3076 = sbr.rel (0) target = $region189
    $region188: #{vae_forward.1} parent=1 // pred_region
      %3078 = dma.done [#allocation4], 896
    $region189: #{vae_forward.1} parent=1 // pred_fallthru
      _
    %3079 = vsyncpa [#allocation3], 1
    %3080 = vsyncpa [#allocation4], 1

</llo_original>
